<compile_context>
chip_gen: v5e
topology: v5e:2x2
jax: 0.10.0
libtpu: 0.0.40
codegen_flags: <defaults>
</compile_context>

<pallas_src>
import jax
import jax.numpy as jnp
from jax import lax
from jax.experimental import pallas as pl
from jax.experimental.pallas import tpu as pltpu

N_EMBED = 32
N_HEAD = 4
HEAD_SIZE = N_EMBED // N_HEAD   # 8
BLOCK_SIZE = 32                 # max seq length (causal mask buffer size)
LN_EPS = 1e-5


def _layernorm(x, gamma, beta):
    mu = jnp.mean(x, axis=-1, keepdims=True)
    var = jnp.mean((x - mu) ** 2, axis=-1, keepdims=True)
    return (x - mu) * lax.rsqrt(var + LN_EPS) * gamma + beta


def block_kernel(x_ref, mask_ref,
                 g1_ref, be1_ref,
                 wqkv_ref, wp_ref, bp_ref,
                 g2_ref, be2_ref,
                 w1_ref, bf1_ref, w2_ref, bf2_ref,
                 out_ref):
    """One grid step processes a tile of `bt` batch elements: full block."""
    bt, T, C = x_ref.shape
    # (bt, T, C) -> (bt*T, C): free (T % 8 == 0, lane dim unchanged).
    x2 = x_ref[...].reshape(bt * T, C)

    # ---------------- LayerNorm 1 ----------------
    h = _layernorm(x2, g1_ref[...], be1_ref[...])

    # ---------------- Fused QKV projection ----------------
    # wqkv columns: [ wq * C**-0.5 | wk | wv ]  (scale folded in wrapper)
    qkv = jnp.dot(h, wqkv_ref[...], preferred_element_type=jnp.float32)
    qkv3 = qkv.reshape(bt, T, 3 * C)

    bias = mask_ref[...]        # (T, T) additive causal bias: 0 / -inf
    wp = wp_ref[...]            # (C, C) output projection

    # ---------------- Multi-head causal self-attention ----------------
    sa = jnp.zeros((bt * T, C), jnp.float32)
    for hi in range(N_HEAD):    # static unroll over 4 heads
        lo = hi * HEAD_SIZE
        q = qkv3[:, :, lo:lo + HEAD_SIZE]                    # (bt, T, hs)
        k = qkv3[:, :, C + lo:C + lo + HEAD_SIZE]
        v = qkv3[:, :, 2 * C + lo:2 * C + lo + HEAD_SIZE]

        s = jnp.einsum('btd,bsd->bts', q, k,
                       preferred_element_type=jnp.float32)   # (bt, T, T)
        s = s + bias                                         # causal mask
        m = jnp.max(s, axis=-1, keepdims=True)
        p = jnp.exp(s - m)
        denom = jnp.sum(p, axis=-1, keepdims=True)
        # attention dropout: identity at inference
        o = jnp.einsum('bts,bsd->btd', p, v,
                       preferred_element_type=jnp.float32)   # (bt, T, hs)
        # exact f32 normalization post-PV (small tensor; matches reference)
        o = o / denom
        # accumulate projected head output (no lane concat):
        sa = sa + jnp.dot(o.reshape(bt * T, HEAD_SIZE),
                          wp[lo:lo + HEAD_SIZE, :],
                          preferred_element_type=jnp.float32)

    # projection dropout: identity at inference
    x1 = x2 + sa + bp_ref[...]                               # residual 1

    # ---------------- LayerNorm 2 + FeedForward ----------------
    h2 = _layernorm(x1, g2_ref[...], be2_ref[...])
    f = jnp.dot(h2, w1_ref[...], preferred_element_type=jnp.float32) + bf1_ref[...]
    f = jnp.maximum(f, 0.0)                                  # ReLU
    f = jnp.dot(f, w2_ref[...], preferred_element_type=jnp.float32) + bf2_ref[...]
    # ffwd dropout: identity at inference

    out_ref[...] = (x1 + f).reshape(bt, T, C)                # residual 2


def block_forward(x, params, *, batch_tile=128):
    """x: (B, T, C) float32; params: dict of weights (all float32)."""
    B, T, C = x.shape
    assert C == N_EMBED and T <= BLOCK_SIZE
    p = params

    # Pack QKV weights once; fold the attention scale (C**-0.5, per PyTorch
    # Head which uses n_embed, not head_size) into the Q columns.
    scale = float(C) ** -0.5
    wqkv = jnp.concatenate([p["wq"] * scale, p["wk"], p["wv"]], axis=1)  # (C, 3C)

    # Precompute the additive causal bias once (hoisted out of the kernel).
    tril = jnp.tril(jnp.ones((T, T), bool))
    mask_bias = jnp.where(tril, 0.0, -jnp.inf).astype(jnp.float32)       # (T, T)

    # Largest batch tile <= batch_tile that divides B exactly (keeps every
    # grid step full; ~128 keeps per-step VMEM well under v7x's 64 MiB).
    bt = min(batch_tile, B)
    while B % bt:
        bt -= 1
    grid = (B // bt,)

    weight_args = (
        p["ln1_g"], p["ln1_b"],
        wqkv, p["wp"], p["bp"],
        p["ln2_g"], p["ln2_b"],
        p["w1"], p["b1"], p["w2"], p["b2"],
    )

    def const2d(shape):
        # full array, VMEM-resident across the whole grid
        return pl.BlockSpec(shape, lambda b: (0, 0))

    in_specs = [pl.BlockSpec((bt, T, C), lambda b: (b, 0, 0)),
                const2d(mask_bias.shape)]
    in_specs += [const2d(w.shape) for w in weight_args]

    return pl.pallas_call(
        block_kernel,
        out_shape=jax.ShapeDtypeStruct((B, T, C), jnp.float32),
        grid=grid,
        in_specs=in_specs,
        out_specs=pl.BlockSpec((bt, T, C), lambda b: (b, 0, 0)),
        compiler_params=pltpu.CompilerParams(
            dimension_semantics=("parallel",)),
    )(x, mask_bias, *weight_args)


def init_params(key):
    """Deterministic synthetic parameters with the shapes implied by __init__."""
    ks = jax.random.split(key, 10)

    def lin(k, fan_in, fan_out):
        # layout (in, out) so kernel does x @ W
        return (jax.random.normal(k, (fan_in, fan_out), jnp.float32)
                / jnp.sqrt(fan_in).astype(jnp.float32))

    params = {
        # per-head key/query/value projections concatenated along the out dim:
        # column block h*HEAD_SIZE:(h+1)*HEAD_SIZE belongs to head h (no bias)
        "wk": lin(ks[0], N_EMBED, N_EMBED),
        "wq": lin(ks[1], N_EMBED, N_EMBED),
        "wv": lin(ks[2], N_EMBED, N_EMBED),
        # output projection (n_embed -> n_embed) with bias
        "wp": lin(ks[3], N_EMBED, N_EMBED),
        "bp": jax.random.normal(ks[4], (1, N_EMBED), jnp.float32) * 0.02,
        # feed-forward: Linear(32,128) -> ReLU -> Linear(128,32)
        "w1": lin(ks[5], N_EMBED, 4 * N_EMBED),
        "b1": jax.random.normal(ks[6], (1, 4 * N_EMBED), jnp.float32) * 0.02,
        "w2": lin(ks[7], 4 * N_EMBED, N_EMBED),
        "b2": jax.random.normal(ks[8], (1, N_EMBED), jnp.float32) * 0.02,
        # LayerNorms
        "ln1_g": jnp.ones((1, N_EMBED), jnp.float32),
        "ln1_b": jnp.zeros((1, N_EMBED), jnp.float32),
        "ln2_g": jnp.ones((1, N_EMBED), jnp.float32),
        "ln2_b": jnp.zeros((1, N_EMBED), jnp.float32),
    }
    return params


def block_reference(x, p):
    """Pure-JAX reference mirroring the PyTorch forward (eval mode)."""
    def ln(v, g, b):
        mu = jnp.mean(v, axis=-1, keepdims=True)
        var = jnp.mean((v - mu) ** 2, axis=-1, keepdims=True)
        return (v - mu) / jnp.sqrt(var + LN_EPS) * g + b

    B, T, C = x.shape
    h = ln(x, p["ln1_g"], p["ln1_b"])
    tril = jnp.tril(jnp.ones((T, T), bool))
    outs = []
    for hi in range(N_HEAD):
        sl = slice(hi * HEAD_SIZE, (hi + 1) * HEAD_SIZE)
        q = h @ p["wq"][:, sl]
        k = h @ p["wk"][:, sl]
        v = h @ p["wv"][:, sl]
        wei = (q @ jnp.swapaxes(k, -2, -1)) * (C ** -0.5)
        wei = jnp.where(tril, wei, -jnp.inf)
        wei = jax.nn.softmax(wei, axis=-1)
        outs.append(wei @ v)
    sa = jnp.concatenate(outs, axis=-1) @ p["wp"] + p["bp"]
    x1 = x + sa
    h2 = ln(x1, p["ln2_g"], p["ln2_b"])
    f = jnp.maximum(h2 @ p["w1"] + p["b1"], 0.0) @ p["w2"] + p["b2"]
    return x1 + f


if __name__ == "__main__":
    key = jax.random.PRNGKey(0)
    kx, kp = jax.random.split(key)

    B, T, C = 8, 32, N_EMBED
    x = jax.random.normal(kx, (B, T, C), jnp.float32)
    params = init_params(kp)

    # batch_tile=4 -> 2 grid steps at this small demo size (exercises the
    # batch-tiled index_map and the parallel grid axis).
    out = block_forward(x, params, batch_tile=4)
    out = jax.block_until_ready(out)

    ref = block_reference(x, params)
    assert out.shape == (B, T, C)
    max_err = float(jnp.max(jnp.abs(out - ref)))
    assert jnp.allclose(out, ref, atol=1e-3, rtol=1e-3), \
        f"mismatch vs JAX reference, max abs err {max_err}"

    print("KERNEL_OK")
</pallas_src>

<mosaic_0001>
module attributes {stable_mosaic.version = 11 : i64} {
  func.func @block_kernel(%arg0: i32, %arg1: memref<4x32x32xf32, #tpu.memory_space<vmem>>, %arg2: memref<32x32xf32, #tpu.memory_space<vmem>>, %arg3: memref<1x32xf32, #tpu.memory_space<vmem>>, %arg4: memref<1x32xf32, #tpu.memory_space<vmem>>, %arg5: memref<32x96xf32, #tpu.memory_space<vmem>>, %arg6: memref<32x32xf32, #tpu.memory_space<vmem>>, %arg7: memref<1x32xf32, #tpu.memory_space<vmem>>, %arg8: memref<1x32xf32, #tpu.memory_space<vmem>>, %arg9: memref<1x32xf32, #tpu.memory_space<vmem>>, %arg10: memref<32x128xf32, #tpu.memory_space<vmem>>, %arg11: memref<1x128xf32, #tpu.memory_space<vmem>>, %arg12: memref<128x32xf32, #tpu.memory_space<vmem>>, %arg13: memref<1x32xf32, #tpu.memory_space<vmem>>, %arg14: memref<4x32x32xf32, #tpu.memory_space<vmem>>) attributes {dimension_semantics = [#tpu.dimension_semantics<parallel>], iteration_bounds = array<i64: 2>, scalar_prefetch = 0 : i64, scratch_operands = 0 : i64, tpu.core_type = #tpu.core_type<tc>, window_params = [{transform_indices = @transform_0, window_bounds = array<i64: 4, 32, 32>}, {pipeline_mode = #tpu.pipeline_mode<synchronous>, transform_indices = @transform_1, window_bounds = array<i64: 32, 32>}, {pipeline_mode = #tpu.pipeline_mode<synchronous>, transform_indices = @transform_2, window_bounds = array<i64: 1, 32>}, {pipeline_mode = #tpu.pipeline_mode<synchronous>, transform_indices = @transform_3, window_bounds = array<i64: 1, 32>}, {pipeline_mode = #tpu.pipeline_mode<synchronous>, transform_indices = @transform_4, window_bounds = array<i64: 32, 96>}, {pipeline_mode = #tpu.pipeline_mode<synchronous>, transform_indices = @transform_5, window_bounds = array<i64: 32, 32>}, {pipeline_mode = #tpu.pipeline_mode<synchronous>, transform_indices = @transform_6, window_bounds = array<i64: 1, 32>}, {pipeline_mode = #tpu.pipeline_mode<synchronous>, transform_indices = @transform_7, window_bounds = array<i64: 1, 32>}, {pipeline_mode = #tpu.pipeline_mode<synchronous>, transform_indices = @transform_8, window_bounds = array<i64: 1, 32>}, {pipeline_mode = #tpu.pipeline_mode<synchronous>, transform_indices = @transform_9, window_bounds = array<i64: 32, 128>}, {pipeline_mode = #tpu.pipeline_mode<synchronous>, transform_indices = @transform_10, window_bounds = array<i64: 1, 128>}, {pipeline_mode = #tpu.pipeline_mode<synchronous>, transform_indices = @transform_11, window_bounds = array<i64: 128, 32>}, {pipeline_mode = #tpu.pipeline_mode<synchronous>, transform_indices = @transform_12, window_bounds = array<i64: 1, 32>}, {transform_indices = @transform_13, window_bounds = array<i64: 4, 32, 32>}]} {
    %c0 = arith.constant 0 : index
    %c0_0 = arith.constant 0 : index
    %c0_1 = arith.constant 0 : index
    %0 = vector.load %arg1[%c0, %c0_0, %c0_1] : memref<4x32x32xf32, #tpu.memory_space<vmem>>, vector<4x32x32xf32>
    %1 = vector.shape_cast %0 : vector<4x32x32xf32> to vector<128x32xf32>
    %c0_2 = arith.constant 0 : index
    %c0_3 = arith.constant 0 : index
    %2 = vector.load %arg3[%c0_2, %c0_3] : memref<1x32xf32, #tpu.memory_space<vmem>>, vector<1x32xf32>
    %c0_4 = arith.constant 0 : index
    %c0_5 = arith.constant 0 : index
    %3 = vector.load %arg4[%c0_4, %c0_5] : memref<1x32xf32, #tpu.memory_space<vmem>>, vector<1x32xf32>
    %cst = arith.constant dense<0.000000e+00> : vector<128xf32>
    %4 = vector.multi_reduction <add>, %1, %cst [1] : vector<128x32xf32> to vector<128xf32>
    %5 = vector.shape_cast %4 : vector<128xf32> to vector<128x1xf32>
    %cst_6 = arith.constant 3.200000e+01 : f32
    %6 = vector.broadcast %cst_6 : f32 to vector<128x1xf32>
    %7 = arith.divf %5, %6 : vector<128x1xf32>
    %8 = vector.broadcast %7 : vector<128x1xf32> to vector<128x32xf32>
    %9 = arith.subf %1, %8 : vector<128x32xf32>
    %10 = arith.mulf %9, %9 : vector<128x32xf32>
    %cst_7 = arith.constant dense<0.000000e+00> : vector<128xf32>
    %11 = vector.multi_reduction <add>, %10, %cst_7 [1] : vector<128x32xf32> to vector<128xf32>
    %12 = vector.shape_cast %11 : vector<128xf32> to vector<128x1xf32>
    %cst_8 = arith.constant 3.200000e+01 : f32
    %13 = vector.broadcast %cst_8 : f32 to vector<128x1xf32>
    %14 = arith.divf %12, %13 : vector<128x1xf32>
    %15 = vector.broadcast %7 : vector<128x1xf32> to vector<128x32xf32>
    %16 = arith.subf %1, %15 : vector<128x32xf32>
    %cst_9 = arith.constant 9.99999974E-6 : f32
    %17 = vector.broadcast %cst_9 : f32 to vector<128x1xf32>
    %18 = arith.addf %14, %17 : vector<128x1xf32>
    %19 = math.rsqrt %18 : vector<128x1xf32>
    %20 = vector.broadcast %19 : vector<128x1xf32> to vector<128x32xf32>
    %21 = arith.mulf %16, %20 : vector<128x32xf32>
    %22 = vector.broadcast %2 : vector<1x32xf32> to vector<128x32xf32>
    %23 = arith.mulf %21, %22 : vector<128x32xf32>
    %24 = vector.broadcast %3 : vector<1x32xf32> to vector<128x32xf32>
    %25 = arith.addf %23, %24 : vector<128x32xf32>
    %c0_10 = arith.constant 0 : index
    %c0_11 = arith.constant 0 : index
    %26 = vector.load %arg5[%c0_10, %c0_11] : memref<32x96xf32, #tpu.memory_space<vmem>>, vector<32x96xf32>
    %cst_12 = arith.constant dense<0.000000e+00> : vector<128x96xf32>
    %27 = tpu.matmul %25, %26, %cst_12 {dimension_numbers = #tpu.dot_dimension_numbers<[1], [0], [0], [1], [0, 0, 1, 1], [], []>} : vector<128x32xf32>, vector<32x96xf32>, vector<128x96xf32> -> vector<128x96xf32>
    %28 = vector.shape_cast %27 : vector<128x96xf32> to vector<4x32x96xf32>
    %c0_13 = arith.constant 0 : index
    %c0_14 = arith.constant 0 : index
    %29 = vector.load %arg2[%c0_13, %c0_14] : memref<32x32xf32, #tpu.memory_space<vmem>>, vector<32x32xf32>
    %c0_15 = arith.constant 0 : index
    %c0_16 = arith.constant 0 : index
    %30 = vector.load %arg6[%c0_15, %c0_16] : memref<32x32xf32, #tpu.memory_space<vmem>>, vector<32x32xf32>
    %cst_17 = arith.constant 0.000000e+00 : f32
    %31 = vector.broadcast %cst_17 : f32 to vector<128x32xf32>
    %32 = vector.extract_strided_slice %28 {offsets = [0, 0, 0], sizes = [4, 32, 8], strides = [1, 1, 1]} : vector<4x32x96xf32> to vector<4x32x8xf32>
    %33 = vector.extract_strided_slice %28 {offsets = [0, 0, 32], sizes = [4, 32, 8], strides = [1, 1, 1]} : vector<4x32x96xf32> to vector<4x32x8xf32>
    %34 = vector.extract_strided_slice %28 {offsets = [0, 0, 64], sizes = [4, 32, 8], strides = [1, 1, 1]} : vector<4x32x96xf32> to vector<4x32x8xf32>
    "tpu.trace_start"() <{level = 10 : i32, message = "btd,bsd->bts"}> : () -> ()
    %cst_18 = arith.constant dense<0.000000e+00> : vector<4x32x32xf32>
    %35 = tpu.matmul %32, %33, %cst_18 {dimension_numbers = #tpu.dot_dimension_numbers<[2], [2], [1], [1], [0, 0, 0, 1, 1, 1], [0], [0]>} : vector<4x32x8xf32>, vector<4x32x8xf32>, vector<4x32x32xf32> -> vector<4x32x32xf32>
    "tpu.trace_stop"() : () -> ()
    %36 = vector.shape_cast %29 : vector<32x32xf32> to vector<1x32x32xf32>
    %37 = vector.broadcast %36 : vector<1x32x32xf32> to vector<4x32x32xf32>
    %38 = arith.addf %35, %37 : vector<4x32x32xf32>
    %cst_19 = arith.constant dense<0xFF800000> : vector<4x32xf32>
    %39 = vector.multi_reduction <maximumf>, %38, %cst_19 [2] : vector<4x32x32xf32> to vector<4x32xf32>
    %40 = vector.shape_cast %39 : vector<4x32xf32> to vector<4x32x1xf32>
    %41 = vector.broadcast %40 : vector<4x32x1xf32> to vector<4x32x32xf32>
    %42 = arith.subf %38, %41 : vector<4x32x32xf32>
    %43 = math.exp %42 : vector<4x32x32xf32>
    %cst_20 = arith.constant dense<0.000000e+00> : vector<4x32xf32>
    %44 = vector.multi_reduction <add>, %43, %cst_20 [2] : vector<4x32x32xf32> to vector<4x32xf32>
    %45 = vector.shape_cast %44 : vector<4x32xf32> to vector<4x32x1xf32>
    "tpu.trace_start"() <{level = 10 : i32, message = "bts,bsd->btd"}> : () -> ()
    %cst_21 = arith.constant dense<0.000000e+00> : vector<4x32x8xf32>
    %46 = tpu.matmul %43, %34, %cst_21 {dimension_numbers = #tpu.dot_dimension_numbers<[2], [1], [1], [2], [0, 0, 0, 1, 1, 2], [0], [0]>} : vector<4x32x32xf32>, vector<4x32x8xf32>, vector<4x32x8xf32> -> vector<4x32x8xf32>
    "tpu.trace_stop"() : () -> ()
    %47 = vector.broadcast %45 : vector<4x32x1xf32> to vector<4x32x8xf32>
    %48 = arith.divf %46, %47 : vector<4x32x8xf32>
    %49 = vector.shape_cast %48 : vector<4x32x8xf32> to vector<128x8xf32>
    %50 = vector.extract_strided_slice %30 {offsets = [0, 0], sizes = [8, 32], strides = [1, 1]} : vector<32x32xf32> to vector<8x32xf32>
    %cst_22 = arith.constant dense<0.000000e+00> : vector<128x32xf32>
    %51 = tpu.matmul %49, %50, %cst_22 {dimension_numbers = #tpu.dot_dimension_numbers<[1], [0], [0], [1], [0, 0, 1, 1], [], []>} : vector<128x8xf32>, vector<8x32xf32>, vector<128x32xf32> -> vector<128x32xf32>
    %52 = arith.addf %31, %51 : vector<128x32xf32>
    %53 = vector.extract_strided_slice %28 {offsets = [0, 0, 8], sizes = [4, 32, 8], strides = [1, 1, 1]} : vector<4x32x96xf32> to vector<4x32x8xf32>
    %54 = vector.extract_strided_slice %28 {offsets = [0, 0, 40], sizes = [4, 32, 8], strides = [1, 1, 1]} : vector<4x32x96xf32> to vector<4x32x8xf32>
    %55 = vector.extract_strided_slice %28 {offsets = [0, 0, 72], sizes = [4, 32, 8], strides = [1, 1, 1]} : vector<4x32x96xf32> to vector<4x32x8xf32>
    "tpu.trace_start"() <{level = 10 : i32, message = "btd,bsd->bts"}> : () -> ()
    %cst_23 = arith.constant dense<0.000000e+00> : vector<4x32x32xf32>
    %56 = tpu.matmul %53, %54, %cst_23 {dimension_numbers = #tpu.dot_dimension_numbers<[2], [2], [1], [1], [0, 0, 0, 1, 1, 1], [0], [0]>} : vector<4x32x8xf32>, vector<4x32x8xf32>, vector<4x32x32xf32> -> vector<4x32x32xf32>
    "tpu.trace_stop"() : () -> ()
    %57 = vector.shape_cast %29 : vector<32x32xf32> to vector<1x32x32xf32>
    %58 = vector.broadcast %57 : vector<1x32x32xf32> to vector<4x32x32xf32>
    %59 = arith.addf %56, %58 : vector<4x32x32xf32>
    %cst_24 = arith.constant dense<0xFF800000> : vector<4x32xf32>
    %60 = vector.multi_reduction <maximumf>, %59, %cst_24 [2] : vector<4x32x32xf32> to vector<4x32xf32>
    %61 = vector.shape_cast %60 : vector<4x32xf32> to vector<4x32x1xf32>
    %62 = vector.broadcast %61 : vector<4x32x1xf32> to vector<4x32x32xf32>
    %63 = arith.subf %59, %62 : vector<4x32x32xf32>
    %64 = math.exp %63 : vector<4x32x32xf32>
    %cst_25 = arith.constant dense<0.000000e+00> : vector<4x32xf32>
    %65 = vector.multi_reduction <add>, %64, %cst_25 [2] : vector<4x32x32xf32> to vector<4x32xf32>
    %66 = vector.shape_cast %65 : vector<4x32xf32> to vector<4x32x1xf32>
    "tpu.trace_start"() <{level = 10 : i32, message = "bts,bsd->btd"}> : () -> ()
    %cst_26 = arith.constant dense<0.000000e+00> : vector<4x32x8xf32>
    %67 = tpu.matmul %64, %55, %cst_26 {dimension_numbers = #tpu.dot_dimension_numbers<[2], [1], [1], [2], [0, 0, 0, 1, 1, 2], [0], [0]>} : vector<4x32x32xf32>, vector<4x32x8xf32>, vector<4x32x8xf32> -> vector<4x32x8xf32>
    "tpu.trace_stop"() : () -> ()
    %68 = vector.broadcast %66 : vector<4x32x1xf32> to vector<4x32x8xf32>
    %69 = arith.divf %67, %68 : vector<4x32x8xf32>
    %70 = vector.shape_cast %69 : vector<4x32x8xf32> to vector<128x8xf32>
    %71 = vector.extract_strided_slice %30 {offsets = [8, 0], sizes = [8, 32], strides = [1, 1]} : vector<32x32xf32> to vector<8x32xf32>
    %cst_27 = arith.constant dense<0.000000e+00> : vector<128x32xf32>
    %72 = tpu.matmul %70, %71, %cst_27 {dimension_numbers = #tpu.dot_dimension_numbers<[1], [0], [0], [1], [0, 0, 1, 1], [], []>} : vector<128x8xf32>, vector<8x32xf32>, vector<128x32xf32> -> vector<128x32xf32>
    %73 = arith.addf %52, %72 : vector<128x32xf32>
    %74 = vector.extract_strided_slice %28 {offsets = [0, 0, 16], sizes = [4, 32, 8], strides = [1, 1, 1]} : vector<4x32x96xf32> to vector<4x32x8xf32>
    %75 = vector.extract_strided_slice %28 {offsets = [0, 0, 48], sizes = [4, 32, 8], strides = [1, 1, 1]} : vector<4x32x96xf32> to vector<4x32x8xf32>
    %76 = vector.extract_strided_slice %28 {offsets = [0, 0, 80], sizes = [4, 32, 8], strides = [1, 1, 1]} : vector<4x32x96xf32> to vector<4x32x8xf32>
    "tpu.trace_start"() <{level = 10 : i32, message = "btd,bsd->bts"}> : () -> ()
    %cst_28 = arith.constant dense<0.000000e+00> : vector<4x32x32xf32>
    %77 = tpu.matmul %74, %75, %cst_28 {dimension_numbers = #tpu.dot_dimension_numbers<[2], [2], [1], [1], [0, 0, 0, 1, 1, 1], [0], [0]>} : vector<4x32x8xf32>, vector<4x32x8xf32>, vector<4x32x32xf32> -> vector<4x32x32xf32>
    "tpu.trace_stop"() : () -> ()
    %78 = vector.shape_cast %29 : vector<32x32xf32> to vector<1x32x32xf32>
    %79 = vector.broadcast %78 : vector<1x32x32xf32> to vector<4x32x32xf32>
    %80 = arith.addf %77, %79 : vector<4x32x32xf32>
    %cst_29 = arith.constant dense<0xFF800000> : vector<4x32xf32>
    %81 = vector.multi_reduction <maximumf>, %80, %cst_29 [2] : vector<4x32x32xf32> to vector<4x32xf32>
    %82 = vector.shape_cast %81 : vector<4x32xf32> to vector<4x32x1xf32>
    %83 = vector.broadcast %82 : vector<4x32x1xf32> to vector<4x32x32xf32>
    %84 = arith.subf %80, %83 : vector<4x32x32xf32>
    %85 = math.exp %84 : vector<4x32x32xf32>
    %cst_30 = arith.constant dense<0.000000e+00> : vector<4x32xf32>
    %86 = vector.multi_reduction <add>, %85, %cst_30 [2] : vector<4x32x32xf32> to vector<4x32xf32>
    %87 = vector.shape_cast %86 : vector<4x32xf32> to vector<4x32x1xf32>
    "tpu.trace_start"() <{level = 10 : i32, message = "bts,bsd->btd"}> : () -> ()
    %cst_31 = arith.constant dense<0.000000e+00> : vector<4x32x8xf32>
    %88 = tpu.matmul %85, %76, %cst_31 {dimension_numbers = #tpu.dot_dimension_numbers<[2], [1], [1], [2], [0, 0, 0, 1, 1, 2], [0], [0]>} : vector<4x32x32xf32>, vector<4x32x8xf32>, vector<4x32x8xf32> -> vector<4x32x8xf32>
    "tpu.trace_stop"() : () -> ()
    %89 = vector.broadcast %87 : vector<4x32x1xf32> to vector<4x32x8xf32>
    %90 = arith.divf %88, %89 : vector<4x32x8xf32>
    %91 = vector.shape_cast %90 : vector<4x32x8xf32> to vector<128x8xf32>
    %92 = vector.extract_strided_slice %30 {offsets = [16, 0], sizes = [8, 32], strides = [1, 1]} : vector<32x32xf32> to vector<8x32xf32>
    %cst_32 = arith.constant dense<0.000000e+00> : vector<128x32xf32>
    %93 = tpu.matmul %91, %92, %cst_32 {dimension_numbers = #tpu.dot_dimension_numbers<[1], [0], [0], [1], [0, 0, 1, 1], [], []>} : vector<128x8xf32>, vector<8x32xf32>, vector<128x32xf32> -> vector<128x32xf32>
    %94 = arith.addf %73, %93 : vector<128x32xf32>
    %95 = vector.extract_strided_slice %28 {offsets = [0, 0, 24], sizes = [4, 32, 8], strides = [1, 1, 1]} : vector<4x32x96xf32> to vector<4x32x8xf32>
    %96 = vector.extract_strided_slice %28 {offsets = [0, 0, 56], sizes = [4, 32, 8], strides = [1, 1, 1]} : vector<4x32x96xf32> to vector<4x32x8xf32>
    %97 = vector.extract_strided_slice %28 {offsets = [0, 0, 88], sizes = [4, 32, 8], strides = [1, 1, 1]} : vector<4x32x96xf32> to vector<4x32x8xf32>
    "tpu.trace_start"() <{level = 10 : i32, message = "btd,bsd->bts"}> : () -> ()
    %cst_33 = arith.constant dense<0.000000e+00> : vector<4x32x32xf32>
    %98 = tpu.matmul %95, %96, %cst_33 {dimension_numbers = #tpu.dot_dimension_numbers<[2], [2], [1], [1], [0, 0, 0, 1, 1, 1], [0], [0]>} : vector<4x32x8xf32>, vector<4x32x8xf32>, vector<4x32x32xf32> -> vector<4x32x32xf32>
    "tpu.trace_stop"() : () -> ()
    %99 = vector.shape_cast %29 : vector<32x32xf32> to vector<1x32x32xf32>
    %100 = vector.broadcast %99 : vector<1x32x32xf32> to vector<4x32x32xf32>
    %101 = arith.addf %98, %100 : vector<4x32x32xf32>
    %cst_34 = arith.constant dense<0xFF800000> : vector<4x32xf32>
    %102 = vector.multi_reduction <maximumf>, %101, %cst_34 [2] : vector<4x32x32xf32> to vector<4x32xf32>
    %103 = vector.shape_cast %102 : vector<4x32xf32> to vector<4x32x1xf32>
    %104 = vector.broadcast %103 : vector<4x32x1xf32> to vector<4x32x32xf32>
    %105 = arith.subf %101, %104 : vector<4x32x32xf32>
    %106 = math.exp %105 : vector<4x32x32xf32>
    %cst_35 = arith.constant dense<0.000000e+00> : vector<4x32xf32>
    %107 = vector.multi_reduction <add>, %106, %cst_35 [2] : vector<4x32x32xf32> to vector<4x32xf32>
    %108 = vector.shape_cast %107 : vector<4x32xf32> to vector<4x32x1xf32>
    "tpu.trace_start"() <{level = 10 : i32, message = "bts,bsd->btd"}> : () -> ()
    %cst_36 = arith.constant dense<0.000000e+00> : vector<4x32x8xf32>
    %109 = tpu.matmul %106, %97, %cst_36 {dimension_numbers = #tpu.dot_dimension_numbers<[2], [1], [1], [2], [0, 0, 0, 1, 1, 2], [0], [0]>} : vector<4x32x32xf32>, vector<4x32x8xf32>, vector<4x32x8xf32> -> vector<4x32x8xf32>
    "tpu.trace_stop"() : () -> ()
    %110 = vector.broadcast %108 : vector<4x32x1xf32> to vector<4x32x8xf32>
    %111 = arith.divf %109, %110 : vector<4x32x8xf32>
    %112 = vector.shape_cast %111 : vector<4x32x8xf32> to vector<128x8xf32>
    %113 = vector.extract_strided_slice %30 {offsets = [24, 0], sizes = [8, 32], strides = [1, 1]} : vector<32x32xf32> to vector<8x32xf32>
    %cst_37 = arith.constant dense<0.000000e+00> : vector<128x32xf32>
    %114 = tpu.matmul %112, %113, %cst_37 {dimension_numbers = #tpu.dot_dimension_numbers<[1], [0], [0], [1], [0, 0, 1, 1], [], []>} : vector<128x8xf32>, vector<8x32xf32>, vector<128x32xf32> -> vector<128x32xf32>
    %115 = arith.addf %94, %114 : vector<128x32xf32>
    %116 = arith.addf %1, %115 : vector<128x32xf32>
    %c0_38 = arith.constant 0 : index
    %c0_39 = arith.constant 0 : index
    %117 = vector.load %arg7[%c0_38, %c0_39] : memref<1x32xf32, #tpu.memory_space<vmem>>, vector<1x32xf32>
    %118 = vector.broadcast %117 : vector<1x32xf32> to vector<128x32xf32>
    %119 = arith.addf %116, %118 : vector<128x32xf32>
    %c0_40 = arith.constant 0 : index
    %c0_41 = arith.constant 0 : index
    %120 = vector.load %arg8[%c0_40, %c0_41] : memref<1x32xf32, #tpu.memory_space<vmem>>, vector<1x32xf32>
    %c0_42 = arith.constant 0 : index
    %c0_43 = arith.constant 0 : index
    %121 = vector.load %arg9[%c0_42, %c0_43] : memref<1x32xf32, #tpu.memory_space<vmem>>, vector<1x32xf32>
    %cst_44 = arith.constant dense<0.000000e+00> : vector<128xf32>
    %122 = vector.multi_reduction <add>, %119, %cst_44 [1] : vector<128x32xf32> to vector<128xf32>
    %123 = vector.shape_cast %122 : vector<128xf32> to vector<128x1xf32>
    %cst_45 = arith.constant 3.200000e+01 : f32
    %124 = vector.broadcast %cst_45 : f32 to vector<128x1xf32>
    %125 = arith.divf %123, %124 : vector<128x1xf32>
    %126 = vector.broadcast %125 : vector<128x1xf32> to vector<128x32xf32>
    %127 = arith.subf %119, %126 : vector<128x32xf32>
    %128 = arith.mulf %127, %127 : vector<128x32xf32>
    %cst_46 = arith.constant dense<0.000000e+00> : vector<128xf32>
    %129 = vector.multi_reduction <add>, %128, %cst_46 [1] : vector<128x32xf32> to vector<128xf32>
    %130 = vector.shape_cast %129 : vector<128xf32> to vector<128x1xf32>
    %cst_47 = arith.constant 3.200000e+01 : f32
    %131 = vector.broadcast %cst_47 : f32 to vector<128x1xf32>
    %132 = arith.divf %130, %131 : vector<128x1xf32>
    %133 = vector.broadcast %125 : vector<128x1xf32> to vector<128x32xf32>
    %134 = arith.subf %119, %133 : vector<128x32xf32>
    %cst_48 = arith.constant 9.99999974E-6 : f32
    %135 = vector.broadcast %cst_48 : f32 to vector<128x1xf32>
    %136 = arith.addf %132, %135 : vector<128x1xf32>
    %137 = math.rsqrt %136 : vector<128x1xf32>
    %138 = vector.broadcast %137 : vector<128x1xf32> to vector<128x32xf32>
    %139 = arith.mulf %134, %138 : vector<128x32xf32>
    %140 = vector.broadcast %120 : vector<1x32xf32> to vector<128x32xf32>
    %141 = arith.mulf %139, %140 : vector<128x32xf32>
    %142 = vector.broadcast %121 : vector<1x32xf32> to vector<128x32xf32>
    %143 = arith.addf %141, %142 : vector<128x32xf32>
    %c0_49 = arith.constant 0 : index
    %c0_50 = arith.constant 0 : index
    %144 = vector.load %arg10[%c0_49, %c0_50] : memref<32x128xf32, #tpu.memory_space<vmem>>, vector<32x128xf32>
    %cst_51 = arith.constant dense<0.000000e+00> : vector<128x128xf32>
    %145 = tpu.matmul %143, %144, %cst_51 {dimension_numbers = #tpu.dot_dimension_numbers<[1], [0], [0], [1], [0, 0, 1, 1], [], []>} : vector<128x32xf32>, vector<32x128xf32>, vector<128x128xf32> -> vector<128x128xf32>
    %c0_52 = arith.constant 0 : index
    %c0_53 = arith.constant 0 : index
    %146 = vector.load %arg11[%c0_52, %c0_53] : memref<1x128xf32, #tpu.memory_space<vmem>>, vector<1x128xf32>
    %147 = vector.broadcast %146 : vector<1x128xf32> to vector<128x128xf32>
    %148 = arith.addf %145, %147 : vector<128x128xf32>
    %cst_54 = arith.constant 0.000000e+00 : f32
    %149 = vector.broadcast %cst_54 : f32 to vector<128x128xf32>
    %150 = arith.maximumf %148, %149 : vector<128x128xf32>
    %c0_55 = arith.constant 0 : index
    %c0_56 = arith.constant 0 : index
    %151 = vector.load %arg12[%c0_55, %c0_56] : memref<128x32xf32, #tpu.memory_space<vmem>>, vector<128x32xf32>
    %cst_57 = arith.constant dense<0.000000e+00> : vector<128x32xf32>
    %152 = tpu.matmul %150, %151, %cst_57 {dimension_numbers = #tpu.dot_dimension_numbers<[1], [0], [0], [1], [0, 0, 1, 1], [], []>} : vector<128x128xf32>, vector<128x32xf32>, vector<128x32xf32> -> vector<128x32xf32>
    %c0_58 = arith.constant 0 : index
    %c0_59 = arith.constant 0 : index
    %153 = vector.load %arg13[%c0_58, %c0_59] : memref<1x32xf32, #tpu.memory_space<vmem>>, vector<1x32xf32>
    %154 = vector.broadcast %153 : vector<1x32xf32> to vector<128x32xf32>
    %155 = arith.addf %152, %154 : vector<128x32xf32>
    %156 = arith.addf %119, %155 : vector<128x32xf32>
    %157 = vector.shape_cast %156 : vector<128x32xf32> to vector<4x32x32xf32>
    %c0_60 = arith.constant 0 : index
    %c0_61 = arith.constant 0 : index
    %c0_62 = arith.constant 0 : index
    %158 = vector.load %arg14[%c0_60, %c0_61, %c0_62] : memref<4x32x32xf32, #tpu.memory_space<vmem>>, vector<4x32x32xf32>
    tpu.vector_store %arg14[%c0_60, %c0_61, %c0_62], %157 {strides = array<i32>} : memref<4x32x32xf32, #tpu.memory_space<vmem>>, vector<4x32x32xf32>,
    return
  }
  func.func @transform_0(%arg0: i32) -> (i32, i32, i32) {
    %c0_i32 = arith.constant 0 : i32
    %c0_i32_0 = arith.constant 0 : i32
    %c0_i32_1 = arith.constant 0 : i32
    return %arg0, %c0_i32, %c0_i32_0 : i32, i32, i32
  }
  func.func @transform_1(%arg0: i32) -> (i32, i32) {
    %c0_i32 = arith.constant 0 : i32
    %c0_i32_0 = arith.constant 0 : i32
    %c0_i32_1 = arith.constant 0 : i32
    return %c0_i32, %c0_i32_0 : i32, i32
  }
  func.func @transform_2(%arg0: i32) -> (i32, i32) {
    %c0_i32 = arith.constant 0 : i32
    %c0_i32_0 = arith.constant 0 : i32
    %c0_i32_1 = arith.constant 0 : i32
    return %c0_i32, %c0_i32_0 : i32, i32
  }
  func.func @transform_3(%arg0: i32) -> (i32, i32) {
    %c0_i32 = arith.constant 0 : i32
    %c0_i32_0 = arith.constant 0 : i32
    %c0_i32_1 = arith.constant 0 : i32
    return %c0_i32, %c0_i32_0 : i32, i32
  }
  func.func @transform_4(%arg0: i32) -> (i32, i32) {
    %c0_i32 = arith.constant 0 : i32
    %c0_i32_0 = arith.constant 0 : i32
    %c0_i32_1 = arith.constant 0 : i32
    return %c0_i32, %c0_i32_0 : i32, i32
  }
  func.func @transform_5(%arg0: i32) -> (i32, i32) {
    %c0_i32 = arith.constant 0 : i32
    %c0_i32_0 = arith.constant 0 : i32
    %c0_i32_1 = arith.constant 0 : i32
    return %c0_i32, %c0_i32_0 : i32, i32
  }
  func.func @transform_6(%arg0: i32) -> (i32, i32) {
    %c0_i32 = arith.constant 0 : i32
    %c0_i32_0 = arith.constant 0 : i32
    %c0_i32_1 = arith.constant 0 : i32
    return %c0_i32, %c0_i32_0 : i32, i32
  }
  func.func @transform_7(%arg0: i32) -> (i32, i32) {
    %c0_i32 = arith.constant 0 : i32
    %c0_i32_0 = arith.constant 0 : i32
    %c0_i32_1 = arith.constant 0 : i32
    return %c0_i32, %c0_i32_0 : i32, i32
  }
  func.func @transform_8(%arg0: i32) -> (i32, i32) {
    %c0_i32 = arith.constant 0 : i32
    %c0_i32_0 = arith.constant 0 : i32
    %c0_i32_1 = arith.constant 0 : i32
    return %c0_i32, %c0_i32_0 : i32, i32
  }
  func.func @transform_9(%arg0: i32) -> (i32, i32) {
    %c0_i32 = arith.constant 0 : i32
    %c0_i32_0 = arith.constant 0 : i32
    %c0_i32_1 = arith.constant 0 : i32
    return %c0_i32, %c0_i32_0 : i32, i32
  }
  func.func @transform_10(%arg0: i32) -> (i32, i32) {
    %c0_i32 = arith.constant 0 : i32
    %c0_i32_0 = arith.constant 0 : i32
    %c0_i32_1 = arith.constant 0 : i32
    return %c0_i32, %c0_i32_0 : i32, i32
  }
  func.func @transform_11(%arg0: i32) -> (i32, i32) {
    %c0_i32 = arith.constant 0 : i32
    %c0_i32_0 = arith.constant 0 : i32
    %c0_i32_1 = arith.constant 0 : i32
    return %c0_i32, %c0_i32_0 : i32, i32
  }
  func.func @transform_12(%arg0: i32) -> (i32, i32) {
    %c0_i32 = arith.constant 0 : i32
    %c0_i32_0 = arith.constant 0 : i32
    %c0_i32_1 = arith.constant 0 : i32
    return %c0_i32, %c0_i32_0 : i32, i32
  }
  func.func @transform_13(%arg0: i32) -> (i32, i32, i32) {
    %c0_i32 = arith.constant 0 : i32
    %c0_i32_0 = arith.constant 0 : i32
    %c0_i32_1 = arith.constant 0 : i32
    return %arg0, %c0_i32, %c0_i32_0 : i32, i32, i32
  }
}

</mosaic_0001>

<llo_original>
// kernel: tpu_custom_call.1
$region0: #{tpu_custom_call.1}
  #allocation0 [shape = 'u32[]', space=smem, size = 0x4, offset = 0x4, fixed_abs, tag = 'smem constant byte address 0x4 - core index']
  #allocation1 [shape = 'u32[72,128]{1,0:T(1,128)}', space=vmem, size = 0x9000, scoped, tag = 'internal scratch']
  %s0 = inlined_call_operand.hbm [shape: f32[8,32,32], index: 0, kind: input, shape index: {}]
  %s1 = inlined_call_operand.vmem [shape: f32[32,32], index: 1, kind: input, shape index: {}]
  %s2 = inlined_call_operand.vmem [shape: f32[1,32], index: 2, kind: input, shape index: {}]
  %s3 = inlined_call_operand.vmem [shape: f32[1,32], index: 3, kind: input, shape index: {}]
  %s4 = inlined_call_operand.vmem [shape: f32[32,96], index: 4, kind: input, shape index: {}]
  %s5 = inlined_call_operand.vmem [shape: f32[32,32], index: 5, kind: input, shape index: {}]
  %s6 = inlined_call_operand.vmem [shape: f32[1,32], index: 6, kind: input, shape index: {}]
  %s7 = inlined_call_operand.vmem [shape: f32[1,32], index: 7, kind: input, shape index: {}]
  %s8 = inlined_call_operand.vmem [shape: f32[1,32], index: 8, kind: input, shape index: {}]
  %s9 = inlined_call_operand.vmem [shape: f32[32,128], index: 9, kind: input, shape index: {}]
  %s10 = inlined_call_operand.vmem [shape: f32[1,128], index: 10, kind: input, shape index: {}]
  %s11 = inlined_call_operand.vmem [shape: f32[128,32], index: 11, kind: input, shape index: {}]
  %s12 = inlined_call_operand.vmem [shape: f32[1,32], index: 12, kind: input, shape index: {}]
  %s13 = inlined_call_operand.hbm [shape: f32[8,32,32], index: 13, kind: output, shape index: {}]
  %s14 = sld [smem:[#allocation0]]
  $region89: #{tpu_custom_call.1} parent=0
    _
  %s16 = ssub.s32 1, %s14
  %s17 = scalar_select 0, %s16, %s14
  $region1: #{tpu_custom_call.1} parent=0
    #allocation2 [shape = 'u8[131072]{0}', space=vmem, size = 0x20000, scoped, tag = 'input window, operand 0']
    #allocation3 [shape = 's32[2]{0}', space=sflag, size = 0x8, scoped, tag = 'scoped memory for tpu_custom_call.1']
    #allocation4 [shape = 's32[2]{0}', space=sflag, size = 0x8, scoped, tag = 'scoped memory for tpu_custom_call.1']
    #allocation5 [shape = 'u8[131072]{0}', space=vmem, size = 0x20000, scoped, tag = 'output window, operand 0']
    %18 = vsyncpa [#allocation3], 0
    %s19 = scalar_lea.sflag [#allocation3], 1
    %20 = vsyncpa %s19, 0
    %21 = vsyncpa [#allocation4], 0
    %s22 = scalar_lea.sflag [#allocation4], 1
    %23 = vsyncpa %s22, 0
    loop: start=0, step=1, limit=4
    $region2: #{tpu_custom_call.1} parent=1 // loop_pre_header
      _
    $region3: #{tpu_custom_call.1} parent=1 // loop_header
      %s25 = sphi 0, %s29
      %p26 = scmp.ge.s32.totalorder %s25, 4
      %s35 = sphi 0, %s37
      %s38 = sphi 0, %s35
      %s39 = sphi 0, %s38
      %s55 = sphi 0, %s39
      %s59 = sphi 0, %s59
      %s61 = sphi 0, %s59
      %s62 = sphi 0, %s61
      %s76 = sphi 0, %s62
      %s80 = sphi 0, %s80
      %s82 = sphi 0, %s80
      %s83 = sphi 0, %s82
      %s97 = sphi 0, %s83
      %s101 = sphi 0, %s101
      %s103 = sphi 0, %s101
      %s104 = sphi 0, %s103
      %s118 = sphi 0, %s104
      %s122 = sphi 0, %s122
      %s124 = sphi 0, %s122
      %s125 = sphi 0, %s124
      %s139 = sphi 0, %s125
      %s143 = sphi 0, %s143
      %s145 = sphi 0, %s143
      %s146 = sphi 0, %s145
      %s160 = sphi 0, %s146
      %s164 = sphi 0, %s164
      %s166 = sphi 0, %s164
      %s167 = sphi 0, %s166
      %s181 = sphi 0, %s167
      %s185 = sphi 0, %s185
      %s187 = sphi 0, %s185
      %s188 = sphi 0, %s187
      %s202 = sphi 0, %s188
      %s206 = sphi 0, %s206
      %s208 = sphi 0, %s206
      %s209 = sphi 0, %s208
      %s223 = sphi 0, %s209
      %s227 = sphi 0, %s227
      %s229 = sphi 0, %s227
      %s230 = sphi 0, %s229
      %s244 = sphi 0, %s230
      %s248 = sphi 0, %s248
      %s250 = sphi 0, %s248
      %s251 = sphi 0, %s250
      %s265 = sphi 0, %s251
      %s269 = sphi 0, %s269
      %s271 = sphi 0, %s269
      %s272 = sphi 0, %s271
      %s286 = sphi 0, %s272
      %s290 = sphi 0, %s290
      %s292 = sphi 0, %s290
      %s293 = sphi 0, %s292
      %s307 = sphi 0, %s293
      %s313 = sphi 0, %s315
      %s316 = sphi 0, %s313
      %s317 = sphi 0, %s316
      %s333 = sphi 0, %s317
    $region4: #{tpu_custom_call.1} parent=1 // loop_header_branch
      %28 = sbr.rel (%p26) target = $region8
    $region5: #{tpu_custom_call.1} parent=1 // loop_body
      %s30 = ssub.s32 %s25, 1
      %s31 = ssub.s32 %s25, 2
      %s32 = sadd.s32 %s25, 1
      %s33 = ssub.s32 %s25, %s32
      %p34 = scmp.eq.s32.totalorder %s33, 0
      %s36 = sadd.s32 %s35, 1
      %s37 = scalar_select %p34, %s35, %s36
      %p40 = pneg %p34
      %p41 = scmp.eq.s32.totalorder %s25, 1
      %p42 = por %p40, %p41
      %p43 = scmp.ne.s32.totalorder %s35, %s38
      %p44 = scmp.eq.s32.totalorder %s25, 0
      %p45 = por %p43, %p44
      %p46 = scmp.ne.s32.totalorder %s35, %s38
      %p47 = scmp.eq.s32.totalorder %s30, 1
      %p48 = por %p46, %p47
      %p49 = scmp.ne.s32.totalorder %s38, %s39
      %p50 = scmp.eq.s32.totalorder %s30, 0
      %p51 = por %p49, %p50
      %p52 = scmp.ne.s32.totalorder %s38, %s39
      %p53 = scmp.eq.s32.totalorder %s31, 1
      %p54 = por %p52, %p53
      %p56 = scmp.ne.s32.totalorder %s39, %s55
      %p57 = scmp.eq.s32.totalorder %s31, 0
      %p58 = por %p56, %p57
      %s60 = sadd.s32 %s59, 1
      %p63 = scmp.eq.s32.totalorder %s25, 1
      %p64 = scmp.ne.s32.totalorder %s59, %s61
      %p65 = scmp.eq.s32.totalorder %s25, 0
      %p66 = por %p64, %p65
      %p67 = scmp.ne.s32.totalorder %s59, %s61
      %p68 = scmp.eq.s32.totalorder %s30, 1
      %p69 = por %p67, %p68
      %p70 = scmp.ne.s32.totalorder %s61, %s62
      %p71 = scmp.eq.s32.totalorder %s30, 0
      %p72 = por %p70, %p71
      %p73 = scmp.ne.s32.totalorder %s61, %s62
      %p74 = scmp.eq.s32.totalorder %s31, 1
      %p75 = por %p73, %p74
      %p77 = scmp.ne.s32.totalorder %s62, %s76
      %p78 = scmp.eq.s32.totalorder %s31, 0
      %p79 = por %p77, %p78
      %s81 = sadd.s32 %s80, 1
      %p84 = scmp.eq.s32.totalorder %s25, 1
      %p85 = scmp.ne.s32.totalorder %s80, %s82
      %p86 = scmp.eq.s32.totalorder %s25, 0
      %p87 = por %p85, %p86
      %p88 = scmp.ne.s32.totalorder %s80, %s82
      %p89 = scmp.eq.s32.totalorder %s30, 1
      %p90 = por %p88, %p89
      %p91 = scmp.ne.s32.totalorder %s82, %s83
      %p92 = scmp.eq.s32.totalorder %s30, 0
      %p93 = por %p91, %p92
      %p94 = scmp.ne.s32.totalorder %s82, %s83
      %p95 = scmp.eq.s32.totalorder %s31, 1
      %p96 = por %p94, %p95
      %p98 = scmp.ne.s32.totalorder %s83, %s97
      %p99 = scmp.eq.s32.totalorder %s31, 0
      %p100 = por %p98, %p99
      %s102 = sadd.s32 %s101, 1
      %p105 = scmp.eq.s32.totalorder %s25, 1
      %p106 = scmp.ne.s32.totalorder %s101, %s103
      %p107 = scmp.eq.s32.totalorder %s25, 0
      %p108 = por %p106, %p107
      %p109 = scmp.ne.s32.totalorder %s101, %s103
      %p110 = scmp.eq.s32.totalorder %s30, 1
      %p111 = por %p109, %p110
      %p112 = scmp.ne.s32.totalorder %s103, %s104
      %p113 = scmp.eq.s32.totalorder %s30, 0
      %p114 = por %p112, %p113
      %p115 = scmp.ne.s32.totalorder %s103, %s104
      %p116 = scmp.eq.s32.totalorder %s31, 1
      %p117 = por %p115, %p116
      %p119 = scmp.ne.s32.totalorder %s104, %s118
      %p120 = scmp.eq.s32.totalorder %s31, 0
      %p121 = por %p119, %p120
      %s123 = sadd.s32 %s122, 1
      %p126 = scmp.eq.s32.totalorder %s25, 1
      %p127 = scmp.ne.s32.totalorder %s122, %s124
      %p128 = scmp.eq.s32.totalorder %s25, 0
      %p129 = por %p127, %p128
      %p130 = scmp.ne.s32.totalorder %s122, %s124
      %p131 = scmp.eq.s32.totalorder %s30, 1
      %p132 = por %p130, %p131
      %p133 = scmp.ne.s32.totalorder %s124, %s125
      %p134 = scmp.eq.s32.totalorder %s30, 0
      %p135 = por %p133, %p134
      %p136 = scmp.ne.s32.totalorder %s124, %s125
      %p137 = scmp.eq.s32.totalorder %s31, 1
      %p138 = por %p136, %p137
      %p140 = scmp.ne.s32.totalorder %s125, %s139
      %p141 = scmp.eq.s32.totalorder %s31, 0
      %p142 = por %p140, %p141
      %s144 = sadd.s32 %s143, 1
      %p147 = scmp.eq.s32.totalorder %s25, 1
      %p148 = scmp.ne.s32.totalorder %s143, %s145
      %p149 = scmp.eq.s32.totalorder %s25, 0
      %p150 = por %p148, %p149
      %p151 = scmp.ne.s32.totalorder %s143, %s145
      %p152 = scmp.eq.s32.totalorder %s30, 1
      %p153 = por %p151, %p152
      %p154 = scmp.ne.s32.totalorder %s145, %s146
      %p155 = scmp.eq.s32.totalorder %s30, 0
      %p156 = por %p154, %p155
      %p157 = scmp.ne.s32.totalorder %s145, %s146
      %p158 = scmp.eq.s32.totalorder %s31, 1
      %p159 = por %p157, %p158
      %p161 = scmp.ne.s32.totalorder %s146, %s160
      %p162 = scmp.eq.s32.totalorder %s31, 0
      %p163 = por %p161, %p162
      %s165 = sadd.s32 %s164, 1
      %p168 = scmp.eq.s32.totalorder %s25, 1
      %p169 = scmp.ne.s32.totalorder %s164, %s166
      %p170 = scmp.eq.s32.totalorder %s25, 0
      %p171 = por %p169, %p170
      %p172 = scmp.ne.s32.totalorder %s164, %s166
      %p173 = scmp.eq.s32.totalorder %s30, 1
      %p174 = por %p172, %p173
      %p175 = scmp.ne.s32.totalorder %s166, %s167
      %p176 = scmp.eq.s32.totalorder %s30, 0
      %p177 = por %p175, %p176
      %p178 = scmp.ne.s32.totalorder %s166, %s167
      %p179 = scmp.eq.s32.totalorder %s31, 1
      %p180 = por %p178, %p179
      %p182 = scmp.ne.s32.totalorder %s167, %s181
      %p183 = scmp.eq.s32.totalorder %s31, 0
      %p184 = por %p182, %p183
      %s186 = sadd.s32 %s185, 1
      %p189 = scmp.eq.s32.totalorder %s25, 1
      %p190 = scmp.ne.s32.totalorder %s185, %s187
      %p191 = scmp.eq.s32.totalorder %s25, 0
      %p192 = por %p190, %p191
      %p193 = scmp.ne.s32.totalorder %s185, %s187
      %p194 = scmp.eq.s32.totalorder %s30, 1
      %p195 = por %p193, %p194
      %p196 = scmp.ne.s32.totalorder %s187, %s188
      %p197 = scmp.eq.s32.totalorder %s30, 0
      %p198 = por %p196, %p197
      %p199 = scmp.ne.s32.totalorder %s187, %s188
      %p200 = scmp.eq.s32.totalorder %s31, 1
      %p201 = por %p199, %p200
      %p203 = scmp.ne.s32.totalorder %s188, %s202
      %p204 = scmp.eq.s32.totalorder %s31, 0
      %p205 = por %p203, %p204
      %s207 = sadd.s32 %s206, 1
      %p210 = scmp.eq.s32.totalorder %s25, 1
      %p211 = scmp.ne.s32.totalorder %s206, %s208
      %p212 = scmp.eq.s32.totalorder %s25, 0
      %p213 = por %p211, %p212
      %p214 = scmp.ne.s32.totalorder %s206, %s208
      %p215 = scmp.eq.s32.totalorder %s30, 1
      %p216 = por %p214, %p215
      %p217 = scmp.ne.s32.totalorder %s208, %s209
      %p218 = scmp.eq.s32.totalorder %s30, 0
      %p219 = por %p217, %p218
      %p220 = scmp.ne.s32.totalorder %s208, %s209
      %p221 = scmp.eq.s32.totalorder %s31, 1
      %p222 = por %p220, %p221
      %p224 = scmp.ne.s32.totalorder %s209, %s223
      %p225 = scmp.eq.s32.totalorder %s31, 0
      %p226 = por %p224, %p225
      %s228 = sadd.s32 %s227, 1
      %p231 = scmp.eq.s32.totalorder %s25, 1
      %p232 = scmp.ne.s32.totalorder %s227, %s229
      %p233 = scmp.eq.s32.totalorder %s25, 0
      %p234 = por %p232, %p233
      %p235 = scmp.ne.s32.totalorder %s227, %s229
      %p236 = scmp.eq.s32.totalorder %s30, 1
      %p237 = por %p235, %p236
      %p238 = scmp.ne.s32.totalorder %s229, %s230
      %p239 = scmp.eq.s32.totalorder %s30, 0
      %p240 = por %p238, %p239
      %p241 = scmp.ne.s32.totalorder %s229, %s230
      %p242 = scmp.eq.s32.totalorder %s31, 1
      %p243 = por %p241, %p242
      %p245 = scmp.ne.s32.totalorder %s230, %s244
      %p246 = scmp.eq.s32.totalorder %s31, 0
      %p247 = por %p245, %p246
      %s249 = sadd.s32 %s248, 1
      %p252 = scmp.eq.s32.totalorder %s25, 1
      %p253 = scmp.ne.s32.totalorder %s248, %s250
      %p254 = scmp.eq.s32.totalorder %s25, 0
      %p255 = por %p253, %p254
      %p256 = scmp.ne.s32.totalorder %s248, %s250
      %p257 = scmp.eq.s32.totalorder %s30, 1
      %p258 = por %p256, %p257
      %p259 = scmp.ne.s32.totalorder %s250, %s251
      %p260 = scmp.eq.s32.totalorder %s30, 0
      %p261 = por %p259, %p260
      %p262 = scmp.ne.s32.totalorder %s250, %s251
      %p263 = scmp.eq.s32.totalorder %s31, 1
      %p264 = por %p262, %p263
      %p266 = scmp.ne.s32.totalorder %s251, %s265
      %p267 = scmp.eq.s32.totalorder %s31, 0
      %p268 = por %p266, %p267
      %s270 = sadd.s32 %s269, 1
      %p273 = scmp.eq.s32.totalorder %s25, 1
      %p274 = scmp.ne.s32.totalorder %s269, %s271
      %p275 = scmp.eq.s32.totalorder %s25, 0
      %p276 = por %p274, %p275
      %p277 = scmp.ne.s32.totalorder %s269, %s271
      %p278 = scmp.eq.s32.totalorder %s30, 1
      %p279 = por %p277, %p278
      %p280 = scmp.ne.s32.totalorder %s271, %s272
      %p281 = scmp.eq.s32.totalorder %s30, 0
      %p282 = por %p280, %p281
      %p283 = scmp.ne.s32.totalorder %s271, %s272
      %p284 = scmp.eq.s32.totalorder %s31, 1
      %p285 = por %p283, %p284
      %p287 = scmp.ne.s32.totalorder %s272, %s286
      %p288 = scmp.eq.s32.totalorder %s31, 0
      %p289 = por %p287, %p288
      %s291 = sadd.s32 %s290, 1
      %p294 = scmp.eq.s32.totalorder %s25, 1
      %p295 = scmp.ne.s32.totalorder %s290, %s292
      %p296 = scmp.eq.s32.totalorder %s25, 0
      %p297 = por %p295, %p296
      %p298 = scmp.ne.s32.totalorder %s290, %s292
      %p299 = scmp.eq.s32.totalorder %s30, 1
      %p300 = por %p298, %p299
      %p301 = scmp.ne.s32.totalorder %s292, %s293
      %p302 = scmp.eq.s32.totalorder %s30, 0
      %p303 = por %p301, %p302
      %p304 = scmp.ne.s32.totalorder %s292, %s293
      %p305 = scmp.eq.s32.totalorder %s31, 1
      %p306 = por %p304, %p305
      %p308 = scmp.ne.s32.totalorder %s293, %s307
      %p309 = scmp.eq.s32.totalorder %s31, 0
      %p310 = por %p308, %p309
      %s311 = ssub.s32 %s25, %s32
      %p312 = scmp.eq.s32.totalorder %s311, 0
      %s314 = sadd.s32 %s313, 1
      %s315 = scalar_select %p312, %s313, %s314
      %p318 = pneg %p312
      %p319 = scmp.eq.s32.totalorder %s25, 1
      %p320 = por %p318, %p319
      %p321 = scmp.ne.s32.totalorder %s313, %s316
      %p322 = scmp.eq.s32.totalorder %s25, 0
      %p323 = por %p321, %p322
      %p324 = scmp.ne.s32.totalorder %s313, %s316
      %p325 = scmp.eq.s32.totalorder %s30, 1
      %p326 = por %p324, %p325
      %p327 = scmp.ne.s32.totalorder %s316, %s317
      %p328 = scmp.eq.s32.totalorder %s30, 0
      %p329 = por %p327, %p328
      %p330 = scmp.ne.s32.totalorder %s316, %s317
      %p331 = scmp.eq.s32.totalorder %s31, 1
      %p332 = por %p330, %p331
      %p334 = scmp.ne.s32.totalorder %s317, %s333
      %p335 = scmp.eq.s32.totalorder %s31, 0
      %p336 = por %p334, %p335
      %p337 = scmp.le.s32.totalorder 1, %s25
      %p338 = scmp.lt.s32.totalorder %s25, 3
      %p339 = pnand %p337, %p338
      %p340 = pneg %p339
      // Predicated region
      $region9: #{tpu_custom_call.1} parent=5 // pred_check
        _
      $region10: #{tpu_custom_call.1} parent=5 // pred_check_branch
        %342 = sbr.rel (%p339) target = $region12
      $region11: #{tpu_custom_call.1} parent=5 // pred_region
        %s343 = ssub.s32 %s25, 1
        // Predicated region
        $region13: #{tpu_custom_call.1} parent=11 // pred_check
          %p344 = pneg %p72
        $region14: #{tpu_custom_call.1} parent=11 // pred_check_branch
          %346 = sbr.rel (%p344) target = $region16
        $region15: #{tpu_custom_call.1} parent=11 // pred_region
          _
        $region16: #{tpu_custom_call.1} parent=11 // pred_fallthru
          _
        // Predicated region
        $region17: #{tpu_custom_call.1} parent=11 // pred_check
          %p347 = pneg %p93
        $region18: #{tpu_custom_call.1} parent=11 // pred_check_branch
          %349 = sbr.rel (%p347) target = $region20
        $region19: #{tpu_custom_call.1} parent=11 // pred_region
          _
        $region20: #{tpu_custom_call.1} parent=11 // pred_fallthru
          _
        // Predicated region
        $region21: #{tpu_custom_call.1} parent=11 // pred_check
          %p350 = pneg %p114
        $region22: #{tpu_custom_call.1} parent=11 // pred_check_branch
          %352 = sbr.rel (%p350) target = $region24
        $region23: #{tpu_custom_call.1} parent=11 // pred_region
          _
        $region24: #{tpu_custom_call.1} parent=11 // pred_fallthru
          _
        // Predicated region
        $region25: #{tpu_custom_call.1} parent=11 // pred_check
          %p353 = pneg %p135
        $region26: #{tpu_custom_call.1} parent=11 // pred_check_branch
          %355 = sbr.rel (%p353) target = $region28
        $region27: #{tpu_custom_call.1} parent=11 // pred_region
          _
        $region28: #{tpu_custom_call.1} parent=11 // pred_fallthru
          _
        // Predicated region
        $region29: #{tpu_custom_call.1} parent=11 // pred_check
          %p356 = pneg %p156
        $region30: #{tpu_custom_call.1} parent=11 // pred_check_branch
          %358 = sbr.rel (%p356) target = $region32
        $region31: #{tpu_custom_call.1} parent=11 // pred_region
          _
        $region32: #{tpu_custom_call.1} parent=11 // pred_fallthru
          _
        // Predicated region
        $region33: #{tpu_custom_call.1} parent=11 // pred_check
          %p359 = pneg %p177
        $region34: #{tpu_custom_call.1} parent=11 // pred_check_branch
          %361 = sbr.rel (%p359) target = $region36
        $region35: #{tpu_custom_call.1} parent=11 // pred_region
          _
        $region36: #{tpu_custom_call.1} parent=11 // pred_fallthru
          _
        // Predicated region
        $region37: #{tpu_custom_call.1} parent=11 // pred_check
          %p362 = pneg %p198
        $region38: #{tpu_custom_call.1} parent=11 // pred_check_branch
          %364 = sbr.rel (%p362) target = $region40
        $region39: #{tpu_custom_call.1} parent=11 // pred_region
          _
        $region40: #{tpu_custom_call.1} parent=11 // pred_fallthru
          _
        // Predicated region
        $region41: #{tpu_custom_call.1} parent=11 // pred_check
          %p365 = pneg %p219
        $region42: #{tpu_custom_call.1} parent=11 // pred_check_branch
          %367 = sbr.rel (%p365) target = $region44
        $region43: #{tpu_custom_call.1} parent=11 // pred_region
          _
        $region44: #{tpu_custom_call.1} parent=11 // pred_fallthru
          _
        // Predicated region
        $region45: #{tpu_custom_call.1} parent=11 // pred_check
          %p368 = pneg %p240
        $region46: #{tpu_custom_call.1} parent=11 // pred_check_branch
          %370 = sbr.rel (%p368) target = $region48
        $region47: #{tpu_custom_call.1} parent=11 // pred_region
          _
        $region48: #{tpu_custom_call.1} parent=11 // pred_fallthru
          _
        // Predicated region
        $region49: #{tpu_custom_call.1} parent=11 // pred_check
          %p371 = pneg %p261
        $region50: #{tpu_custom_call.1} parent=11 // pred_check_branch
          %373 = sbr.rel (%p371) target = $region52
        $region51: #{tpu_custom_call.1} parent=11 // pred_region
          _
        $region52: #{tpu_custom_call.1} parent=11 // pred_fallthru
          _
        // Predicated region
        $region53: #{tpu_custom_call.1} parent=11 // pred_check
          %p374 = pneg %p282
        $region54: #{tpu_custom_call.1} parent=11 // pred_check_branch
          %376 = sbr.rel (%p374) target = $region56
        $region55: #{tpu_custom_call.1} parent=11 // pred_region
          _
        $region56: #{tpu_custom_call.1} parent=11 // pred_fallthru
          _
        // Predicated region
        $region57: #{tpu_custom_call.1} parent=11 // pred_check
          %p377 = pneg %p303
        $region58: #{tpu_custom_call.1} parent=11 // pred_check_branch
          %379 = sbr.rel (%p377) target = $region60
        $region59: #{tpu_custom_call.1} parent=11 // pred_region
          _
        $region60: #{tpu_custom_call.1} parent=11 // pred_fallthru
          _
      $region12: #{tpu_custom_call.1} parent=5 // pred_fallthru
        _
      %p380 = scmp.lt.s32.totalorder %s25, 2
      // Predicated region
      $region61: #{tpu_custom_call.1} parent=5 // pred_check
        %p381 = pneg %p380
      $region62: #{tpu_custom_call.1} parent=5 // pred_check_branch
        %383 = sbr.rel (%p381) target = $region64
      $region63: #{tpu_custom_call.1} parent=5 // pred_region
        // Predicated region
        $region65: #{tpu_custom_call.1} parent=63 // pred_check
          %p384 = pneg %p45
        $region66: #{tpu_custom_call.1} parent=63 // pred_check_branch
          %386 = sbr.rel (%p384) target = $region68
        $region67: #{tpu_custom_call.1} parent=63 // pred_region
          %s387 = sand.u32 %s35, 1
          %s388 = scalar_lea.sflag [#allocation3], %s387
          %s389 = sand.u32 %s35, 1
          %s390 = smul.addr %s389, 128
          %s391 = scalar_lea.vmem [#allocation2], %s390
          %s392 = smul.u32 4, %s25
          %394 = vsyncadd %s388, 0
          %s395 = smul.addr %s392, 4
          %s396 = smul.addr %s395, 8
          %s397 = scalar_lea.hbm %s0, %s396
          %s398 = sshll.u32 %s397, 4
          %s399 = int_to_ptr.hbm [resolvable:$true] %s398
          %s400 = sshll.u32 %s391, 4
          %s401 = int_to_ptr.vmem [resolvable:$true] %s400
          %406 = dma.hbm_to_vmem [thread:$0]  %s399, 2048, %s401, %s388, 128, 128, 8
        $region68: #{tpu_custom_call.1} parent=63 // pred_fallthru
          _
      $region64: #{tpu_custom_call.1} parent=5 // pred_fallthru
        _
      %p407 = scmp.le.s32.totalorder 1, %s25
      %p408 = scmp.lt.s32.totalorder %s25, 3
      %p409 = pnand %p407, %p408
      %p410 = pneg %p409
      // Predicated region
      $region69: #{tpu_custom_call.1} parent=5 // pred_check
        _
      $region70: #{tpu_custom_call.1} parent=5 // pred_check_branch
        %412 = sbr.rel (%p409) target = $region72
      $region71: #{tpu_custom_call.1} parent=5 // pred_region
        %s413 = ssub.s32 %s25, 1
        %s414 = sand.u32 %s38, 1
        %s415 = scalar_lea.sflag [#allocation3], %s414
        %s416 = sand.u32 %s38, 1
        %s417 = smul.addr %s416, 128
        %s418 = scalar_lea.vmem [#allocation2], %s417
        // Predicated region
        $region73: #{tpu_custom_call.1} parent=71 // pred_check
          %p419 = pneg %p51
        $region74: #{tpu_custom_call.1} parent=71 // pred_check_branch
          %421 = sbr.rel (%p419) target = $region76
        $region75: #{tpu_custom_call.1} parent=71 // pred_region
          %423 = dma.done %s415, 2048
        $region76: #{tpu_custom_call.1} parent=71 // pred_fallthru
          _
        %s424 = sand.u32 %s38, 1
        %s425 = scalar_lea.sflag [#allocation3], %s424
        %s426 = sand.u32 %s38, 1
        %s427 = smul.addr %s426, 128
        %s428 = scalar_lea.vmem [#allocation2], %s427
        %p429 = pneg %p51
        %p430 = pneg %p48
        %p431 = pneg %p72
        %p432 = pneg %p69
        %p433 = pneg %p93
        %p434 = pneg %p90
        %p435 = pneg %p114
        %p436 = pneg %p111
        %p437 = pneg %p135
        %p438 = pneg %p132
        %p439 = pneg %p156
        %p440 = pneg %p153
        %p441 = pneg %p177
        %p442 = pneg %p174
        %p443 = pneg %p198
        %p444 = pneg %p195
        %p445 = pneg %p219
        %p446 = pneg %p216
        %p447 = pneg %p240
        %p448 = pneg %p237
        %p449 = pneg %p261
        %p450 = pneg %p258
        %p451 = pneg %p282
        %p452 = pneg %p279
        %p453 = pneg %p303
        %p454 = pneg %p300
        %p455 = pneg %p329
        %p456 = pneg %p326
        %s457 = sand.u32 %s316, 1
        %s458 = scalar_lea.sflag [#allocation4], %s457
        %s459 = sand.u32 %s316, 1
        %s460 = smul.addr %s459, 128
        %s461 = scalar_lea.vmem [#allocation5], %s460
        %s462 = smul.u32 4, %s30
        %s463 = smul.u32 4, %s30
        %v464 = vld [vmem:[%s418] sm:$0xff]
        %v465 = vld [vmem:[%s418 + $0x8] sm:$0xff]
        %v466 = vld [vmem:[%s418 + $0x10] sm:$0xff]
        %v467 = vld [vmem:[%s418 + $0x18] sm:$0xff]
        %v468 = vld [vmem:[%s418 + $0x20] sm:$0xff]
        %v469 = vld [vmem:[%s418 + $0x28] sm:$0xff]
        %v470 = vld [vmem:[%s418 + $0x30] sm:$0xff]
        %v471 = vld [vmem:[%s418 + $0x38] sm:$0xff]
        %v472 = vld [vmem:[%s418 + $0x40] sm:$0xff]
        %v473 = vld [vmem:[%s418 + $0x48] sm:$0xff]
        %v474 = vld [vmem:[%s418 + $0x50] sm:$0xff]
        %v475 = vld [vmem:[%s418 + $0x58] sm:$0xff]
        %v476 = vld [vmem:[%s418 + $0x60] sm:$0xff]
        %v477 = vld [vmem:[%s418 + $0x68] sm:$0xff]
        %v478 = vld [vmem:[%s418 + $0x70] sm:$0xff]
        %v479 = vld [vmem:[%s418 + $0x78] sm:$0xff]
        %v480 = vld [vmem:[%s2] sm:$0x1]
        %v481 = vld [vmem:[%s3] sm:$0x1]
        %vm482 = vcmask 261120
        %v483 = vsel %vm482, %v464, 0.0
        %484 = vadd.xlane.f32.xlu0 %v483
        %v485 = vpop.xlane.xlu0 %484
        %v486 = vsel %vm482, %v465, 0.0
        %487 = vadd.xlane.f32.xlu0 %v486
        %v488 = vpop.xlane.xlu0 %487
        %v489 = vsel %vm482, %v466, 0.0
        %490 = vadd.xlane.f32.xlu0 %v489
        %v491 = vpop.xlane.xlu0 %490
        %v492 = vsel %vm482, %v467, 0.0
        %493 = vadd.xlane.f32.xlu0 %v492
        %v494 = vpop.xlane.xlu0 %493
        %v495 = vsel %vm482, %v468, 0.0
        %496 = vadd.xlane.f32.xlu0 %v495
        %v497 = vpop.xlane.xlu0 %496
        %v498 = vsel %vm482, %v469, 0.0
        %499 = vadd.xlane.f32.xlu0 %v498
        %v500 = vpop.xlane.xlu0 %499
        %v501 = vsel %vm482, %v470, 0.0
        %502 = vadd.xlane.f32.xlu0 %v501
        %v503 = vpop.xlane.xlu0 %502
        %v504 = vsel %vm482, %v471, 0.0
        %505 = vadd.xlane.f32.xlu0 %v504
        %v506 = vpop.xlane.xlu0 %505
        %v507 = vsel %vm482, %v472, 0.0
        %508 = vadd.xlane.f32.xlu0 %v507
        %v509 = vpop.xlane.xlu0 %508
        %v510 = vsel %vm482, %v473, 0.0
        %511 = vadd.xlane.f32.xlu0 %v510
        %v512 = vpop.xlane.xlu0 %511
        %v513 = vsel %vm482, %v474, 0.0
        %514 = vadd.xlane.f32.xlu0 %v513
        %v515 = vpop.xlane.xlu0 %514
        %v516 = vsel %vm482, %v475, 0.0
        %517 = vadd.xlane.f32.xlu0 %v516
        %v518 = vpop.xlane.xlu0 %517
        %v519 = vsel %vm482, %v476, 0.0
        %520 = vadd.xlane.f32.xlu0 %v519
        %v521 = vpop.xlane.xlu0 %520
        %v522 = vsel %vm482, %v477, 0.0
        %523 = vadd.xlane.f32.xlu0 %v522
        %v524 = vpop.xlane.xlu0 %523
        %v525 = vsel %vm482, %v478, 0.0
        %526 = vadd.xlane.f32.xlu0 %v525
        %v527 = vpop.xlane.xlu0 %526
        %v528 = vsel %vm482, %v479, 0.0
        %529 = vadd.xlane.f32.xlu0 %v528
        %v530 = vpop.xlane.xlu0 %529
        %v531 = vrcp.pop 32.0
        %v532 = vmul.f32 32.0, %v531
        %v533 = vsub.f32 1.0, %v532
        %v534 = vmul.f32 %v531, %v533
        %v535 = vadd.f32 %v531, %v534
        %vm536 = vweird.f32 %v531
        %v537 = vsel %vm536, %v531, %v535
        %v538 = vmul.f32 %v485, %v537
        %v539 = vmul.f32 %v488, %v537
        %v540 = vmul.f32 %v491, %v537
        %v541 = vmul.f32 %v494, %v537
        %v542 = vmul.f32 %v497, %v537
        %v543 = vmul.f32 %v500, %v537
        %v544 = vmul.f32 %v503, %v537
        %v545 = vmul.f32 %v506, %v537
        %v546 = vmul.f32 %v509, %v537
        %v547 = vmul.f32 %v512, %v537
        %v548 = vmul.f32 %v515, %v537
        %v549 = vmul.f32 %v518, %v537
        %v550 = vmul.f32 %v521, %v537
        %v551 = vmul.f32 %v524, %v537
        %v552 = vmul.f32 %v527, %v537
        %v553 = vmul.f32 %v530, %v537
        %v554 = vsub.f32 %v464, %v538
        %v555 = vsub.f32 %v465, %v539
        %v556 = vsub.f32 %v466, %v540
        %v557 = vsub.f32 %v467, %v541
        %v558 = vsub.f32 %v468, %v542
        %v559 = vsub.f32 %v469, %v543
        %v560 = vsub.f32 %v470, %v544
        %v561 = vsub.f32 %v471, %v545
        %v562 = vsub.f32 %v472, %v546
        %v563 = vsub.f32 %v473, %v547
        %v564 = vsub.f32 %v474, %v548
        %v565 = vsub.f32 %v475, %v549
        %v566 = vsub.f32 %v476, %v550
        %v567 = vsub.f32 %v477, %v551
        %v568 = vsub.f32 %v478, %v552
        %v569 = vsub.f32 %v479, %v553
        %v570 = vmul.f32 %v554, %v554
        %v571 = vmul.f32 %v555, %v555
        %v572 = vmul.f32 %v556, %v556
        %v573 = vmul.f32 %v557, %v557
        %v574 = vmul.f32 %v558, %v558
        %v575 = vmul.f32 %v559, %v559
        %v576 = vmul.f32 %v560, %v560
        %v577 = vmul.f32 %v561, %v561
        %v578 = vmul.f32 %v562, %v562
        %v579 = vmul.f32 %v563, %v563
        %v580 = vmul.f32 %v564, %v564
        %v581 = vmul.f32 %v565, %v565
        %v582 = vmul.f32 %v566, %v566
        %v583 = vmul.f32 %v567, %v567
        %v584 = vmul.f32 %v568, %v568
        %v585 = vmul.f32 %v569, %v569
        %v586 = vsel %vm482, %v570, 0.0
        %587 = vadd.xlane.f32.xlu0 %v586
        %v588 = vpop.xlane.xlu0 %587
        %v589 = vsel %vm482, %v571, 0.0
        %590 = vadd.xlane.f32.xlu0 %v589
        %v591 = vpop.xlane.xlu0 %590
        %v592 = vsel %vm482, %v572, 0.0
        %593 = vadd.xlane.f32.xlu0 %v592
        %v594 = vpop.xlane.xlu0 %593
        %v595 = vsel %vm482, %v573, 0.0
        %596 = vadd.xlane.f32.xlu0 %v595
        %v597 = vpop.xlane.xlu0 %596
        %v598 = vsel %vm482, %v574, 0.0
        %599 = vadd.xlane.f32.xlu0 %v598
        %v600 = vpop.xlane.xlu0 %599
        %v601 = vsel %vm482, %v575, 0.0
        %602 = vadd.xlane.f32.xlu0 %v601
        %v603 = vpop.xlane.xlu0 %602
        %v604 = vsel %vm482, %v576, 0.0
        %605 = vadd.xlane.f32.xlu0 %v604
        %v606 = vpop.xlane.xlu0 %605
        %v607 = vsel %vm482, %v577, 0.0
        %608 = vadd.xlane.f32.xlu0 %v607
        %v609 = vpop.xlane.xlu0 %608
        %v610 = vsel %vm482, %v578, 0.0
        %611 = vadd.xlane.f32.xlu0 %v610
        %v612 = vpop.xlane.xlu0 %611
        %v613 = vsel %vm482, %v579, 0.0
        %614 = vadd.xlane.f32.xlu0 %v613
        %v615 = vpop.xlane.xlu0 %614
        %v616 = vsel %vm482, %v580, 0.0
        %617 = vadd.xlane.f32.xlu0 %v616
        %v618 = vpop.xlane.xlu0 %617
        %v619 = vsel %vm482, %v581, 0.0
        %620 = vadd.xlane.f32.xlu0 %v619
        %v621 = vpop.xlane.xlu0 %620
        %v622 = vsel %vm482, %v582, 0.0
        %623 = vadd.xlane.f32.xlu0 %v622
        %v624 = vpop.xlane.xlu0 %623
        %v625 = vsel %vm482, %v583, 0.0
        %626 = vadd.xlane.f32.xlu0 %v625
        %v627 = vpop.xlane.xlu0 %626
        %v628 = vsel %vm482, %v584, 0.0
        %629 = vadd.xlane.f32.xlu0 %v628
        %v630 = vpop.xlane.xlu0 %629
        %v631 = vsel %vm482, %v585, 0.0
        %632 = vadd.xlane.f32.xlu0 %v631
        %v633 = vpop.xlane.xlu0 %632
        %v634 = vmul.f32 %v588, %v537
        %v635 = vmul.f32 %v591, %v537
        %v636 = vmul.f32 %v594, %v537
        %v637 = vmul.f32 %v597, %v537
        %v638 = vmul.f32 %v600, %v537
        %v639 = vmul.f32 %v603, %v537
        %v640 = vmul.f32 %v606, %v537
        %v641 = vmul.f32 %v609, %v537
        %v642 = vmul.f32 %v612, %v537
        %v643 = vmul.f32 %v615, %v537
        %v644 = vmul.f32 %v618, %v537
        %v645 = vmul.f32 %v621, %v537
        %v646 = vmul.f32 %v624, %v537
        %v647 = vmul.f32 %v627, %v537
        %v648 = vmul.f32 %v630, %v537
        %v649 = vmul.f32 %v633, %v537
        %v650 = vadd.f32 %v634, 1e-05
        %v651 = vadd.f32 %v635, 1e-05
        %v652 = vadd.f32 %v636, 1e-05
        %v653 = vadd.f32 %v637, 1e-05
        %v654 = vadd.f32 %v638, 1e-05
        %v655 = vadd.f32 %v639, 1e-05
        %v656 = vadd.f32 %v640, 1e-05
        %v657 = vadd.f32 %v641, 1e-05
        %v658 = vadd.f32 %v642, 1e-05
        %v659 = vadd.f32 %v643, 1e-05
        %v660 = vadd.f32 %v644, 1e-05
        %v661 = vadd.f32 %v645, 1e-05
        %v662 = vadd.f32 %v646, 1e-05
        %v663 = vadd.f32 %v647, 1e-05
        %v664 = vadd.f32 %v648, 1e-05
        %v665 = vadd.f32 %v649, 1e-05
        %v666 = vrsqrt.pop %v650
        %v667 = vmul.f32 %v666, %v650
        %v668 = vmul.f32 %v667, %v666
        %v669 = vmul.f32 0.5, %v668
        %v670 = vsub.f32 1.5, %v669
        %v671 = vmul.f32 %v666, %v670
        %vm672 = vweird.f32 %v650
        %vm673 = vweird.f32 %v666
        %vm674 = vmor %vm672, %vm673
        %v675 = vsel %vm674, %v666, %v671
        %v676 = vrsqrt.pop %v651
        %v677 = vmul.f32 %v676, %v651
        %v678 = vmul.f32 %v677, %v676
        %v679 = vmul.f32 0.5, %v678
        %v680 = vsub.f32 1.5, %v679
        %v681 = vmul.f32 %v676, %v680
        %vm682 = vweird.f32 %v651
        %vm683 = vweird.f32 %v676
        %vm684 = vmor %vm682, %vm683
        %v685 = vsel %vm684, %v676, %v681
        %v686 = vrsqrt.pop %v652
        %v687 = vmul.f32 %v686, %v652
        %v688 = vmul.f32 %v687, %v686
        %v689 = vmul.f32 0.5, %v688
        %v690 = vsub.f32 1.5, %v689
        %v691 = vmul.f32 %v686, %v690
        %vm692 = vweird.f32 %v652
        %vm693 = vweird.f32 %v686
        %vm694 = vmor %vm692, %vm693
        %v695 = vsel %vm694, %v686, %v691
        %v696 = vrsqrt.pop %v653
        %v697 = vmul.f32 %v696, %v653
        %v698 = vmul.f32 %v697, %v696
        %v699 = vmul.f32 0.5, %v698
        %v700 = vsub.f32 1.5, %v699
        %v701 = vmul.f32 %v696, %v700
        %vm702 = vweird.f32 %v653
        %vm703 = vweird.f32 %v696
        %vm704 = vmor %vm702, %vm703
        %v705 = vsel %vm704, %v696, %v701
        %v706 = vrsqrt.pop %v654
        %v707 = vmul.f32 %v706, %v654
        %v708 = vmul.f32 %v707, %v706
        %v709 = vmul.f32 0.5, %v708
        %v710 = vsub.f32 1.5, %v709
        %v711 = vmul.f32 %v706, %v710
        %vm712 = vweird.f32 %v654
        %vm713 = vweird.f32 %v706
        %vm714 = vmor %vm712, %vm713
        %v715 = vsel %vm714, %v706, %v711
        %v716 = vrsqrt.pop %v655
        %v717 = vmul.f32 %v716, %v655
        %v718 = vmul.f32 %v717, %v716
        %v719 = vmul.f32 0.5, %v718
        %v720 = vsub.f32 1.5, %v719
        %v721 = vmul.f32 %v716, %v720
        %vm722 = vweird.f32 %v655
        %vm723 = vweird.f32 %v716
        %vm724 = vmor %vm722, %vm723
        %v725 = vsel %vm724, %v716, %v721
        %v726 = vrsqrt.pop %v656
        %v727 = vmul.f32 %v726, %v656
        %v728 = vmul.f32 %v727, %v726
        %v729 = vmul.f32 0.5, %v728
        %v730 = vsub.f32 1.5, %v729
        %v731 = vmul.f32 %v726, %v730
        %vm732 = vweird.f32 %v656
        %vm733 = vweird.f32 %v726
        %vm734 = vmor %vm732, %vm733
        %v735 = vsel %vm734, %v726, %v731
        %v736 = vrsqrt.pop %v657
        %v737 = vmul.f32 %v736, %v657
        %v738 = vmul.f32 %v737, %v736
        %v739 = vmul.f32 0.5, %v738
        %v740 = vsub.f32 1.5, %v739
        %v741 = vmul.f32 %v736, %v740
        %vm742 = vweird.f32 %v657
        %vm743 = vweird.f32 %v736
        %vm744 = vmor %vm742, %vm743
        %v745 = vsel %vm744, %v736, %v741
        %v746 = vrsqrt.pop %v658
        %v747 = vmul.f32 %v746, %v658
        %v748 = vmul.f32 %v747, %v746
        %v749 = vmul.f32 0.5, %v748
        %v750 = vsub.f32 1.5, %v749
        %v751 = vmul.f32 %v746, %v750
        %vm752 = vweird.f32 %v658
        %vm753 = vweird.f32 %v746
        %vm754 = vmor %vm752, %vm753
        %v755 = vsel %vm754, %v746, %v751
        %v756 = vrsqrt.pop %v659
        %v757 = vmul.f32 %v756, %v659
        %v758 = vmul.f32 %v757, %v756
        %v759 = vmul.f32 0.5, %v758
        %v760 = vsub.f32 1.5, %v759
        %v761 = vmul.f32 %v756, %v760
        %vm762 = vweird.f32 %v659
        %vm763 = vweird.f32 %v756
        %vm764 = vmor %vm762, %vm763
        %v765 = vsel %vm764, %v756, %v761
        %v766 = vrsqrt.pop %v660
        %v767 = vmul.f32 %v766, %v660
        %v768 = vmul.f32 %v767, %v766
        %v769 = vmul.f32 0.5, %v768
        %v770 = vsub.f32 1.5, %v769
        %v771 = vmul.f32 %v766, %v770
        %vm772 = vweird.f32 %v660
        %vm773 = vweird.f32 %v766
        %vm774 = vmor %vm772, %vm773
        %v775 = vsel %vm774, %v766, %v771
        %v776 = vrsqrt.pop %v661
        %v777 = vmul.f32 %v776, %v661
        %v778 = vmul.f32 %v777, %v776
        %v779 = vmul.f32 0.5, %v778
        %v780 = vsub.f32 1.5, %v779
        %v781 = vmul.f32 %v776, %v780
        %vm782 = vweird.f32 %v661
        %vm783 = vweird.f32 %v776
        %vm784 = vmor %vm782, %vm783
        %v785 = vsel %vm784, %v776, %v781
        %v786 = vrsqrt.pop %v662
        %v787 = vmul.f32 %v786, %v662
        %v788 = vmul.f32 %v787, %v786
        %v789 = vmul.f32 0.5, %v788
        %v790 = vsub.f32 1.5, %v789
        %v791 = vmul.f32 %v786, %v790
        %vm792 = vweird.f32 %v662
        %vm793 = vweird.f32 %v786
        %vm794 = vmor %vm792, %vm793
        %v795 = vsel %vm794, %v786, %v791
        %v796 = vrsqrt.pop %v663
        %v797 = vmul.f32 %v796, %v663
        %v798 = vmul.f32 %v797, %v796
        %v799 = vmul.f32 0.5, %v798
        %v800 = vsub.f32 1.5, %v799
        %v801 = vmul.f32 %v796, %v800
        %vm802 = vweird.f32 %v663
        %vm803 = vweird.f32 %v796
        %vm804 = vmor %vm802, %vm803
        %v805 = vsel %vm804, %v796, %v801
        %v806 = vrsqrt.pop %v664
        %v807 = vmul.f32 %v806, %v664
        %v808 = vmul.f32 %v807, %v806
        %v809 = vmul.f32 0.5, %v808
        %v810 = vsub.f32 1.5, %v809
        %v811 = vmul.f32 %v806, %v810
        %vm812 = vweird.f32 %v664
        %vm813 = vweird.f32 %v806
        %vm814 = vmor %vm812, %vm813
        %v815 = vsel %vm814, %v806, %v811
        %v816 = vrsqrt.pop %v665
        %v817 = vmul.f32 %v816, %v665
        %v818 = vmul.f32 %v817, %v816
        %v819 = vmul.f32 0.5, %v818
        %v820 = vsub.f32 1.5, %v819
        %v821 = vmul.f32 %v816, %v820
        %vm822 = vweird.f32 %v665
        %vm823 = vweird.f32 %v816
        %vm824 = vmor %vm822, %vm823
        %v825 = vsel %vm824, %v816, %v821
        %v826 = vmul.f32 %v554, %v675
        %v827 = vmul.f32 %v555, %v685
        %v828 = vmul.f32 %v556, %v695
        %v829 = vmul.f32 %v557, %v705
        %v830 = vmul.f32 %v558, %v715
        %v831 = vmul.f32 %v559, %v725
        %v832 = vmul.f32 %v560, %v735
        %v833 = vmul.f32 %v561, %v745
        %v834 = vmul.f32 %v562, %v755
        %v835 = vmul.f32 %v563, %v765
        %v836 = vmul.f32 %v564, %v775
        %v837 = vmul.f32 %v565, %v785
        %v838 = vmul.f32 %v566, %v795
        %v839 = vmul.f32 %v567, %v805
        %v840 = vmul.f32 %v568, %v815
        %v841 = vmul.f32 %v569, %v825
        %v843 = vperm.slane %v480, 0
        %v845 = vmul.f32 %v826, %v843
        %v846 = vmul.f32 %v827, %v843
        %v847 = vmul.f32 %v828, %v843
        %v848 = vmul.f32 %v829, %v843
        %v849 = vmul.f32 %v830, %v843
        %v850 = vmul.f32 %v831, %v843
        %v851 = vmul.f32 %v832, %v843
        %v852 = vmul.f32 %v833, %v843
        %v853 = vmul.f32 %v834, %v843
        %v854 = vmul.f32 %v835, %v843
        %v855 = vmul.f32 %v836, %v843
        %v856 = vmul.f32 %v837, %v843
        %v857 = vmul.f32 %v838, %v843
        %v858 = vmul.f32 %v839, %v843
        %v859 = vmul.f32 %v840, %v843
        %v860 = vmul.f32 %v841, %v843
        %v862 = vperm.slane %v481, 0
        %v864 = vadd.f32 %v845, %v862
        %v865 = vadd.f32 %v846, %v862
        %v866 = vadd.f32 %v847, %v862
        %v867 = vadd.f32 %v848, %v862
        %v868 = vadd.f32 %v849, %v862
        %v869 = vadd.f32 %v850, %v862
        %v870 = vadd.f32 %v851, %v862
        %v871 = vadd.f32 %v852, %v862
        %v872 = vadd.f32 %v853, %v862
        %v873 = vadd.f32 %v854, %v862
        %v874 = vadd.f32 %v855, %v862
        %v875 = vadd.f32 %v856, %v862
        %v876 = vadd.f32 %v857, %v862
        %v877 = vadd.f32 %v858, %v862
        %v878 = vadd.f32 %v859, %v862
        %v879 = vadd.f32 %v860, %v862
        %v880 = vld [vmem:[%s4] sm:$0xff]
        %v881 = vld [vmem:[%s4 + $0x8] sm:$0xff]
        %v882 = vld [vmem:[%s4 + $0x10] sm:$0xff]
        %v883 = vld [vmem:[%s4 + $0x18] sm:$0xff]
        %v885 = vsel %vm482, %v864, 0
        %v888 = vsel %vm482, %v865, 0
        %v891 = vsel %vm482, %v866, 0
        %v894 = vsel %vm482, %v867, 0
        %v897 = vsel %vm482, %v868, 0
        %v900 = vsel %vm482, %v869, 0
        %v903 = vsel %vm482, %v870, 0
        %v906 = vsel %vm482, %v871, 0
        %v909 = vsel %vm482, %v872, 0
        %v912 = vsel %vm482, %v873, 0
        %v915 = vsel %vm482, %v874, 0
        %v918 = vsel %vm482, %v875, 0
        %v921 = vsel %vm482, %v876, 0
        %v924 = vsel %vm482, %v877, 0
        %v927 = vsel %vm482, %v878, 0
        %v930 = vsel %vm482, %v879, 0
        %932 = vmatpush.msra.mxu0 0.0
        %933 = vmatpush.msra.mxu0 0.0
        %934 = vmatpush.msra.mxu0 0.0
        %935 = vmatpush.msra.mxu0 0.0
        %936 = vmatpush.msra.mxu0 0.0
        %937 = vmatpush.msra.mxu0 0.0
        %938 = vmatpush.msra.mxu0 0.0
        %939 = vmatpush.msra.mxu0 0.0
        %940 = vmatpush.msra.mxu0 0.0
        %941 = vmatpush.msra.mxu0 0.0
        %942 = vmatpush.msra.mxu0 0.0
        %943 = vmatpush.msra.mxu0 0.0
        %944 = vmatpush.msra.mxu0 %v883
        %945 = vmatpush.msra.mxu0 %v882
        %946 = vmatpush.msra.mxu0 %v881
        %947 = vmatpush.msra.mxu0 %v880
        %948 = vmatmul.f32.gmra.mxu0 %v885
        %v949 = vpop.f32.mrf.mxu0
        %v950 = vadd.f32 0.0, %v949
        %951 = vmatmul.f32.gmra.mxu0 %v888
        %v952 = vpop.f32.mrf.mxu0
        %v953 = vadd.f32 0.0, %v952
        %954 = vmatmul.f32.gmra.mxu0 %v891
        %v955 = vpop.f32.mrf.mxu0
        %v956 = vadd.f32 0.0, %v955
        %957 = vmatmul.f32.gmra.mxu0 %v894
        %v958 = vpop.f32.mrf.mxu0
        %v959 = vadd.f32 0.0, %v958
        %960 = vmatmul.f32.gmra.mxu0 %v897
        %v961 = vpop.f32.mrf.mxu0
        %v962 = vadd.f32 0.0, %v961
        %963 = vmatmul.f32.gmra.mxu0 %v900
        %v964 = vpop.f32.mrf.mxu0
        %v965 = vadd.f32 0.0, %v964
        %966 = vmatmul.f32.gmra.mxu0 %v903
        %v967 = vpop.f32.mrf.mxu0
        %v968 = vadd.f32 0.0, %v967
        %969 = vmatmul.f32.gmra.mxu0 %v906
        %v970 = vpop.f32.mrf.mxu0
        %v971 = vadd.f32 0.0, %v970
        %972 = vmatmul.f32.gmra.mxu0 %v909
        %v973 = vpop.f32.mrf.mxu0
        %v974 = vadd.f32 0.0, %v973
        %975 = vmatmul.f32.gmra.mxu0 %v912
        %v976 = vpop.f32.mrf.mxu0
        %v977 = vadd.f32 0.0, %v976
        %978 = vmatmul.f32.gmra.mxu0 %v915
        %v979 = vpop.f32.mrf.mxu0
        %v980 = vadd.f32 0.0, %v979
        %981 = vmatmul.f32.gmra.mxu0 %v918
        %v982 = vpop.f32.mrf.mxu0
        %v983 = vadd.f32 0.0, %v982
        %984 = vmatmul.f32.gmra.mxu0 %v921
        %v985 = vpop.f32.mrf.mxu0
        %v986 = vadd.f32 0.0, %v985
        %987 = vmatmul.f32.gmra.mxu0 %v924
        %v988 = vpop.f32.mrf.mxu0
        %v989 = vadd.f32 0.0, %v988
        %990 = vmatmul.f32.gmra.mxu0 %v927
        %v991 = vpop.f32.mrf.mxu0
        %v992 = vadd.f32 0.0, %v991
        %993 = vmatmul.f32.gmra.mxu0 %v930
        %v994 = vpop.f32.mrf.mxu0
        %v995 = vadd.f32 0.0, %v994
        %996 = vdwg.mxu0
        %v997 = vld [vmem:[%s1] sm:$0xff]
        %v998 = vld [vmem:[%s1 + $0x8] sm:$0xff]
        %v999 = vld [vmem:[%s1 + $0x10] sm:$0xff]
        %v1000 = vld [vmem:[%s1 + $0x18] sm:$0xff]
        %v1001 = vld [vmem:[%s5] sm:$0xff]
        %v1002 = vld [vmem:[%s5 + $0x8] sm:$0xff]
        %v1003 = vld [vmem:[%s5 + $0x10] sm:$0xff]
        %v1004 = vld [vmem:[%s5 + $0x18] sm:$0xff]
        %1009 = vrot.lane.b32.xlu0 %v950, 96
        %v1010 = vpop.permute.xlu0 %1009
        %1011 = vrot.lane.b32.xlu0 %v953, 96
        %v1012 = vpop.permute.xlu0 %1011
        %1013 = vrot.lane.b32.xlu0 %v956, 96
        %v1014 = vpop.permute.xlu0 %1013
        %1015 = vrot.lane.b32.xlu0 %v959, 96
        %v1016 = vpop.permute.xlu0 %1015
        %vm1017 = vcmask 64512
        %v1018 = vsel %vm1017, %v950, 0
        %v1020 = vsel %vm1017, %v953, 0
        %v1022 = vsel %vm1017, %v956, 0
        %v1024 = vsel %vm1017, %v959, 0
        %v1026 = vsel %vm1017, %v1010, 0
        %v1028 = vsel %vm1017, %v1012, 0
        %v1030 = vsel %vm1017, %v1014, 0
        %v1032 = vsel %vm1017, %v1016, 0
        %1034 = vmatpush.xpose.msra.mxu0 0.0
        %1035 = vmatpush.xpose.msra.mxu0 0.0
        %1036 = vmatpush.xpose.msra.mxu0 0.0
        %1037 = vmatpush.xpose.msra.mxu0 0.0
        %1038 = vmatpush.xpose.msra.mxu0 0.0
        %1039 = vmatpush.xpose.msra.mxu0 0.0
        %1040 = vmatpush.xpose.msra.mxu0 0.0
        %1041 = vmatpush.xpose.msra.mxu0 0.0
        %1042 = vmatpush.xpose.msra.mxu0 0.0
        %1043 = vmatpush.xpose.msra.mxu0 0.0
        %1044 = vmatpush.xpose.msra.mxu0 0.0
        %1045 = vmatpush.xpose.msra.mxu0 0.0
        %1046 = vmatpush.xpose.msra.mxu0 %v1032
        %1047 = vmatpush.xpose.msra.mxu0 %v1030
        %1048 = vmatpush.xpose.msra.mxu0 %v1028
        %1049 = vmatpush.xpose.msra.mxu0 %v1026
        %1050 = vmatmul.f32.gmra.mxu0 %v1018
        %v1051 = vpop.f32.mrf.mxu0
        %v1052 = vadd.f32 %v997, %v1051
        %1053 = vmatmul.f32.gmra.mxu0 %v1020
        %v1054 = vpop.f32.mrf.mxu0
        %v1055 = vadd.f32 %v998, %v1054
        %1056 = vmatmul.f32.gmra.mxu0 %v1022
        %v1057 = vpop.f32.mrf.mxu0
        %v1058 = vadd.f32 %v999, %v1057
        %1059 = vmatmul.f32.gmra.mxu0 %v1024
        %v1060 = vpop.f32.mrf.mxu0
        %v1061 = vadd.f32 %v1000, %v1060
        %1062 = vdwg.mxu0
        %1067 = vrot.lane.b32.xlu0 %v962, 96
        %v1068 = vpop.permute.xlu0 %1067
        %1069 = vrot.lane.b32.xlu0 %v965, 96
        %v1070 = vpop.permute.xlu0 %1069
        %1071 = vrot.lane.b32.xlu0 %v968, 96
        %v1072 = vpop.permute.xlu0 %1071
        %1073 = vrot.lane.b32.xlu0 %v971, 96
        %v1074 = vpop.permute.xlu0 %1073
        %v1075 = vsel %vm1017, %v962, 0
        %v1077 = vsel %vm1017, %v965, 0
        %v1079 = vsel %vm1017, %v968, 0
        %v1081 = vsel %vm1017, %v971, 0
        %v1083 = vsel %vm1017, %v1068, 0
        %v1085 = vsel %vm1017, %v1070, 0
        %v1087 = vsel %vm1017, %v1072, 0
        %v1089 = vsel %vm1017, %v1074, 0
        %1091 = vmatpush.xpose.msra.mxu0 0.0
        %1092 = vmatpush.xpose.msra.mxu0 0.0
        %1093 = vmatpush.xpose.msra.mxu0 0.0
        %1094 = vmatpush.xpose.msra.mxu0 0.0
        %1095 = vmatpush.xpose.msra.mxu0 0.0
        %1096 = vmatpush.xpose.msra.mxu0 0.0
        %1097 = vmatpush.xpose.msra.mxu0 0.0
        %1098 = vmatpush.xpose.msra.mxu0 0.0
        %1099 = vmatpush.xpose.msra.mxu0 0.0
        %1100 = vmatpush.xpose.msra.mxu0 0.0
        %1101 = vmatpush.xpose.msra.mxu0 0.0
        %1102 = vmatpush.xpose.msra.mxu0 0.0
        %1103 = vmatpush.xpose.msra.mxu0 %v1089
        %1104 = vmatpush.xpose.msra.mxu0 %v1087
        %1105 = vmatpush.xpose.msra.mxu0 %v1085
        %1106 = vmatpush.xpose.msra.mxu0 %v1083
        %1107 = vmatmul.f32.gmra.mxu0 %v1075
        %v1108 = vpop.f32.mrf.mxu0
        %v1109 = vadd.f32 %v997, %v1108
        %1110 = vmatmul.f32.gmra.mxu0 %v1077
        %v1111 = vpop.f32.mrf.mxu0
        %v1112 = vadd.f32 %v998, %v1111
        %1113 = vmatmul.f32.gmra.mxu0 %v1079
        %v1114 = vpop.f32.mrf.mxu0
        %v1115 = vadd.f32 %v999, %v1114
        %1116 = vmatmul.f32.gmra.mxu0 %v1081
        %v1117 = vpop.f32.mrf.mxu0
        %v1118 = vadd.f32 %v1000, %v1117
        %1119 = vdwg.mxu0
        %1124 = vrot.lane.b32.xlu0 %v974, 96
        %v1125 = vpop.permute.xlu0 %1124
        %1126 = vrot.lane.b32.xlu0 %v977, 96
        %v1127 = vpop.permute.xlu0 %1126
        %1128 = vrot.lane.b32.xlu0 %v980, 96
        %v1129 = vpop.permute.xlu0 %1128
        %1130 = vrot.lane.b32.xlu0 %v983, 96
        %v1131 = vpop.permute.xlu0 %1130
        %v1132 = vsel %vm1017, %v974, 0
        %v1134 = vsel %vm1017, %v977, 0
        %v1136 = vsel %vm1017, %v980, 0
        %v1138 = vsel %vm1017, %v983, 0
        %v1140 = vsel %vm1017, %v1125, 0
        %v1142 = vsel %vm1017, %v1127, 0
        %v1144 = vsel %vm1017, %v1129, 0
        %v1146 = vsel %vm1017, %v1131, 0
        %1148 = vmatpush.xpose.msra.mxu0 0.0
        %1149 = vmatpush.xpose.msra.mxu0 0.0
        %1150 = vmatpush.xpose.msra.mxu0 0.0
        %1151 = vmatpush.xpose.msra.mxu0 0.0
        %1152 = vmatpush.xpose.msra.mxu0 0.0
        %1153 = vmatpush.xpose.msra.mxu0 0.0
        %1154 = vmatpush.xpose.msra.mxu0 0.0
        %1155 = vmatpush.xpose.msra.mxu0 0.0
        %1156 = vmatpush.xpose.msra.mxu0 0.0
        %1157 = vmatpush.xpose.msra.mxu0 0.0
        %1158 = vmatpush.xpose.msra.mxu0 0.0
        %1159 = vmatpush.xpose.msra.mxu0 0.0
        %1160 = vmatpush.xpose.msra.mxu0 %v1146
        %1161 = vmatpush.xpose.msra.mxu0 %v1144
        %1162 = vmatpush.xpose.msra.mxu0 %v1142
        %1163 = vmatpush.xpose.msra.mxu0 %v1140
        %1164 = vmatmul.f32.gmra.mxu0 %v1132
        %v1165 = vpop.f32.mrf.mxu0
        %v1166 = vadd.f32 %v997, %v1165
        %1167 = vmatmul.f32.gmra.mxu0 %v1134
        %v1168 = vpop.f32.mrf.mxu0
        %v1169 = vadd.f32 %v998, %v1168
        %1170 = vmatmul.f32.gmra.mxu0 %v1136
        %v1171 = vpop.f32.mrf.mxu0
        %v1172 = vadd.f32 %v999, %v1171
        %1173 = vmatmul.f32.gmra.mxu0 %v1138
        %v1174 = vpop.f32.mrf.mxu0
        %v1175 = vadd.f32 %v1000, %v1174
        %1176 = vdwg.mxu0
        %1181 = vrot.lane.b32.xlu0 %v986, 96
        %v1182 = vpop.permute.xlu0 %1181
        %1183 = vrot.lane.b32.xlu0 %v989, 96
        %v1184 = vpop.permute.xlu0 %1183
        %1185 = vrot.lane.b32.xlu0 %v992, 96
        %v1186 = vpop.permute.xlu0 %1185
        %1187 = vrot.lane.b32.xlu0 %v995, 96
        %v1188 = vpop.permute.xlu0 %1187
        %v1189 = vsel %vm1017, %v986, 0
        %v1191 = vsel %vm1017, %v989, 0
        %v1193 = vsel %vm1017, %v992, 0
        %v1195 = vsel %vm1017, %v995, 0
        %v1197 = vsel %vm1017, %v1182, 0
        %v1199 = vsel %vm1017, %v1184, 0
        %v1201 = vsel %vm1017, %v1186, 0
        %v1203 = vsel %vm1017, %v1188, 0
        %1205 = vmatpush.xpose.msra.mxu0 0.0
        %1206 = vmatpush.xpose.msra.mxu0 0.0
        %1207 = vmatpush.xpose.msra.mxu0 0.0
        %1208 = vmatpush.xpose.msra.mxu0 0.0
        %1209 = vmatpush.xpose.msra.mxu0 0.0
        %1210 = vmatpush.xpose.msra.mxu0 0.0
        %1211 = vmatpush.xpose.msra.mxu0 0.0
        %1212 = vmatpush.xpose.msra.mxu0 0.0
        %1213 = vmatpush.xpose.msra.mxu0 0.0
        %1214 = vmatpush.xpose.msra.mxu0 0.0
        %1215 = vmatpush.xpose.msra.mxu0 0.0
        %1216 = vmatpush.xpose.msra.mxu0 0.0
        %1217 = vmatpush.xpose.msra.mxu0 %v1203
        %1218 = vmatpush.xpose.msra.mxu0 %v1201
        %1219 = vmatpush.xpose.msra.mxu0 %v1199
        %1220 = vmatpush.xpose.msra.mxu0 %v1197
        %1221 = vmatmul.f32.gmra.mxu0 %v1189
        %v1222 = vpop.f32.mrf.mxu0
        %v1223 = vadd.f32 %v997, %v1222
        %1224 = vmatmul.f32.gmra.mxu0 %v1191
        %v1225 = vpop.f32.mrf.mxu0
        %v1226 = vadd.f32 %v998, %v1225
        %1227 = vmatmul.f32.gmra.mxu0 %v1193
        %v1228 = vpop.f32.mrf.mxu0
        %v1229 = vadd.f32 %v999, %v1228
        %1230 = vmatmul.f32.gmra.mxu0 %v1195
        %v1231 = vpop.f32.mrf.mxu0
        %v1232 = vadd.f32 %v1000, %v1231
        %1233 = vdwg.mxu0
        %v1234 = vsel %vm482, %v1052, -inf
        %1235 = vmax.xlane.f32.xlu0 %v1234
        %v1236 = vpop.xlane.xlu0 %1235
        %v1237 = vsel %vm482, %v1055, -inf
        %1238 = vmax.xlane.f32.xlu0 %v1237
        %v1239 = vpop.xlane.xlu0 %1238
        %v1240 = vsel %vm482, %v1058, -inf
        %1241 = vmax.xlane.f32.xlu0 %v1240
        %v1242 = vpop.xlane.xlu0 %1241
        %v1243 = vsel %vm482, %v1061, -inf
        %1244 = vmax.xlane.f32.xlu0 %v1243
        %v1245 = vpop.xlane.xlu0 %1244
        %v1246 = vsel %vm482, %v1109, -inf
        %1247 = vmax.xlane.f32.xlu0 %v1246
        %v1248 = vpop.xlane.xlu0 %1247
        %v1249 = vsel %vm482, %v1112, -inf
        %1250 = vmax.xlane.f32.xlu0 %v1249
        %v1251 = vpop.xlane.xlu0 %1250
        %v1252 = vsel %vm482, %v1115, -inf
        %1253 = vmax.xlane.f32.xlu0 %v1252
        %v1254 = vpop.xlane.xlu0 %1253
        %v1255 = vsel %vm482, %v1118, -inf
        %1256 = vmax.xlane.f32.xlu0 %v1255
        %v1257 = vpop.xlane.xlu0 %1256
        %v1258 = vsel %vm482, %v1166, -inf
        %1259 = vmax.xlane.f32.xlu0 %v1258
        %v1260 = vpop.xlane.xlu0 %1259
        %v1261 = vsel %vm482, %v1169, -inf
        %1262 = vmax.xlane.f32.xlu0 %v1261
        %v1263 = vpop.xlane.xlu0 %1262
        %v1264 = vsel %vm482, %v1172, -inf
        %1265 = vmax.xlane.f32.xlu0 %v1264
        %v1266 = vpop.xlane.xlu0 %1265
        %v1267 = vsel %vm482, %v1175, -inf
        %1268 = vmax.xlane.f32.xlu0 %v1267
        %v1269 = vpop.xlane.xlu0 %1268
        %v1270 = vsel %vm482, %v1223, -inf
        %1271 = vmax.xlane.f32.xlu0 %v1270
        %v1272 = vpop.xlane.xlu0 %1271
        %v1273 = vsel %vm482, %v1226, -inf
        %1274 = vmax.xlane.f32.xlu0 %v1273
        %v1275 = vpop.xlane.xlu0 %1274
        %v1276 = vsel %vm482, %v1229, -inf
        %1277 = vmax.xlane.f32.xlu0 %v1276
        %v1278 = vpop.xlane.xlu0 %1277
        %v1279 = vsel %vm482, %v1232, -inf
        %1280 = vmax.xlane.f32.xlu0 %v1279
        %v1281 = vpop.xlane.xlu0 %1280
        %v1282 = vsub.f32 %v1052, %v1236
        %v1283 = vsub.f32 %v1055, %v1239
        %v1284 = vsub.f32 %v1058, %v1242
        %v1285 = vsub.f32 %v1061, %v1245
        %v1286 = vsub.f32 %v1109, %v1248
        %v1287 = vsub.f32 %v1112, %v1251
        %v1288 = vsub.f32 %v1115, %v1254
        %v1289 = vsub.f32 %v1118, %v1257
        %v1290 = vsub.f32 %v1166, %v1260
        %v1291 = vsub.f32 %v1169, %v1263
        %v1292 = vsub.f32 %v1172, %v1266
        %v1293 = vsub.f32 %v1175, %v1269
        %v1294 = vsub.f32 %v1223, %v1272
        %v1295 = vsub.f32 %v1226, %v1275
        %v1296 = vsub.f32 %v1229, %v1278
        %v1297 = vsub.f32 %v1232, %v1281
        %v1298 = vmul.f32 %v1282, 1.442695
        %v1299 = vpow.pop %v1298
        %v1300 = vmul.f32 %v1283, 1.442695
        %v1301 = vpow.pop %v1300
        %v1302 = vmul.f32 %v1284, 1.442695
        %v1303 = vpow.pop %v1302
        %v1304 = vmul.f32 %v1285, 1.442695
        %v1305 = vpow.pop %v1304
        %v1306 = vmul.f32 %v1286, 1.442695
        %v1307 = vpow.pop %v1306
        %v1308 = vmul.f32 %v1287, 1.442695
        %v1309 = vpow.pop %v1308
        %v1310 = vmul.f32 %v1288, 1.442695
        %v1311 = vpow.pop %v1310
        %v1312 = vmul.f32 %v1289, 1.442695
        %v1313 = vpow.pop %v1312
        %v1314 = vmul.f32 %v1290, 1.442695
        %v1315 = vpow.pop %v1314
        %v1316 = vmul.f32 %v1291, 1.442695
        %v1317 = vpow.pop %v1316
        %v1318 = vmul.f32 %v1292, 1.442695
        %v1319 = vpow.pop %v1318
        %v1320 = vmul.f32 %v1293, 1.442695
        %v1321 = vpow.pop %v1320
        %v1322 = vmul.f32 %v1294, 1.442695
        %v1323 = vpow.pop %v1322
        %v1324 = vmul.f32 %v1295, 1.442695
        %v1325 = vpow.pop %v1324
        %v1326 = vmul.f32 %v1296, 1.442695
        %v1327 = vpow.pop %v1326
        %v1328 = vmul.f32 %v1297, 1.442695
        %v1329 = vpow.pop %v1328
        %v1330 = vsel %vm482, %v1299, 0.0
        %1331 = vadd.xlane.f32.xlu0 %v1330
        %v1332 = vpop.xlane.xlu0 %1331
        %v1333 = vsel %vm482, %v1301, 0.0
        %1334 = vadd.xlane.f32.xlu0 %v1333
        %v1335 = vpop.xlane.xlu0 %1334
        %v1336 = vsel %vm482, %v1303, 0.0
        %1337 = vadd.xlane.f32.xlu0 %v1336
        %v1338 = vpop.xlane.xlu0 %1337
        %v1339 = vsel %vm482, %v1305, 0.0
        %1340 = vadd.xlane.f32.xlu0 %v1339
        %v1341 = vpop.xlane.xlu0 %1340
        %v1342 = vsel %vm482, %v1307, 0.0
        %1343 = vadd.xlane.f32.xlu0 %v1342
        %v1344 = vpop.xlane.xlu0 %1343
        %v1345 = vsel %vm482, %v1309, 0.0
        %1346 = vadd.xlane.f32.xlu0 %v1345
        %v1347 = vpop.xlane.xlu0 %1346
        %v1348 = vsel %vm482, %v1311, 0.0
        %1349 = vadd.xlane.f32.xlu0 %v1348
        %v1350 = vpop.xlane.xlu0 %1349
        %v1351 = vsel %vm482, %v1313, 0.0
        %1352 = vadd.xlane.f32.xlu0 %v1351
        %v1353 = vpop.xlane.xlu0 %1352
        %v1354 = vsel %vm482, %v1315, 0.0
        %1355 = vadd.xlane.f32.xlu0 %v1354
        %v1356 = vpop.xlane.xlu0 %1355
        %v1357 = vsel %vm482, %v1317, 0.0
        %1358 = vadd.xlane.f32.xlu0 %v1357
        %v1359 = vpop.xlane.xlu0 %1358
        %v1360 = vsel %vm482, %v1319, 0.0
        %1361 = vadd.xlane.f32.xlu0 %v1360
        %v1362 = vpop.xlane.xlu0 %1361
        %v1363 = vsel %vm482, %v1321, 0.0
        %1364 = vadd.xlane.f32.xlu0 %v1363
        %v1365 = vpop.xlane.xlu0 %1364
        %v1366 = vsel %vm482, %v1323, 0.0
        %1367 = vadd.xlane.f32.xlu0 %v1366
        %v1368 = vpop.xlane.xlu0 %1367
        %v1369 = vsel %vm482, %v1325, 0.0
        %1370 = vadd.xlane.f32.xlu0 %v1369
        %v1371 = vpop.xlane.xlu0 %1370
        %v1372 = vsel %vm482, %v1327, 0.0
        %1373 = vadd.xlane.f32.xlu0 %v1372
        %v1374 = vpop.xlane.xlu0 %1373
        %v1375 = vsel %vm482, %v1329, 0.0
        %1376 = vadd.xlane.f32.xlu0 %v1375
        %v1377 = vpop.xlane.xlu0 %1376
        %1378 = vrot.lane.b32.xlu0 %v950, 64
        %v1379 = vpop.permute.xlu0 %1378
        %1380 = vrot.lane.b32.xlu0 %v953, 64
        %v1381 = vpop.permute.xlu0 %1380
        %1382 = vrot.lane.b32.xlu0 %v956, 64
        %v1383 = vpop.permute.xlu0 %1382
        %1384 = vrot.lane.b32.xlu0 %v959, 64
        %v1385 = vpop.permute.xlu0 %1384
        %v1391 = vsel %vm482, %v1299, 0
        %v1394 = vsel %vm482, %v1301, 0
        %v1397 = vsel %vm482, %v1303, 0
        %v1400 = vsel %vm482, %v1305, 0
        %1402 = vmatpush.msra.mxu0 0.0
        %1403 = vmatpush.msra.mxu0 0.0
        %1404 = vmatpush.msra.mxu0 0.0
        %1405 = vmatpush.msra.mxu0 0.0
        %1406 = vmatpush.msra.mxu0 0.0
        %1407 = vmatpush.msra.mxu0 0.0
        %1408 = vmatpush.msra.mxu0 0.0
        %1409 = vmatpush.msra.mxu0 0.0
        %1410 = vmatpush.msra.mxu0 0.0
        %1411 = vmatpush.msra.mxu0 0.0
        %1412 = vmatpush.msra.mxu0 0.0
        %1413 = vmatpush.msra.mxu0 0.0
        %1414 = vmatpush.msra.mxu0 %v1385
        %1415 = vmatpush.msra.mxu0 %v1383
        %1416 = vmatpush.msra.mxu0 %v1381
        %1417 = vmatpush.msra.mxu0 %v1379
        %1418 = vmatmul.f32.gmra.mxu0 %v1391
        %v1419 = vpop.f32.mrf.mxu0
        %v1420 = vadd.f32 0.0, %v1419
        %1421 = vmatmul.f32.gmra.mxu0 %v1394
        %v1422 = vpop.f32.mrf.mxu0
        %v1423 = vadd.f32 0.0, %v1422
        %1424 = vmatmul.f32.gmra.mxu0 %v1397
        %v1425 = vpop.f32.mrf.mxu0
        %v1426 = vadd.f32 0.0, %v1425
        %1427 = vmatmul.f32.gmra.mxu0 %v1400
        %v1428 = vpop.f32.mrf.mxu0
        %v1429 = vadd.f32 0.0, %v1428
        %1430 = vdwg.mxu0
        %1431 = vrot.lane.b32.xlu0 %v962, 64
        %v1432 = vpop.permute.xlu0 %1431
        %1433 = vrot.lane.b32.xlu0 %v965, 64
        %v1434 = vpop.permute.xlu0 %1433
        %1435 = vrot.lane.b32.xlu0 %v968, 64
        %v1436 = vpop.permute.xlu0 %1435
        %1437 = vrot.lane.b32.xlu0 %v971, 64
        %v1438 = vpop.permute.xlu0 %1437
        %v1444 = vsel %vm482, %v1307, 0
        %v1447 = vsel %vm482, %v1309, 0
        %v1450 = vsel %vm482, %v1311, 0
        %v1453 = vsel %vm482, %v1313, 0
        %1455 = vmatpush.msra.mxu0 0.0
        %1456 = vmatpush.msra.mxu0 0.0
        %1457 = vmatpush.msra.mxu0 0.0
        %1458 = vmatpush.msra.mxu0 0.0
        %1459 = vmatpush.msra.mxu0 0.0
        %1460 = vmatpush.msra.mxu0 0.0
        %1461 = vmatpush.msra.mxu0 0.0
        %1462 = vmatpush.msra.mxu0 0.0
        %1463 = vmatpush.msra.mxu0 0.0
        %1464 = vmatpush.msra.mxu0 0.0
        %1465 = vmatpush.msra.mxu0 0.0
        %1466 = vmatpush.msra.mxu0 0.0
        %1467 = vmatpush.msra.mxu0 %v1438
        %1468 = vmatpush.msra.mxu0 %v1436
        %1469 = vmatpush.msra.mxu0 %v1434
        %1470 = vmatpush.msra.mxu0 %v1432
        %1471 = vmatmul.f32.gmra.mxu0 %v1444
        %v1472 = vpop.f32.mrf.mxu0
        %v1473 = vadd.f32 0.0, %v1472
        %1474 = vmatmul.f32.gmra.mxu0 %v1447
        %v1475 = vpop.f32.mrf.mxu0
        %v1476 = vadd.f32 0.0, %v1475
        %1477 = vmatmul.f32.gmra.mxu0 %v1450
        %v1478 = vpop.f32.mrf.mxu0
        %v1479 = vadd.f32 0.0, %v1478
        %1480 = vmatmul.f32.gmra.mxu0 %v1453
        %v1481 = vpop.f32.mrf.mxu0
        %v1482 = vadd.f32 0.0, %v1481
        %1483 = vdwg.mxu0
        %1484 = vrot.lane.b32.xlu0 %v974, 64
        %v1485 = vpop.permute.xlu0 %1484
        %1486 = vrot.lane.b32.xlu0 %v977, 64
        %v1487 = vpop.permute.xlu0 %1486
        %1488 = vrot.lane.b32.xlu0 %v980, 64
        %v1489 = vpop.permute.xlu0 %1488
        %1490 = vrot.lane.b32.xlu0 %v983, 64
        %v1491 = vpop.permute.xlu0 %1490
        %v1497 = vsel %vm482, %v1315, 0
        %v1500 = vsel %vm482, %v1317, 0
        %v1503 = vsel %vm482, %v1319, 0
        %v1506 = vsel %vm482, %v1321, 0
        %1508 = vmatpush.msra.mxu0 0.0
        %1509 = vmatpush.msra.mxu0 0.0
        %1510 = vmatpush.msra.mxu0 0.0
        %1511 = vmatpush.msra.mxu0 0.0
        %1512 = vmatpush.msra.mxu0 0.0
        %1513 = vmatpush.msra.mxu0 0.0
        %1514 = vmatpush.msra.mxu0 0.0
        %1515 = vmatpush.msra.mxu0 0.0
        %1516 = vmatpush.msra.mxu0 0.0
        %1517 = vmatpush.msra.mxu0 0.0
        %1518 = vmatpush.msra.mxu0 0.0
        %1519 = vmatpush.msra.mxu0 0.0
        %1520 = vmatpush.msra.mxu0 %v1491
        %1521 = vmatpush.msra.mxu0 %v1489
        %1522 = vmatpush.msra.mxu0 %v1487
        %1523 = vmatpush.msra.mxu0 %v1485
        %1524 = vmatmul.f32.gmra.mxu0 %v1497
        %v1525 = vpop.f32.mrf.mxu0
        %v1526 = vadd.f32 0.0, %v1525
        %1527 = vmatmul.f32.gmra.mxu0 %v1500
        %v1528 = vpop.f32.mrf.mxu0
        %v1529 = vadd.f32 0.0, %v1528
        %1530 = vmatmul.f32.gmra.mxu0 %v1503
        %v1531 = vpop.f32.mrf.mxu0
        %v1532 = vadd.f32 0.0, %v1531
        %1533 = vmatmul.f32.gmra.mxu0 %v1506
        %v1534 = vpop.f32.mrf.mxu0
        %v1535 = vadd.f32 0.0, %v1534
        %1536 = vdwg.mxu0
        %1537 = vrot.lane.b32.xlu0 %v986, 64
        %v1538 = vpop.permute.xlu0 %1537
        %1539 = vrot.lane.b32.xlu0 %v989, 64
        %v1540 = vpop.permute.xlu0 %1539
        %1541 = vrot.lane.b32.xlu0 %v992, 64
        %v1542 = vpop.permute.xlu0 %1541
        %1543 = vrot.lane.b32.xlu0 %v995, 64
        %v1544 = vpop.permute.xlu0 %1543
        %v1550 = vsel %vm482, %v1323, 0
        %v1553 = vsel %vm482, %v1325, 0
        %v1556 = vsel %vm482, %v1327, 0
        %v1559 = vsel %vm482, %v1329, 0
        %1561 = vmatpush.msra.mxu0 0.0
        %1562 = vmatpush.msra.mxu0 0.0
        %1563 = vmatpush.msra.mxu0 0.0
        %1564 = vmatpush.msra.mxu0 0.0
        %1565 = vmatpush.msra.mxu0 0.0
        %1566 = vmatpush.msra.mxu0 0.0
        %1567 = vmatpush.msra.mxu0 0.0
        %1568 = vmatpush.msra.mxu0 0.0
        %1569 = vmatpush.msra.mxu0 0.0
        %1570 = vmatpush.msra.mxu0 0.0
        %1571 = vmatpush.msra.mxu0 0.0
        %1572 = vmatpush.msra.mxu0 0.0
        %1573 = vmatpush.msra.mxu0 %v1544
        %1574 = vmatpush.msra.mxu0 %v1542
        %1575 = vmatpush.msra.mxu0 %v1540
        %1576 = vmatpush.msra.mxu0 %v1538
        %1577 = vmatmul.f32.gmra.mxu0 %v1550
        %v1578 = vpop.f32.mrf.mxu0
        %v1579 = vadd.f32 0.0, %v1578
        %1580 = vmatmul.f32.gmra.mxu0 %v1553
        %v1581 = vpop.f32.mrf.mxu0
        %v1582 = vadd.f32 0.0, %v1581
        %1583 = vmatmul.f32.gmra.mxu0 %v1556
        %v1584 = vpop.f32.mrf.mxu0
        %v1585 = vadd.f32 0.0, %v1584
        %1586 = vmatmul.f32.gmra.mxu0 %v1559
        %v1587 = vpop.f32.mrf.mxu0
        %v1588 = vadd.f32 0.0, %v1587
        %1589 = vdwg.mxu0
        %v1590 = vrcp.pop %v1332
        %v1591 = vmul.f32 %v1332, %v1590
        %v1592 = vsub.f32 1.0, %v1591
        %v1593 = vmul.f32 %v1590, %v1592
        %v1594 = vadd.f32 %v1590, %v1593
        %vm1595 = vweird.f32 %v1332
        %vm1596 = vweird.f32 %v1590
        %vm1597 = vmor %vm1595, %vm1596
        %v1598 = vsel %vm1597, %v1590, %v1594
        %v1599 = vand.u32 2147483647, %v1332
        %vm1600 = vcmp.eq.f32.partialorder %v1599, 8.507059e+37
        %v1601 = vand.u32 %v1332, 2147483648
        %v1602 = vor.u32 1.1754944e-38, %v1601
        %v1603 = vsel %vm1600, %v1602, %v1598
        %v1604 = vmul.f32 %v1420, %v1603
        %v1605 = vrcp.pop %v1335
        %v1606 = vmul.f32 %v1335, %v1605
        %v1607 = vsub.f32 1.0, %v1606
        %v1608 = vmul.f32 %v1605, %v1607
        %v1609 = vadd.f32 %v1605, %v1608
        %vm1610 = vweird.f32 %v1335
        %vm1611 = vweird.f32 %v1605
        %vm1612 = vmor %vm1610, %vm1611
        %v1613 = vsel %vm1612, %v1605, %v1609
        %v1614 = vand.u32 2147483647, %v1335
        %vm1615 = vcmp.eq.f32.partialorder %v1614, 8.507059e+37
        %v1616 = vand.u32 %v1335, 2147483648
        %v1617 = vor.u32 1.1754944e-38, %v1616
        %v1618 = vsel %vm1615, %v1617, %v1613
        %v1619 = vmul.f32 %v1423, %v1618
        %v1620 = vrcp.pop %v1338
        %v1621 = vmul.f32 %v1338, %v1620
        %v1622 = vsub.f32 1.0, %v1621
        %v1623 = vmul.f32 %v1620, %v1622
        %v1624 = vadd.f32 %v1620, %v1623
        %vm1625 = vweird.f32 %v1338
        %vm1626 = vweird.f32 %v1620
        %vm1627 = vmor %vm1625, %vm1626
        %v1628 = vsel %vm1627, %v1620, %v1624
        %v1629 = vand.u32 2147483647, %v1338
        %vm1630 = vcmp.eq.f32.partialorder %v1629, 8.507059e+37
        %v1631 = vand.u32 %v1338, 2147483648
        %v1632 = vor.u32 1.1754944e-38, %v1631
        %v1633 = vsel %vm1630, %v1632, %v1628
        %v1634 = vmul.f32 %v1426, %v1633
        %v1635 = vrcp.pop %v1341
        %v1636 = vmul.f32 %v1341, %v1635
        %v1637 = vsub.f32 1.0, %v1636
        %v1638 = vmul.f32 %v1635, %v1637
        %v1639 = vadd.f32 %v1635, %v1638
        %vm1640 = vweird.f32 %v1341
        %vm1641 = vweird.f32 %v1635
        %vm1642 = vmor %vm1640, %vm1641
        %v1643 = vsel %vm1642, %v1635, %v1639
        %v1644 = vand.u32 2147483647, %v1341
        %vm1645 = vcmp.eq.f32.partialorder %v1644, 8.507059e+37
        %v1646 = vand.u32 %v1341, 2147483648
        %v1647 = vor.u32 1.1754944e-38, %v1646
        %v1648 = vsel %vm1645, %v1647, %v1643
        %v1649 = vmul.f32 %v1429, %v1648
        %v1650 = vrcp.pop %v1344
        %v1651 = vmul.f32 %v1344, %v1650
        %v1652 = vsub.f32 1.0, %v1651
        %v1653 = vmul.f32 %v1650, %v1652
        %v1654 = vadd.f32 %v1650, %v1653
        %vm1655 = vweird.f32 %v1344
        %vm1656 = vweird.f32 %v1650
        %vm1657 = vmor %vm1655, %vm1656
        %v1658 = vsel %vm1657, %v1650, %v1654
        %v1659 = vand.u32 2147483647, %v1344
        %vm1660 = vcmp.eq.f32.partialorder %v1659, 8.507059e+37
        %v1661 = vand.u32 %v1344, 2147483648
        %v1662 = vor.u32 1.1754944e-38, %v1661
        %v1663 = vsel %vm1660, %v1662, %v1658
        %v1664 = vmul.f32 %v1473, %v1663
        %v1665 = vrcp.pop %v1347
        %v1666 = vmul.f32 %v1347, %v1665
        %v1667 = vsub.f32 1.0, %v1666
        %v1668 = vmul.f32 %v1665, %v1667
        %v1669 = vadd.f32 %v1665, %v1668
        %vm1670 = vweird.f32 %v1347
        %vm1671 = vweird.f32 %v1665
        %vm1672 = vmor %vm1670, %vm1671
        %v1673 = vsel %vm1672, %v1665, %v1669
        %v1674 = vand.u32 2147483647, %v1347
        %vm1675 = vcmp.eq.f32.partialorder %v1674, 8.507059e+37
        %v1676 = vand.u32 %v1347, 2147483648
        %v1677 = vor.u32 1.1754944e-38, %v1676
        %v1678 = vsel %vm1675, %v1677, %v1673
        %v1679 = vmul.f32 %v1476, %v1678
        %v1680 = vrcp.pop %v1350
        %v1681 = vmul.f32 %v1350, %v1680
        %v1682 = vsub.f32 1.0, %v1681
        %v1683 = vmul.f32 %v1680, %v1682
        %v1684 = vadd.f32 %v1680, %v1683
        %vm1685 = vweird.f32 %v1350
        %vm1686 = vweird.f32 %v1680
        %vm1687 = vmor %vm1685, %vm1686
        %v1688 = vsel %vm1687, %v1680, %v1684
        %v1689 = vand.u32 2147483647, %v1350
        %vm1690 = vcmp.eq.f32.partialorder %v1689, 8.507059e+37
        %v1691 = vand.u32 %v1350, 2147483648
        %v1692 = vor.u32 1.1754944e-38, %v1691
        %v1693 = vsel %vm1690, %v1692, %v1688
        %v1694 = vmul.f32 %v1479, %v1693
        %v1695 = vrcp.pop %v1353
        %v1696 = vmul.f32 %v1353, %v1695
        %v1697 = vsub.f32 1.0, %v1696
        %v1698 = vmul.f32 %v1695, %v1697
        %v1699 = vadd.f32 %v1695, %v1698
        %vm1700 = vweird.f32 %v1353
        %vm1701 = vweird.f32 %v1695
        %vm1702 = vmor %vm1700, %vm1701
        %v1703 = vsel %vm1702, %v1695, %v1699
        %v1704 = vand.u32 2147483647, %v1353
        %vm1705 = vcmp.eq.f32.partialorder %v1704, 8.507059e+37
        %v1706 = vand.u32 %v1353, 2147483648
        %v1707 = vor.u32 1.1754944e-38, %v1706
        %v1708 = vsel %vm1705, %v1707, %v1703
        %v1709 = vmul.f32 %v1482, %v1708
        %v1710 = vrcp.pop %v1356
        %v1711 = vmul.f32 %v1356, %v1710
        %v1712 = vsub.f32 1.0, %v1711
        %v1713 = vmul.f32 %v1710, %v1712
        %v1714 = vadd.f32 %v1710, %v1713
        %vm1715 = vweird.f32 %v1356
        %vm1716 = vweird.f32 %v1710
        %vm1717 = vmor %vm1715, %vm1716
        %v1718 = vsel %vm1717, %v1710, %v1714
        %v1719 = vand.u32 2147483647, %v1356
        %vm1720 = vcmp.eq.f32.partialorder %v1719, 8.507059e+37
        %v1721 = vand.u32 %v1356, 2147483648
        %v1722 = vor.u32 1.1754944e-38, %v1721
        %v1723 = vsel %vm1720, %v1722, %v1718
        %v1724 = vmul.f32 %v1526, %v1723
        %v1725 = vrcp.pop %v1359
        %v1726 = vmul.f32 %v1359, %v1725
        %v1727 = vsub.f32 1.0, %v1726
        %v1728 = vmul.f32 %v1725, %v1727
        %v1729 = vadd.f32 %v1725, %v1728
        %vm1730 = vweird.f32 %v1359
        %vm1731 = vweird.f32 %v1725
        %vm1732 = vmor %vm1730, %vm1731
        %v1733 = vsel %vm1732, %v1725, %v1729
        %v1734 = vand.u32 2147483647, %v1359
        %vm1735 = vcmp.eq.f32.partialorder %v1734, 8.507059e+37
        %v1736 = vand.u32 %v1359, 2147483648
        %v1737 = vor.u32 1.1754944e-38, %v1736
        %v1738 = vsel %vm1735, %v1737, %v1733
        %v1739 = vmul.f32 %v1529, %v1738
        %v1740 = vrcp.pop %v1362
        %v1741 = vmul.f32 %v1362, %v1740
        %v1742 = vsub.f32 1.0, %v1741
        %v1743 = vmul.f32 %v1740, %v1742
        %v1744 = vadd.f32 %v1740, %v1743
        %vm1745 = vweird.f32 %v1362
        %vm1746 = vweird.f32 %v1740
        %vm1747 = vmor %vm1745, %vm1746
        %v1748 = vsel %vm1747, %v1740, %v1744
        %v1749 = vand.u32 2147483647, %v1362
        %vm1750 = vcmp.eq.f32.partialorder %v1749, 8.507059e+37
        %v1751 = vand.u32 %v1362, 2147483648
        %v1752 = vor.u32 1.1754944e-38, %v1751
        %v1753 = vsel %vm1750, %v1752, %v1748
        %v1754 = vmul.f32 %v1532, %v1753
        %v1755 = vrcp.pop %v1365
        %v1756 = vmul.f32 %v1365, %v1755
        %v1757 = vsub.f32 1.0, %v1756
        %v1758 = vmul.f32 %v1755, %v1757
        %v1759 = vadd.f32 %v1755, %v1758
        %vm1760 = vweird.f32 %v1365
        %vm1761 = vweird.f32 %v1755
        %vm1762 = vmor %vm1760, %vm1761
        %v1763 = vsel %vm1762, %v1755, %v1759
        %v1764 = vand.u32 2147483647, %v1365
        %vm1765 = vcmp.eq.f32.partialorder %v1764, 8.507059e+37
        %v1766 = vand.u32 %v1365, 2147483648
        %v1767 = vor.u32 1.1754944e-38, %v1766
        %v1768 = vsel %vm1765, %v1767, %v1763
        %v1769 = vmul.f32 %v1535, %v1768
        %v1770 = vrcp.pop %v1368
        %v1771 = vmul.f32 %v1368, %v1770
        %v1772 = vsub.f32 1.0, %v1771
        %v1773 = vmul.f32 %v1770, %v1772
        %v1774 = vadd.f32 %v1770, %v1773
        %vm1775 = vweird.f32 %v1368
        %vm1776 = vweird.f32 %v1770
        %vm1777 = vmor %vm1775, %vm1776
        %v1778 = vsel %vm1777, %v1770, %v1774
        %v1779 = vand.u32 2147483647, %v1368
        %vm1780 = vcmp.eq.f32.partialorder %v1779, 8.507059e+37
        %v1781 = vand.u32 %v1368, 2147483648
        %v1782 = vor.u32 1.1754944e-38, %v1781
        %v1783 = vsel %vm1780, %v1782, %v1778
        %v1784 = vmul.f32 %v1579, %v1783
        %v1785 = vrcp.pop %v1371
        %v1786 = vmul.f32 %v1371, %v1785
        %v1787 = vsub.f32 1.0, %v1786
        %v1788 = vmul.f32 %v1785, %v1787
        %v1789 = vadd.f32 %v1785, %v1788
        %vm1790 = vweird.f32 %v1371
        %vm1791 = vweird.f32 %v1785
        %vm1792 = vmor %vm1790, %vm1791
        %v1793 = vsel %vm1792, %v1785, %v1789
        %v1794 = vand.u32 2147483647, %v1371
        %vm1795 = vcmp.eq.f32.partialorder %v1794, 8.507059e+37
        %v1796 = vand.u32 %v1371, 2147483648
        %v1797 = vor.u32 1.1754944e-38, %v1796
        %v1798 = vsel %vm1795, %v1797, %v1793
        %v1799 = vmul.f32 %v1582, %v1798
        %v1800 = vrcp.pop %v1374
        %v1801 = vmul.f32 %v1374, %v1800
        %v1802 = vsub.f32 1.0, %v1801
        %v1803 = vmul.f32 %v1800, %v1802
        %v1804 = vadd.f32 %v1800, %v1803
        %vm1805 = vweird.f32 %v1374
        %vm1806 = vweird.f32 %v1800
        %vm1807 = vmor %vm1805, %vm1806
        %v1808 = vsel %vm1807, %v1800, %v1804
        %v1809 = vand.u32 2147483647, %v1374
        %vm1810 = vcmp.eq.f32.partialorder %v1809, 8.507059e+37
        %v1811 = vand.u32 %v1374, 2147483648
        %v1812 = vor.u32 1.1754944e-38, %v1811
        %v1813 = vsel %vm1810, %v1812, %v1808
        %v1814 = vmul.f32 %v1585, %v1813
        %v1815 = vrcp.pop %v1377
        %v1816 = vmul.f32 %v1377, %v1815
        %v1817 = vsub.f32 1.0, %v1816
        %v1818 = vmul.f32 %v1815, %v1817
        %v1819 = vadd.f32 %v1815, %v1818
        %vm1820 = vweird.f32 %v1377
        %vm1821 = vweird.f32 %v1815
        %vm1822 = vmor %vm1820, %vm1821
        %v1823 = vsel %vm1822, %v1815, %v1819
        %v1824 = vand.u32 2147483647, %v1377
        %vm1825 = vcmp.eq.f32.partialorder %v1824, 8.507059e+37
        %v1826 = vand.u32 %v1377, 2147483648
        %v1827 = vor.u32 1.1754944e-38, %v1826
        %v1828 = vsel %vm1825, %v1827, %v1823
        %v1829 = vmul.f32 %v1588, %v1828
        %1830 = vrot.lane.b32.xlu0 %v950, 120
        %v1831 = vpop.permute.xlu0 %1830
        %1832 = vrot.lane.b32.xlu0 %v953, 120
        %v1833 = vpop.permute.xlu0 %1832
        %1834 = vrot.lane.b32.xlu0 %v956, 120
        %v1835 = vpop.permute.xlu0 %1834
        %1836 = vrot.lane.b32.xlu0 %v959, 120
        %v1837 = vpop.permute.xlu0 %1836
        %1838 = vrot.lane.b32.xlu0 %v950, 88
        %v1839 = vpop.permute.xlu0 %1838
        %1840 = vrot.lane.b32.xlu0 %v953, 88
        %v1841 = vpop.permute.xlu0 %1840
        %1842 = vrot.lane.b32.xlu0 %v956, 88
        %v1843 = vpop.permute.xlu0 %1842
        %1844 = vrot.lane.b32.xlu0 %v959, 88
        %v1845 = vpop.permute.xlu0 %1844
        %v1846 = vsel %vm1017, %v1831, 0
        %v1848 = vsel %vm1017, %v1833, 0
        %v1850 = vsel %vm1017, %v1835, 0
        %v1852 = vsel %vm1017, %v1837, 0
        %v1854 = vsel %vm1017, %v1839, 0
        %v1856 = vsel %vm1017, %v1841, 0
        %v1858 = vsel %vm1017, %v1843, 0
        %v1860 = vsel %vm1017, %v1845, 0
        %1862 = vmatpush.xpose.msra.mxu0 0.0
        %1863 = vmatpush.xpose.msra.mxu0 0.0
        %1864 = vmatpush.xpose.msra.mxu0 0.0
        %1865 = vmatpush.xpose.msra.mxu0 0.0
        %1866 = vmatpush.xpose.msra.mxu0 0.0
        %1867 = vmatpush.xpose.msra.mxu0 0.0
        %1868 = vmatpush.xpose.msra.mxu0 0.0
        %1869 = vmatpush.xpose.msra.mxu0 0.0
        %1870 = vmatpush.xpose.msra.mxu0 0.0
        %1871 = vmatpush.xpose.msra.mxu0 0.0
        %1872 = vmatpush.xpose.msra.mxu0 0.0
        %1873 = vmatpush.xpose.msra.mxu0 0.0
        %1874 = vmatpush.xpose.msra.mxu0 %v1860
        %1875 = vmatpush.xpose.msra.mxu0 %v1858
        %1876 = vmatpush.xpose.msra.mxu0 %v1856
        %1877 = vmatpush.xpose.msra.mxu0 %v1854
        %1878 = vmatmul.f32.gmra.mxu0 %v1846
        %v1879 = vpop.f32.mrf.mxu0
        %v1880 = vadd.f32 %v997, %v1879
        %1881 = vmatmul.f32.gmra.mxu0 %v1848
        %v1882 = vpop.f32.mrf.mxu0
        %v1883 = vadd.f32 %v998, %v1882
        %1884 = vmatmul.f32.gmra.mxu0 %v1850
        %v1885 = vpop.f32.mrf.mxu0
        %v1886 = vadd.f32 %v999, %v1885
        %1887 = vmatmul.f32.gmra.mxu0 %v1852
        %v1888 = vpop.f32.mrf.mxu0
        %v1889 = vadd.f32 %v1000, %v1888
        %1890 = vdwg.mxu0
        %1891 = vrot.lane.b32.xlu0 %v962, 120
        %v1892 = vpop.permute.xlu0 %1891
        %1893 = vrot.lane.b32.xlu0 %v965, 120
        %v1894 = vpop.permute.xlu0 %1893
        %1895 = vrot.lane.b32.xlu0 %v968, 120
        %v1896 = vpop.permute.xlu0 %1895
        %1897 = vrot.lane.b32.xlu0 %v971, 120
        %v1898 = vpop.permute.xlu0 %1897
        %1899 = vrot.lane.b32.xlu0 %v962, 88
        %v1900 = vpop.permute.xlu0 %1899
        %1901 = vrot.lane.b32.xlu0 %v965, 88
        %v1902 = vpop.permute.xlu0 %1901
        %1903 = vrot.lane.b32.xlu0 %v968, 88
        %v1904 = vpop.permute.xlu0 %1903
        %1905 = vrot.lane.b32.xlu0 %v971, 88
        %v1906 = vpop.permute.xlu0 %1905
        %v1907 = vsel %vm1017, %v1892, 0
        %v1909 = vsel %vm1017, %v1894, 0
        %v1911 = vsel %vm1017, %v1896, 0
        %v1913 = vsel %vm1017, %v1898, 0
        %v1915 = vsel %vm1017, %v1900, 0
        %v1917 = vsel %vm1017, %v1902, 0
        %v1919 = vsel %vm1017, %v1904, 0
        %v1921 = vsel %vm1017, %v1906, 0
        %1923 = vmatpush.xpose.msra.mxu0 0.0
        %1924 = vmatpush.xpose.msra.mxu0 0.0
        %1925 = vmatpush.xpose.msra.mxu0 0.0
        %1926 = vmatpush.xpose.msra.mxu0 0.0
        %1927 = vmatpush.xpose.msra.mxu0 0.0
        %1928 = vmatpush.xpose.msra.mxu0 0.0
        %1929 = vmatpush.xpose.msra.mxu0 0.0
        %1930 = vmatpush.xpose.msra.mxu0 0.0
        %1931 = vmatpush.xpose.msra.mxu0 0.0
        %1932 = vmatpush.xpose.msra.mxu0 0.0
        %1933 = vmatpush.xpose.msra.mxu0 0.0
        %1934 = vmatpush.xpose.msra.mxu0 0.0
        %1935 = vmatpush.xpose.msra.mxu0 %v1921
        %1936 = vmatpush.xpose.msra.mxu0 %v1919
        %1937 = vmatpush.xpose.msra.mxu0 %v1917
        %1938 = vmatpush.xpose.msra.mxu0 %v1915
        %1939 = vmatmul.f32.gmra.mxu0 %v1907
        %v1940 = vpop.f32.mrf.mxu0
        %v1941 = vadd.f32 %v997, %v1940
        %1942 = vmatmul.f32.gmra.mxu0 %v1909
        %v1943 = vpop.f32.mrf.mxu0
        %v1944 = vadd.f32 %v998, %v1943
        %1945 = vmatmul.f32.gmra.mxu0 %v1911
        %v1946 = vpop.f32.mrf.mxu0
        %v1947 = vadd.f32 %v999, %v1946
        %1948 = vmatmul.f32.gmra.mxu0 %v1913
        %v1949 = vpop.f32.mrf.mxu0
        %v1950 = vadd.f32 %v1000, %v1949
        %1951 = vdwg.mxu0
        %1952 = vrot.lane.b32.xlu0 %v974, 120
        %v1953 = vpop.permute.xlu0 %1952
        %1954 = vrot.lane.b32.xlu0 %v977, 120
        %v1955 = vpop.permute.xlu0 %1954
        %1956 = vrot.lane.b32.xlu0 %v980, 120
        %v1957 = vpop.permute.xlu0 %1956
        %1958 = vrot.lane.b32.xlu0 %v983, 120
        %v1959 = vpop.permute.xlu0 %1958
        %1960 = vrot.lane.b32.xlu0 %v974, 88
        %v1961 = vpop.permute.xlu0 %1960
        %1962 = vrot.lane.b32.xlu0 %v977, 88
        %v1963 = vpop.permute.xlu0 %1962
        %1964 = vrot.lane.b32.xlu0 %v980, 88
        %v1965 = vpop.permute.xlu0 %1964
        %1966 = vrot.lane.b32.xlu0 %v983, 88
        %v1967 = vpop.permute.xlu0 %1966
        %v1968 = vsel %vm1017, %v1953, 0
        %v1970 = vsel %vm1017, %v1955, 0
        %v1972 = vsel %vm1017, %v1957, 0
        %v1974 = vsel %vm1017, %v1959, 0
        %v1976 = vsel %vm1017, %v1961, 0
        %v1978 = vsel %vm1017, %v1963, 0
        %v1980 = vsel %vm1017, %v1965, 0
        %v1982 = vsel %vm1017, %v1967, 0
        %1984 = vmatpush.xpose.msra.mxu0 0.0
        %1985 = vmatpush.xpose.msra.mxu0 0.0
        %1986 = vmatpush.xpose.msra.mxu0 0.0
        %1987 = vmatpush.xpose.msra.mxu0 0.0
        %1988 = vmatpush.xpose.msra.mxu0 0.0
        %1989 = vmatpush.xpose.msra.mxu0 0.0
        %1990 = vmatpush.xpose.msra.mxu0 0.0
        %1991 = vmatpush.xpose.msra.mxu0 0.0
        %1992 = vmatpush.xpose.msra.mxu0 0.0
        %1993 = vmatpush.xpose.msra.mxu0 0.0
        %1994 = vmatpush.xpose.msra.mxu0 0.0
        %1995 = vmatpush.xpose.msra.mxu0 0.0
        %1996 = vmatpush.xpose.msra.mxu0 %v1982
        %1997 = vmatpush.xpose.msra.mxu0 %v1980
        %1998 = vmatpush.xpose.msra.mxu0 %v1978
        %1999 = vmatpush.xpose.msra.mxu0 %v1976
        %2000 = vmatmul.f32.gmra.mxu0 %v1968
        %v2001 = vpop.f32.mrf.mxu0
        %v2002 = vadd.f32 %v997, %v2001
        %2003 = vmatmul.f32.gmra.mxu0 %v1970
        %v2004 = vpop.f32.mrf.mxu0
        %v2005 = vadd.f32 %v998, %v2004
        %2006 = vmatmul.f32.gmra.mxu0 %v1972
        %v2007 = vpop.f32.mrf.mxu0
        %v2008 = vadd.f32 %v999, %v2007
        %2009 = vmatmul.f32.gmra.mxu0 %v1974
        %v2010 = vpop.f32.mrf.mxu0
        %v2011 = vadd.f32 %v1000, %v2010
        %2012 = vdwg.mxu0
        %2013 = vrot.lane.b32.xlu0 %v986, 120
        %v2014 = vpop.permute.xlu0 %2013
        %2015 = vrot.lane.b32.xlu0 %v989, 120
        %v2016 = vpop.permute.xlu0 %2015
        %2017 = vrot.lane.b32.xlu0 %v992, 120
        %v2018 = vpop.permute.xlu0 %2017
        %2019 = vrot.lane.b32.xlu0 %v995, 120
        %v2020 = vpop.permute.xlu0 %2019
        %2021 = vrot.lane.b32.xlu0 %v986, 88
        %v2022 = vpop.permute.xlu0 %2021
        %2023 = vrot.lane.b32.xlu0 %v989, 88
        %v2024 = vpop.permute.xlu0 %2023
        %2025 = vrot.lane.b32.xlu0 %v992, 88
        %v2026 = vpop.permute.xlu0 %2025
        %2027 = vrot.lane.b32.xlu0 %v995, 88
        %v2028 = vpop.permute.xlu0 %2027
        %v2029 = vsel %vm1017, %v2014, 0
        %v2031 = vsel %vm1017, %v2016, 0
        %v2033 = vsel %vm1017, %v2018, 0
        %v2035 = vsel %vm1017, %v2020, 0
        %v2037 = vsel %vm1017, %v2022, 0
        %v2039 = vsel %vm1017, %v2024, 0
        %v2041 = vsel %vm1017, %v2026, 0
        %v2043 = vsel %vm1017, %v2028, 0
        %2045 = vmatpush.xpose.msra.mxu0 0.0
        %2046 = vmatpush.xpose.msra.mxu0 0.0
        %2047 = vmatpush.xpose.msra.mxu0 0.0
        %2048 = vmatpush.xpose.msra.mxu0 0.0
        %2049 = vmatpush.xpose.msra.mxu0 0.0
        %2050 = vmatpush.xpose.msra.mxu0 0.0
        %2051 = vmatpush.xpose.msra.mxu0 0.0
        %2052 = vmatpush.xpose.msra.mxu0 0.0
        %2053 = vmatpush.xpose.msra.mxu0 0.0
        %2054 = vmatpush.xpose.msra.mxu0 0.0
        %2055 = vmatpush.xpose.msra.mxu0 0.0
        %2056 = vmatpush.xpose.msra.mxu0 0.0
        %2057 = vmatpush.xpose.msra.mxu0 %v2043
        %2058 = vmatpush.xpose.msra.mxu0 %v2041
        %2059 = vmatpush.xpose.msra.mxu0 %v2039
        %2060 = vmatpush.xpose.msra.mxu0 %v2037
        %2061 = vmatmul.f32.gmra.mxu0 %v2029
        %v2062 = vpop.f32.mrf.mxu0
        %v2063 = vadd.f32 %v997, %v2062
        %2064 = vmatmul.f32.gmra.mxu0 %v2031
        %v2065 = vpop.f32.mrf.mxu0
        %v2066 = vadd.f32 %v998, %v2065
        %2067 = vmatmul.f32.gmra.mxu0 %v2033
        %v2068 = vpop.f32.mrf.mxu0
        %v2069 = vadd.f32 %v999, %v2068
        %2070 = vmatmul.f32.gmra.mxu0 %v2035
        %v2071 = vpop.f32.mrf.mxu0
        %v2072 = vadd.f32 %v1000, %v2071
        %2073 = vdwg.mxu0
        %v2074 = vsel %vm482, %v1880, -inf
        %2075 = vmax.xlane.f32.xlu0 %v2074
        %v2076 = vpop.xlane.xlu0 %2075
        %v2077 = vsel %vm482, %v1883, -inf
        %2078 = vmax.xlane.f32.xlu0 %v2077
        %v2079 = vpop.xlane.xlu0 %2078
        %v2080 = vsel %vm482, %v1886, -inf
        %2081 = vmax.xlane.f32.xlu0 %v2080
        %v2082 = vpop.xlane.xlu0 %2081
        %v2083 = vsel %vm482, %v1889, -inf
        %2084 = vmax.xlane.f32.xlu0 %v2083
        %v2085 = vpop.xlane.xlu0 %2084
        %v2086 = vsel %vm482, %v1941, -inf
        %2087 = vmax.xlane.f32.xlu0 %v2086
        %v2088 = vpop.xlane.xlu0 %2087
        %v2089 = vsel %vm482, %v1944, -inf
        %2090 = vmax.xlane.f32.xlu0 %v2089
        %v2091 = vpop.xlane.xlu0 %2090
        %v2092 = vsel %vm482, %v1947, -inf
        %2093 = vmax.xlane.f32.xlu0 %v2092
        %v2094 = vpop.xlane.xlu0 %2093
        %v2095 = vsel %vm482, %v1950, -inf
        %2096 = vmax.xlane.f32.xlu0 %v2095
        %v2097 = vpop.xlane.xlu0 %2096
        %v2098 = vsel %vm482, %v2002, -inf
        %2099 = vmax.xlane.f32.xlu0 %v2098
        %v2100 = vpop.xlane.xlu0 %2099
        %v2101 = vsel %vm482, %v2005, -inf
        %2102 = vmax.xlane.f32.xlu0 %v2101
        %v2103 = vpop.xlane.xlu0 %2102
        %v2104 = vsel %vm482, %v2008, -inf
        %2105 = vmax.xlane.f32.xlu0 %v2104
        %v2106 = vpop.xlane.xlu0 %2105
        %v2107 = vsel %vm482, %v2011, -inf
        %2108 = vmax.xlane.f32.xlu0 %v2107
        %v2109 = vpop.xlane.xlu0 %2108
        %v2110 = vsel %vm482, %v2063, -inf
        %2111 = vmax.xlane.f32.xlu0 %v2110
        %v2112 = vpop.xlane.xlu0 %2111
        %v2113 = vsel %vm482, %v2066, -inf
        %2114 = vmax.xlane.f32.xlu0 %v2113
        %v2115 = vpop.xlane.xlu0 %2114
        %v2116 = vsel %vm482, %v2069, -inf
        %2117 = vmax.xlane.f32.xlu0 %v2116
        %v2118 = vpop.xlane.xlu0 %2117
        %v2119 = vsel %vm482, %v2072, -inf
        %2120 = vmax.xlane.f32.xlu0 %v2119
        %v2121 = vpop.xlane.xlu0 %2120
        %v2122 = vsub.f32 %v1880, %v2076
        %v2123 = vsub.f32 %v1883, %v2079
        %v2124 = vsub.f32 %v1886, %v2082
        %v2125 = vsub.f32 %v1889, %v2085
        %v2126 = vsub.f32 %v1941, %v2088
        %v2127 = vsub.f32 %v1944, %v2091
        %v2128 = vsub.f32 %v1947, %v2094
        %v2129 = vsub.f32 %v1950, %v2097
        %v2130 = vsub.f32 %v2002, %v2100
        %v2131 = vsub.f32 %v2005, %v2103
        %v2132 = vsub.f32 %v2008, %v2106
        %v2133 = vsub.f32 %v2011, %v2109
        %v2134 = vsub.f32 %v2063, %v2112
        %v2135 = vsub.f32 %v2066, %v2115
        %v2136 = vsub.f32 %v2069, %v2118
        %v2137 = vsub.f32 %v2072, %v2121
        %v2138 = vmul.f32 %v2122, 1.442695
        %v2139 = vpow.pop %v2138
        %v2140 = vmul.f32 %v2123, 1.442695
        %v2141 = vpow.pop %v2140
        %v2142 = vmul.f32 %v2124, 1.442695
        %v2143 = vpow.pop %v2142
        %v2144 = vmul.f32 %v2125, 1.442695
        %v2145 = vpow.pop %v2144
        %v2146 = vmul.f32 %v2126, 1.442695
        %v2147 = vpow.pop %v2146
        %v2148 = vmul.f32 %v2127, 1.442695
        %v2149 = vpow.pop %v2148
        %v2150 = vmul.f32 %v2128, 1.442695
        %v2151 = vpow.pop %v2150
        %v2152 = vmul.f32 %v2129, 1.442695
        %v2153 = vpow.pop %v2152
        %v2154 = vmul.f32 %v2130, 1.442695
        %v2155 = vpow.pop %v2154
        %v2156 = vmul.f32 %v2131, 1.442695
        %v2157 = vpow.pop %v2156
        %v2158 = vmul.f32 %v2132, 1.442695
        %v2159 = vpow.pop %v2158
        %v2160 = vmul.f32 %v2133, 1.442695
        %v2161 = vpow.pop %v2160
        %v2162 = vmul.f32 %v2134, 1.442695
        %v2163 = vpow.pop %v2162
        %v2164 = vmul.f32 %v2135, 1.442695
        %v2165 = vpow.pop %v2164
        %v2166 = vmul.f32 %v2136, 1.442695
        %v2167 = vpow.pop %v2166
        %v2168 = vmul.f32 %v2137, 1.442695
        %v2169 = vpow.pop %v2168
        %v2170 = vsel %vm482, %v2139, 0.0
        %2171 = vadd.xlane.f32.xlu0 %v2170
        %v2172 = vpop.xlane.xlu0 %2171
        %v2173 = vsel %vm482, %v2141, 0.0
        %2174 = vadd.xlane.f32.xlu0 %v2173
        %v2175 = vpop.xlane.xlu0 %2174
        %v2176 = vsel %vm482, %v2143, 0.0
        %2177 = vadd.xlane.f32.xlu0 %v2176
        %v2178 = vpop.xlane.xlu0 %2177
        %v2179 = vsel %vm482, %v2145, 0.0
        %2180 = vadd.xlane.f32.xlu0 %v2179
        %v2181 = vpop.xlane.xlu0 %2180
        %v2182 = vsel %vm482, %v2147, 0.0
        %2183 = vadd.xlane.f32.xlu0 %v2182
        %v2184 = vpop.xlane.xlu0 %2183
        %v2185 = vsel %vm482, %v2149, 0.0
        %2186 = vadd.xlane.f32.xlu0 %v2185
        %v2187 = vpop.xlane.xlu0 %2186
        %v2188 = vsel %vm482, %v2151, 0.0
        %2189 = vadd.xlane.f32.xlu0 %v2188
        %v2190 = vpop.xlane.xlu0 %2189
        %v2191 = vsel %vm482, %v2153, 0.0
        %2192 = vadd.xlane.f32.xlu0 %v2191
        %v2193 = vpop.xlane.xlu0 %2192
        %v2194 = vsel %vm482, %v2155, 0.0
        %2195 = vadd.xlane.f32.xlu0 %v2194
        %v2196 = vpop.xlane.xlu0 %2195
        %v2197 = vsel %vm482, %v2157, 0.0
        %2198 = vadd.xlane.f32.xlu0 %v2197
        %v2199 = vpop.xlane.xlu0 %2198
        %v2200 = vsel %vm482, %v2159, 0.0
        %2201 = vadd.xlane.f32.xlu0 %v2200
        %v2202 = vpop.xlane.xlu0 %2201
        %v2203 = vsel %vm482, %v2161, 0.0
        %2204 = vadd.xlane.f32.xlu0 %v2203
        %v2205 = vpop.xlane.xlu0 %2204
        %v2206 = vsel %vm482, %v2163, 0.0
        %2207 = vadd.xlane.f32.xlu0 %v2206
        %v2208 = vpop.xlane.xlu0 %2207
        %v2209 = vsel %vm482, %v2165, 0.0
        %2210 = vadd.xlane.f32.xlu0 %v2209
        %v2211 = vpop.xlane.xlu0 %2210
        %v2212 = vsel %vm482, %v2167, 0.0
        %2213 = vadd.xlane.f32.xlu0 %v2212
        %v2214 = vpop.xlane.xlu0 %2213
        %v2215 = vsel %vm482, %v2169, 0.0
        %2216 = vadd.xlane.f32.xlu0 %v2215
        %v2217 = vpop.xlane.xlu0 %2216
        %2218 = vrot.lane.b32.xlu0 %v950, 56
        %v2219 = vpop.permute.xlu0 %2218
        %2220 = vrot.lane.b32.xlu0 %v953, 56
        %v2221 = vpop.permute.xlu0 %2220
        %2222 = vrot.lane.b32.xlu0 %v956, 56
        %v2223 = vpop.permute.xlu0 %2222
        %2224 = vrot.lane.b32.xlu0 %v959, 56
        %v2225 = vpop.permute.xlu0 %2224
        %v2231 = vsel %vm482, %v2139, 0
        %v2234 = vsel %vm482, %v2141, 0
        %v2237 = vsel %vm482, %v2143, 0
        %v2240 = vsel %vm482, %v2145, 0
        %2242 = vmatpush.msra.mxu0 0.0
        %2243 = vmatpush.msra.mxu0 0.0
        %2244 = vmatpush.msra.mxu0 0.0
        %2245 = vmatpush.msra.mxu0 0.0
        %2246 = vmatpush.msra.mxu0 0.0
        %2247 = vmatpush.msra.mxu0 0.0
        %2248 = vmatpush.msra.mxu0 0.0
        %2249 = vmatpush.msra.mxu0 0.0
        %2250 = vmatpush.msra.mxu0 0.0
        %2251 = vmatpush.msra.mxu0 0.0
        %2252 = vmatpush.msra.mxu0 0.0
        %2253 = vmatpush.msra.mxu0 0.0
        %2254 = vmatpush.msra.mxu0 %v2225
        %2255 = vmatpush.msra.mxu0 %v2223
        %2256 = vmatpush.msra.mxu0 %v2221
        %2257 = vmatpush.msra.mxu0 %v2219
        %2258 = vmatmul.f32.gmra.mxu0 %v2231
        %v2259 = vpop.f32.mrf.mxu0
        %v2260 = vadd.f32 0.0, %v2259
        %2261 = vmatmul.f32.gmra.mxu0 %v2234
        %v2262 = vpop.f32.mrf.mxu0
        %v2263 = vadd.f32 0.0, %v2262
        %2264 = vmatmul.f32.gmra.mxu0 %v2237
        %v2265 = vpop.f32.mrf.mxu0
        %v2266 = vadd.f32 0.0, %v2265
        %2267 = vmatmul.f32.gmra.mxu0 %v2240
        %v2268 = vpop.f32.mrf.mxu0
        %v2269 = vadd.f32 0.0, %v2268
        %2270 = vdwg.mxu0
        %2271 = vrot.lane.b32.xlu0 %v962, 56
        %v2272 = vpop.permute.xlu0 %2271
        %2273 = vrot.lane.b32.xlu0 %v965, 56
        %v2274 = vpop.permute.xlu0 %2273
        %2275 = vrot.lane.b32.xlu0 %v968, 56
        %v2276 = vpop.permute.xlu0 %2275
        %2277 = vrot.lane.b32.xlu0 %v971, 56
        %v2278 = vpop.permute.xlu0 %2277
        %v2284 = vsel %vm482, %v2147, 0
        %v2287 = vsel %vm482, %v2149, 0
        %v2290 = vsel %vm482, %v2151, 0
        %v2293 = vsel %vm482, %v2153, 0
        %2295 = vmatpush.msra.mxu0 0.0
        %2296 = vmatpush.msra.mxu0 0.0
        %2297 = vmatpush.msra.mxu0 0.0
        %2298 = vmatpush.msra.mxu0 0.0
        %2299 = vmatpush.msra.mxu0 0.0
        %2300 = vmatpush.msra.mxu0 0.0
        %2301 = vmatpush.msra.mxu0 0.0
        %2302 = vmatpush.msra.mxu0 0.0
        %2303 = vmatpush.msra.mxu0 0.0
        %2304 = vmatpush.msra.mxu0 0.0
        %2305 = vmatpush.msra.mxu0 0.0
        %2306 = vmatpush.msra.mxu0 0.0
        %2307 = vmatpush.msra.mxu0 %v2278
        %2308 = vmatpush.msra.mxu0 %v2276
        %2309 = vmatpush.msra.mxu0 %v2274
        %2310 = vmatpush.msra.mxu0 %v2272
        %2311 = vmatmul.f32.gmra.mxu0 %v2284
        %v2312 = vpop.f32.mrf.mxu0
        %v2313 = vadd.f32 0.0, %v2312
        %2314 = vmatmul.f32.gmra.mxu0 %v2287
        %v2315 = vpop.f32.mrf.mxu0
        %v2316 = vadd.f32 0.0, %v2315
        %2317 = vmatmul.f32.gmra.mxu0 %v2290
        %v2318 = vpop.f32.mrf.mxu0
        %v2319 = vadd.f32 0.0, %v2318
        %2320 = vmatmul.f32.gmra.mxu0 %v2293
        %v2321 = vpop.f32.mrf.mxu0
        %v2322 = vadd.f32 0.0, %v2321
        %2323 = vdwg.mxu0
        %2324 = vrot.lane.b32.xlu0 %v974, 56
        %v2325 = vpop.permute.xlu0 %2324
        %2326 = vrot.lane.b32.xlu0 %v977, 56
        %v2327 = vpop.permute.xlu0 %2326
        %2328 = vrot.lane.b32.xlu0 %v980, 56
        %v2329 = vpop.permute.xlu0 %2328
        %2330 = vrot.lane.b32.xlu0 %v983, 56
        %v2331 = vpop.permute.xlu0 %2330
        %v2337 = vsel %vm482, %v2155, 0
        %v2340 = vsel %vm482, %v2157, 0
        %v2343 = vsel %vm482, %v2159, 0
        %v2346 = vsel %vm482, %v2161, 0
        %2348 = vmatpush.msra.mxu0 0.0
        %2349 = vmatpush.msra.mxu0 0.0
        %2350 = vmatpush.msra.mxu0 0.0
        %2351 = vmatpush.msra.mxu0 0.0
        %2352 = vmatpush.msra.mxu0 0.0
        %2353 = vmatpush.msra.mxu0 0.0
        %2354 = vmatpush.msra.mxu0 0.0
        %2355 = vmatpush.msra.mxu0 0.0
        %2356 = vmatpush.msra.mxu0 0.0
        %2357 = vmatpush.msra.mxu0 0.0
        %2358 = vmatpush.msra.mxu0 0.0
        %2359 = vmatpush.msra.mxu0 0.0
        %2360 = vmatpush.msra.mxu0 %v2331
        %2361 = vmatpush.msra.mxu0 %v2329
        %2362 = vmatpush.msra.mxu0 %v2327
        %2363 = vmatpush.msra.mxu0 %v2325
        %2364 = vmatmul.f32.gmra.mxu0 %v2337
        %v2365 = vpop.f32.mrf.mxu0
        %v2366 = vadd.f32 0.0, %v2365
        %2367 = vmatmul.f32.gmra.mxu0 %v2340
        %v2368 = vpop.f32.mrf.mxu0
        %v2369 = vadd.f32 0.0, %v2368
        %2370 = vmatmul.f32.gmra.mxu0 %v2343
        %v2371 = vpop.f32.mrf.mxu0
        %v2372 = vadd.f32 0.0, %v2371
        %2373 = vmatmul.f32.gmra.mxu0 %v2346
        %v2374 = vpop.f32.mrf.mxu0
        %v2375 = vadd.f32 0.0, %v2374
        %2376 = vdwg.mxu0
        %2377 = vrot.lane.b32.xlu0 %v986, 56
        %v2378 = vpop.permute.xlu0 %2377
        %2379 = vrot.lane.b32.xlu0 %v989, 56
        %v2380 = vpop.permute.xlu0 %2379
        %2381 = vrot.lane.b32.xlu0 %v992, 56
        %v2382 = vpop.permute.xlu0 %2381
        %2383 = vrot.lane.b32.xlu0 %v995, 56
        %v2384 = vpop.permute.xlu0 %2383
        %v2390 = vsel %vm482, %v2163, 0
        %v2393 = vsel %vm482, %v2165, 0
        %v2396 = vsel %vm482, %v2167, 0
        %v2399 = vsel %vm482, %v2169, 0
        %2401 = vmatpush.msra.mxu0 0.0
        %2402 = vmatpush.msra.mxu0 0.0
        %2403 = vmatpush.msra.mxu0 0.0
        %2404 = vmatpush.msra.mxu0 0.0
        %2405 = vmatpush.msra.mxu0 0.0
        %2406 = vmatpush.msra.mxu0 0.0
        %2407 = vmatpush.msra.mxu0 0.0
        %2408 = vmatpush.msra.mxu0 0.0
        %2409 = vmatpush.msra.mxu0 0.0
        %2410 = vmatpush.msra.mxu0 0.0
        %2411 = vmatpush.msra.mxu0 0.0
        %2412 = vmatpush.msra.mxu0 0.0
        %2413 = vmatpush.msra.mxu0 %v2384
        %2414 = vmatpush.msra.mxu0 %v2382
        %2415 = vmatpush.msra.mxu0 %v2380
        %2416 = vmatpush.msra.mxu0 %v2378
        %2417 = vmatmul.f32.gmra.mxu0 %v2390
        %v2418 = vpop.f32.mrf.mxu0
        %v2419 = vadd.f32 0.0, %v2418
        %2420 = vmatmul.f32.gmra.mxu0 %v2393
        %v2421 = vpop.f32.mrf.mxu0
        %v2422 = vadd.f32 0.0, %v2421
        %2423 = vmatmul.f32.gmra.mxu0 %v2396
        %v2424 = vpop.f32.mrf.mxu0
        %v2425 = vadd.f32 0.0, %v2424
        %2426 = vmatmul.f32.gmra.mxu0 %v2399
        %v2427 = vpop.f32.mrf.mxu0
        %v2428 = vadd.f32 0.0, %v2427
        %2429 = vdwg.mxu0
        %v2430 = vrcp.pop %v2172
        %v2431 = vmul.f32 %v2172, %v2430
        %v2432 = vsub.f32 1.0, %v2431
        %v2433 = vmul.f32 %v2430, %v2432
        %v2434 = vadd.f32 %v2430, %v2433
        %vm2435 = vweird.f32 %v2172
        %vm2436 = vweird.f32 %v2430
        %vm2437 = vmor %vm2435, %vm2436
        %v2438 = vsel %vm2437, %v2430, %v2434
        %v2439 = vand.u32 2147483647, %v2172
        %vm2440 = vcmp.eq.f32.partialorder %v2439, 8.507059e+37
        %v2441 = vand.u32 %v2172, 2147483648
        %v2442 = vor.u32 1.1754944e-38, %v2441
        %v2443 = vsel %vm2440, %v2442, %v2438
        %v2444 = vmul.f32 %v2260, %v2443
        %v2445 = vrcp.pop %v2175
        %v2446 = vmul.f32 %v2175, %v2445
        %v2447 = vsub.f32 1.0, %v2446
        %v2448 = vmul.f32 %v2445, %v2447
        %v2449 = vadd.f32 %v2445, %v2448
        %vm2450 = vweird.f32 %v2175
        %vm2451 = vweird.f32 %v2445
        %vm2452 = vmor %vm2450, %vm2451
        %v2453 = vsel %vm2452, %v2445, %v2449
        %v2454 = vand.u32 2147483647, %v2175
        %vm2455 = vcmp.eq.f32.partialorder %v2454, 8.507059e+37
        %v2456 = vand.u32 %v2175, 2147483648
        %v2457 = vor.u32 1.1754944e-38, %v2456
        %v2458 = vsel %vm2455, %v2457, %v2453
        %v2459 = vmul.f32 %v2263, %v2458
        %v2460 = vrcp.pop %v2178
        %v2461 = vmul.f32 %v2178, %v2460
        %v2462 = vsub.f32 1.0, %v2461
        %v2463 = vmul.f32 %v2460, %v2462
        %v2464 = vadd.f32 %v2460, %v2463
        %vm2465 = vweird.f32 %v2178
        %vm2466 = vweird.f32 %v2460
        %vm2467 = vmor %vm2465, %vm2466
        %v2468 = vsel %vm2467, %v2460, %v2464
        %v2469 = vand.u32 2147483647, %v2178
        %vm2470 = vcmp.eq.f32.partialorder %v2469, 8.507059e+37
        %v2471 = vand.u32 %v2178, 2147483648
        %v2472 = vor.u32 1.1754944e-38, %v2471
        %v2473 = vsel %vm2470, %v2472, %v2468
        %v2474 = vmul.f32 %v2266, %v2473
        %v2475 = vrcp.pop %v2181
        %v2476 = vmul.f32 %v2181, %v2475
        %v2477 = vsub.f32 1.0, %v2476
        %v2478 = vmul.f32 %v2475, %v2477
        %v2479 = vadd.f32 %v2475, %v2478
        %vm2480 = vweird.f32 %v2181
        %vm2481 = vweird.f32 %v2475
        %vm2482 = vmor %vm2480, %vm2481
        %v2483 = vsel %vm2482, %v2475, %v2479
        %v2484 = vand.u32 2147483647, %v2181
        %vm2485 = vcmp.eq.f32.partialorder %v2484, 8.507059e+37
        %v2486 = vand.u32 %v2181, 2147483648
        %v2487 = vor.u32 1.1754944e-38, %v2486
        %v2488 = vsel %vm2485, %v2487, %v2483
        %v2489 = vmul.f32 %v2269, %v2488
        %v2490 = vrcp.pop %v2184
        %v2491 = vmul.f32 %v2184, %v2490
        %v2492 = vsub.f32 1.0, %v2491
        %v2493 = vmul.f32 %v2490, %v2492
        %v2494 = vadd.f32 %v2490, %v2493
        %vm2495 = vweird.f32 %v2184
        %vm2496 = vweird.f32 %v2490
        %vm2497 = vmor %vm2495, %vm2496
        %v2498 = vsel %vm2497, %v2490, %v2494
        %v2499 = vand.u32 2147483647, %v2184
        %vm2500 = vcmp.eq.f32.partialorder %v2499, 8.507059e+37
        %v2501 = vand.u32 %v2184, 2147483648
        %v2502 = vor.u32 1.1754944e-38, %v2501
        %v2503 = vsel %vm2500, %v2502, %v2498
        %v2504 = vmul.f32 %v2313, %v2503
        %v2505 = vrcp.pop %v2187
        %v2506 = vmul.f32 %v2187, %v2505
        %v2507 = vsub.f32 1.0, %v2506
        %v2508 = vmul.f32 %v2505, %v2507
        %v2509 = vadd.f32 %v2505, %v2508
        %vm2510 = vweird.f32 %v2187
        %vm2511 = vweird.f32 %v2505
        %vm2512 = vmor %vm2510, %vm2511
        %v2513 = vsel %vm2512, %v2505, %v2509
        %v2514 = vand.u32 2147483647, %v2187
        %vm2515 = vcmp.eq.f32.partialorder %v2514, 8.507059e+37
        %v2516 = vand.u32 %v2187, 2147483648
        %v2517 = vor.u32 1.1754944e-38, %v2516
        %v2518 = vsel %vm2515, %v2517, %v2513
        %v2519 = vmul.f32 %v2316, %v2518
        %v2520 = vrcp.pop %v2190
        %v2521 = vmul.f32 %v2190, %v2520
        %v2522 = vsub.f32 1.0, %v2521
        %v2523 = vmul.f32 %v2520, %v2522
        %v2524 = vadd.f32 %v2520, %v2523
        %vm2525 = vweird.f32 %v2190
        %vm2526 = vweird.f32 %v2520
        %vm2527 = vmor %vm2525, %vm2526
        %v2528 = vsel %vm2527, %v2520, %v2524
        %v2529 = vand.u32 2147483647, %v2190
        %vm2530 = vcmp.eq.f32.partialorder %v2529, 8.507059e+37
        %v2531 = vand.u32 %v2190, 2147483648
        %v2532 = vor.u32 1.1754944e-38, %v2531
        %v2533 = vsel %vm2530, %v2532, %v2528
        %v2534 = vmul.f32 %v2319, %v2533
        %v2535 = vrcp.pop %v2193
        %v2536 = vmul.f32 %v2193, %v2535
        %v2537 = vsub.f32 1.0, %v2536
        %v2538 = vmul.f32 %v2535, %v2537
        %v2539 = vadd.f32 %v2535, %v2538
        %vm2540 = vweird.f32 %v2193
        %vm2541 = vweird.f32 %v2535
        %vm2542 = vmor %vm2540, %vm2541
        %v2543 = vsel %vm2542, %v2535, %v2539
        %v2544 = vand.u32 2147483647, %v2193
        %vm2545 = vcmp.eq.f32.partialorder %v2544, 8.507059e+37
        %v2546 = vand.u32 %v2193, 2147483648
        %v2547 = vor.u32 1.1754944e-38, %v2546
        %v2548 = vsel %vm2545, %v2547, %v2543
        %v2549 = vmul.f32 %v2322, %v2548
        %v2550 = vrcp.pop %v2196
        %v2551 = vmul.f32 %v2196, %v2550
        %v2552 = vsub.f32 1.0, %v2551
        %v2553 = vmul.f32 %v2550, %v2552
        %v2554 = vadd.f32 %v2550, %v2553
        %vm2555 = vweird.f32 %v2196
        %vm2556 = vweird.f32 %v2550
        %vm2557 = vmor %vm2555, %vm2556
        %v2558 = vsel %vm2557, %v2550, %v2554
        %v2559 = vand.u32 2147483647, %v2196
        %vm2560 = vcmp.eq.f32.partialorder %v2559, 8.507059e+37
        %v2561 = vand.u32 %v2196, 2147483648
        %v2562 = vor.u32 1.1754944e-38, %v2561
        %v2563 = vsel %vm2560, %v2562, %v2558
        %v2564 = vmul.f32 %v2366, %v2563
        %v2565 = vrcp.pop %v2199
        %v2566 = vmul.f32 %v2199, %v2565
        %v2567 = vsub.f32 1.0, %v2566
        %v2568 = vmul.f32 %v2565, %v2567
        %v2569 = vadd.f32 %v2565, %v2568
        %vm2570 = vweird.f32 %v2199
        %vm2571 = vweird.f32 %v2565
        %vm2572 = vmor %vm2570, %vm2571
        %v2573 = vsel %vm2572, %v2565, %v2569
        %v2574 = vand.u32 2147483647, %v2199
        %vm2575 = vcmp.eq.f32.partialorder %v2574, 8.507059e+37
        %v2576 = vand.u32 %v2199, 2147483648
        %v2577 = vor.u32 1.1754944e-38, %v2576
        %v2578 = vsel %vm2575, %v2577, %v2573
        %v2579 = vmul.f32 %v2369, %v2578
        %v2580 = vrcp.pop %v2202
        %v2581 = vmul.f32 %v2202, %v2580
        %v2582 = vsub.f32 1.0, %v2581
        %v2583 = vmul.f32 %v2580, %v2582
        %v2584 = vadd.f32 %v2580, %v2583
        %vm2585 = vweird.f32 %v2202
        %vm2586 = vweird.f32 %v2580
        %vm2587 = vmor %vm2585, %vm2586
        %v2588 = vsel %vm2587, %v2580, %v2584
        %v2589 = vand.u32 2147483647, %v2202
        %vm2590 = vcmp.eq.f32.partialorder %v2589, 8.507059e+37
        %v2591 = vand.u32 %v2202, 2147483648
        %v2592 = vor.u32 1.1754944e-38, %v2591
        %v2593 = vsel %vm2590, %v2592, %v2588
        %v2594 = vmul.f32 %v2372, %v2593
        %v2595 = vrcp.pop %v2205
        %v2596 = vmul.f32 %v2205, %v2595
        %v2597 = vsub.f32 1.0, %v2596
        %v2598 = vmul.f32 %v2595, %v2597
        %v2599 = vadd.f32 %v2595, %v2598
        %vm2600 = vweird.f32 %v2205
        %vm2601 = vweird.f32 %v2595
        %vm2602 = vmor %vm2600, %vm2601
        %v2603 = vsel %vm2602, %v2595, %v2599
        %v2604 = vand.u32 2147483647, %v2205
        %vm2605 = vcmp.eq.f32.partialorder %v2604, 8.507059e+37
        %v2606 = vand.u32 %v2205, 2147483648
        %v2607 = vor.u32 1.1754944e-38, %v2606
        %v2608 = vsel %vm2605, %v2607, %v2603
        %v2609 = vmul.f32 %v2375, %v2608
        %v2610 = vrcp.pop %v2208
        %v2611 = vmul.f32 %v2208, %v2610
        %v2612 = vsub.f32 1.0, %v2611
        %v2613 = vmul.f32 %v2610, %v2612
        %v2614 = vadd.f32 %v2610, %v2613
        %vm2615 = vweird.f32 %v2208
        %vm2616 = vweird.f32 %v2610
        %vm2617 = vmor %vm2615, %vm2616
        %v2618 = vsel %vm2617, %v2610, %v2614
        %v2619 = vand.u32 2147483647, %v2208
        %vm2620 = vcmp.eq.f32.partialorder %v2619, 8.507059e+37
        %v2621 = vand.u32 %v2208, 2147483648
        %v2622 = vor.u32 1.1754944e-38, %v2621
        %v2623 = vsel %vm2620, %v2622, %v2618
        %v2624 = vmul.f32 %v2419, %v2623
        %v2625 = vrcp.pop %v2211
        %v2626 = vmul.f32 %v2211, %v2625
        %v2627 = vsub.f32 1.0, %v2626
        %v2628 = vmul.f32 %v2625, %v2627
        %v2629 = vadd.f32 %v2625, %v2628
        %vm2630 = vweird.f32 %v2211
        %vm2631 = vweird.f32 %v2625
        %vm2632 = vmor %vm2630, %vm2631
        %v2633 = vsel %vm2632, %v2625, %v2629
        %v2634 = vand.u32 2147483647, %v2211
        %vm2635 = vcmp.eq.f32.partialorder %v2634, 8.507059e+37
        %v2636 = vand.u32 %v2211, 2147483648
        %v2637 = vor.u32 1.1754944e-38, %v2636
        %v2638 = vsel %vm2635, %v2637, %v2633
        %v2639 = vmul.f32 %v2422, %v2638
        %v2640 = vrcp.pop %v2214
        %v2641 = vmul.f32 %v2214, %v2640
        %v2642 = vsub.f32 1.0, %v2641
        %v2643 = vmul.f32 %v2640, %v2642
        %v2644 = vadd.f32 %v2640, %v2643
        %vm2645 = vweird.f32 %v2214
        %vm2646 = vweird.f32 %v2640
        %vm2647 = vmor %vm2645, %vm2646
        %v2648 = vsel %vm2647, %v2640, %v2644
        %v2649 = vand.u32 2147483647, %v2214
        %vm2650 = vcmp.eq.f32.partialorder %v2649, 8.507059e+37
        %v2651 = vand.u32 %v2214, 2147483648
        %v2652 = vor.u32 1.1754944e-38, %v2651
        %v2653 = vsel %vm2650, %v2652, %v2648
        %v2654 = vmul.f32 %v2425, %v2653
        %v2655 = vrcp.pop %v2217
        %v2656 = vmul.f32 %v2217, %v2655
        %v2657 = vsub.f32 1.0, %v2656
        %v2658 = vmul.f32 %v2655, %v2657
        %v2659 = vadd.f32 %v2655, %v2658
        %vm2660 = vweird.f32 %v2217
        %vm2661 = vweird.f32 %v2655
        %vm2662 = vmor %vm2660, %vm2661
        %v2663 = vsel %vm2662, %v2655, %v2659
        %v2664 = vand.u32 2147483647, %v2217
        %vm2665 = vcmp.eq.f32.partialorder %v2664, 8.507059e+37
        %v2666 = vand.u32 %v2217, 2147483648
        %v2667 = vor.u32 1.1754944e-38, %v2666
        %v2668 = vsel %vm2665, %v2667, %v2663
        %v2669 = vmul.f32 %v2428, %v2668
        %v2671 = vsel %vm1017, %v2444, 0
        %v2674 = vsel %vm1017, %v2459, 0
        %v2677 = vsel %vm1017, %v2474, 0
        %v2680 = vsel %vm1017, %v2489, 0
        %v2683 = vsel %vm1017, %v2504, 0
        %v2686 = vsel %vm1017, %v2519, 0
        %v2689 = vsel %vm1017, %v2534, 0
        %v2692 = vsel %vm1017, %v2549, 0
        %v2695 = vsel %vm1017, %v2564, 0
        %v2698 = vsel %vm1017, %v2579, 0
        %v2701 = vsel %vm1017, %v2594, 0
        %v2704 = vsel %vm1017, %v2609, 0
        %v2707 = vsel %vm1017, %v2624, 0
        %v2710 = vsel %vm1017, %v2639, 0
        %v2713 = vsel %vm1017, %v2654, 0
        %v2716 = vsel %vm1017, %v2669, 0
        %2718 = vmatpush.msra.mxu0 0.0
        %2719 = vmatpush.msra.mxu0 0.0
        %2720 = vmatpush.msra.mxu0 0.0
        %2721 = vmatpush.msra.mxu0 0.0
        %2722 = vmatpush.msra.mxu0 0.0
        %2723 = vmatpush.msra.mxu0 0.0
        %2724 = vmatpush.msra.mxu0 0.0
        %2725 = vmatpush.msra.mxu0 0.0
        %2726 = vmatpush.msra.mxu0 0.0
        %2727 = vmatpush.msra.mxu0 0.0
        %2728 = vmatpush.msra.mxu0 0.0
        %2729 = vmatpush.msra.mxu0 0.0
        %2730 = vmatpush.msra.mxu0 0.0
        %2731 = vmatpush.msra.mxu0 0.0
        %2732 = vmatpush.msra.mxu0 0.0
        %2733 = vmatpush.msra.mxu0 %v1002
        %2734 = vmatmul.f32.gmra.mxu0 %v2671
        %v2735 = vpop.f32.mrf.mxu0
        %v2736 = vadd.f32 0.0, %v2735
        %2737 = vmatmul.f32.gmra.mxu0 %v2674
        %v2738 = vpop.f32.mrf.mxu0
        %v2739 = vadd.f32 0.0, %v2738
        %2740 = vmatmul.f32.gmra.mxu0 %v2677
        %v2741 = vpop.f32.mrf.mxu0
        %v2742 = vadd.f32 0.0, %v2741
        %2743 = vmatmul.f32.gmra.mxu0 %v2680
        %v2744 = vpop.f32.mrf.mxu0
        %v2745 = vadd.f32 0.0, %v2744
        %2746 = vmatmul.f32.gmra.mxu0 %v2683
        %v2747 = vpop.f32.mrf.mxu0
        %v2748 = vadd.f32 0.0, %v2747
        %2749 = vmatmul.f32.gmra.mxu0 %v2686
        %v2750 = vpop.f32.mrf.mxu0
        %v2751 = vadd.f32 0.0, %v2750
        %2752 = vmatmul.f32.gmra.mxu0 %v2689
        %v2753 = vpop.f32.mrf.mxu0
        %v2754 = vadd.f32 0.0, %v2753
        %2755 = vmatmul.f32.gmra.mxu0 %v2692
        %v2756 = vpop.f32.mrf.mxu0
        %v2757 = vadd.f32 0.0, %v2756
        %2758 = vmatmul.f32.gmra.mxu0 %v2695
        %v2759 = vpop.f32.mrf.mxu0
        %v2760 = vadd.f32 0.0, %v2759
        %2761 = vmatmul.f32.gmra.mxu0 %v2698
        %v2762 = vpop.f32.mrf.mxu0
        %v2763 = vadd.f32 0.0, %v2762
        %2764 = vmatmul.f32.gmra.mxu0 %v2701
        %v2765 = vpop.f32.mrf.mxu0
        %v2766 = vadd.f32 0.0, %v2765
        %2767 = vmatmul.f32.gmra.mxu0 %v2704
        %v2768 = vpop.f32.mrf.mxu0
        %v2769 = vadd.f32 0.0, %v2768
        %2770 = vmatmul.f32.gmra.mxu0 %v2707
        %v2771 = vpop.f32.mrf.mxu0
        %v2772 = vadd.f32 0.0, %v2771
        %2773 = vmatmul.f32.gmra.mxu0 %v2710
        %v2774 = vpop.f32.mrf.mxu0
        %v2775 = vadd.f32 0.0, %v2774
        %2776 = vmatmul.f32.gmra.mxu0 %v2713
        %v2777 = vpop.f32.mrf.mxu0
        %v2778 = vadd.f32 0.0, %v2777
        %2779 = vmatmul.f32.gmra.mxu0 %v2716
        %v2780 = vpop.f32.mrf.mxu0
        %v2781 = vadd.f32 0.0, %v2780
        %2782 = vdwg.mxu0
        %v2784 = vsel %vm1017, %v1604, 0
        %v2787 = vsel %vm1017, %v1619, 0
        %v2790 = vsel %vm1017, %v1634, 0
        %v2793 = vsel %vm1017, %v1649, 0
        %v2796 = vsel %vm1017, %v1664, 0
        %v2799 = vsel %vm1017, %v1679, 0
        %v2802 = vsel %vm1017, %v1694, 0
        %v2805 = vsel %vm1017, %v1709, 0
        %v2808 = vsel %vm1017, %v1724, 0
        %v2811 = vsel %vm1017, %v1739, 0
        %v2814 = vsel %vm1017, %v1754, 0
        %v2817 = vsel %vm1017, %v1769, 0
        %v2820 = vsel %vm1017, %v1784, 0
        %v2823 = vsel %vm1017, %v1799, 0
        %v2826 = vsel %vm1017, %v1814, 0
        %v2829 = vsel %vm1017, %v1829, 0
        %2831 = vmatpush.msra.mxu0 0.0
        %2832 = vmatpush.msra.mxu0 0.0
        %2833 = vmatpush.msra.mxu0 0.0
        %2834 = vmatpush.msra.mxu0 0.0
        %2835 = vmatpush.msra.mxu0 0.0
        %2836 = vmatpush.msra.mxu0 0.0
        %2837 = vmatpush.msra.mxu0 0.0
        %2838 = vmatpush.msra.mxu0 0.0
        %2839 = vmatpush.msra.mxu0 0.0
        %2840 = vmatpush.msra.mxu0 0.0
        %2841 = vmatpush.msra.mxu0 0.0
        %2842 = vmatpush.msra.mxu0 0.0
        %2843 = vmatpush.msra.mxu0 0.0
        %2844 = vmatpush.msra.mxu0 0.0
        %2845 = vmatpush.msra.mxu0 0.0
        %2846 = vmatpush.msra.mxu0 %v1001
        %2847 = vmatmul.f32.gmra.mxu0 %v2784
        %v2848 = vpop.f32.mrf.mxu0
        %v2849 = vadd.f32 %v2736, %v2848
        %2850 = vmatmul.f32.gmra.mxu0 %v2787
        %v2851 = vpop.f32.mrf.mxu0
        %v2852 = vadd.f32 %v2739, %v2851
        %2853 = vmatmul.f32.gmra.mxu0 %v2790
        %v2854 = vpop.f32.mrf.mxu0
        %v2855 = vadd.f32 %v2742, %v2854
        %2856 = vmatmul.f32.gmra.mxu0 %v2793
        %v2857 = vpop.f32.mrf.mxu0
        %v2858 = vadd.f32 %v2745, %v2857
        %2859 = vmatmul.f32.gmra.mxu0 %v2796
        %v2860 = vpop.f32.mrf.mxu0
        %v2861 = vadd.f32 %v2748, %v2860
        %2862 = vmatmul.f32.gmra.mxu0 %v2799
        %v2863 = vpop.f32.mrf.mxu0
        %v2864 = vadd.f32 %v2751, %v2863
        %2865 = vmatmul.f32.gmra.mxu0 %v2802
        %v2866 = vpop.f32.mrf.mxu0
        %v2867 = vadd.f32 %v2754, %v2866
        %2868 = vmatmul.f32.gmra.mxu0 %v2805
        %v2869 = vpop.f32.mrf.mxu0
        %v2870 = vadd.f32 %v2757, %v2869
        %2871 = vmatmul.f32.gmra.mxu0 %v2808
        %v2872 = vpop.f32.mrf.mxu0
        %v2873 = vadd.f32 %v2760, %v2872
        %2874 = vmatmul.f32.gmra.mxu0 %v2811
        %v2875 = vpop.f32.mrf.mxu0
        %v2876 = vadd.f32 %v2763, %v2875
        %2877 = vmatmul.f32.gmra.mxu0 %v2814
        %v2878 = vpop.f32.mrf.mxu0
        %v2879 = vadd.f32 %v2766, %v2878
        %2880 = vmatmul.f32.gmra.mxu0 %v2817
        %v2881 = vpop.f32.mrf.mxu0
        %v2882 = vadd.f32 %v2769, %v2881
        %2883 = vmatmul.f32.gmra.mxu0 %v2820
        %v2884 = vpop.f32.mrf.mxu0
        %v2885 = vadd.f32 %v2772, %v2884
        %2886 = vmatmul.f32.gmra.mxu0 %v2823
        %v2887 = vpop.f32.mrf.mxu0
        %v2888 = vadd.f32 %v2775, %v2887
        %2889 = vmatmul.f32.gmra.mxu0 %v2826
        %v2890 = vpop.f32.mrf.mxu0
        %v2891 = vadd.f32 %v2778, %v2890
        %2892 = vmatmul.f32.gmra.mxu0 %v2829
        %v2893 = vpop.f32.mrf.mxu0
        %v2894 = vadd.f32 %v2781, %v2893
        %2895 = vdwg.mxu0
        %2896 = vrot.lane.b32.xlu0 %v950, 112
        %v2897 = vpop.permute.xlu0 %2896
        %2898 = vrot.lane.b32.xlu0 %v953, 112
        %v2899 = vpop.permute.xlu0 %2898
        %2900 = vrot.lane.b32.xlu0 %v956, 112
        %v2901 = vpop.permute.xlu0 %2900
        %2902 = vrot.lane.b32.xlu0 %v959, 112
        %v2903 = vpop.permute.xlu0 %2902
        %2904 = vrot.lane.b32.xlu0 %v950, 80
        %v2905 = vpop.permute.xlu0 %2904
        %2906 = vrot.lane.b32.xlu0 %v953, 80
        %v2907 = vpop.permute.xlu0 %2906
        %2908 = vrot.lane.b32.xlu0 %v956, 80
        %v2909 = vpop.permute.xlu0 %2908
        %2910 = vrot.lane.b32.xlu0 %v959, 80
        %v2911 = vpop.permute.xlu0 %2910
        %v2912 = vsel %vm1017, %v2897, 0
        %v2914 = vsel %vm1017, %v2899, 0
        %v2916 = vsel %vm1017, %v2901, 0
        %v2918 = vsel %vm1017, %v2903, 0
        %v2920 = vsel %vm1017, %v2905, 0
        %v2922 = vsel %vm1017, %v2907, 0
        %v2924 = vsel %vm1017, %v2909, 0
        %v2926 = vsel %vm1017, %v2911, 0
        %2928 = vmatpush.xpose.msra.mxu0 0.0
        %2929 = vmatpush.xpose.msra.mxu0 0.0
        %2930 = vmatpush.xpose.msra.mxu0 0.0
        %2931 = vmatpush.xpose.msra.mxu0 0.0
        %2932 = vmatpush.xpose.msra.mxu0 0.0
        %2933 = vmatpush.xpose.msra.mxu0 0.0
        %2934 = vmatpush.xpose.msra.mxu0 0.0
        %2935 = vmatpush.xpose.msra.mxu0 0.0
        %2936 = vmatpush.xpose.msra.mxu0 0.0
        %2937 = vmatpush.xpose.msra.mxu0 0.0
        %2938 = vmatpush.xpose.msra.mxu0 0.0
        %2939 = vmatpush.xpose.msra.mxu0 0.0
        %2940 = vmatpush.xpose.msra.mxu0 %v2926
        %2941 = vmatpush.xpose.msra.mxu0 %v2924
        %2942 = vmatpush.xpose.msra.mxu0 %v2922
        %2943 = vmatpush.xpose.msra.mxu0 %v2920
        %2944 = vmatmul.f32.gmra.mxu0 %v2912
        %v2945 = vpop.f32.mrf.mxu0
        %v2946 = vadd.f32 %v997, %v2945
        %2947 = vmatmul.f32.gmra.mxu0 %v2914
        %v2948 = vpop.f32.mrf.mxu0
        %v2949 = vadd.f32 %v998, %v2948
        %2950 = vmatmul.f32.gmra.mxu0 %v2916
        %v2951 = vpop.f32.mrf.mxu0
        %v2952 = vadd.f32 %v999, %v2951
        %2953 = vmatmul.f32.gmra.mxu0 %v2918
        %v2954 = vpop.f32.mrf.mxu0
        %v2955 = vadd.f32 %v1000, %v2954
        %2956 = vdwg.mxu0
        %2957 = vrot.lane.b32.xlu0 %v962, 112
        %v2958 = vpop.permute.xlu0 %2957
        %2959 = vrot.lane.b32.xlu0 %v965, 112
        %v2960 = vpop.permute.xlu0 %2959
        %2961 = vrot.lane.b32.xlu0 %v968, 112
        %v2962 = vpop.permute.xlu0 %2961
        %2963 = vrot.lane.b32.xlu0 %v971, 112
        %v2964 = vpop.permute.xlu0 %2963
        %2965 = vrot.lane.b32.xlu0 %v962, 80
        %v2966 = vpop.permute.xlu0 %2965
        %2967 = vrot.lane.b32.xlu0 %v965, 80
        %v2968 = vpop.permute.xlu0 %2967
        %2969 = vrot.lane.b32.xlu0 %v968, 80
        %v2970 = vpop.permute.xlu0 %2969
        %2971 = vrot.lane.b32.xlu0 %v971, 80
        %v2972 = vpop.permute.xlu0 %2971
        %v2973 = vsel %vm1017, %v2958, 0
        %v2975 = vsel %vm1017, %v2960, 0
        %v2977 = vsel %vm1017, %v2962, 0
        %v2979 = vsel %vm1017, %v2964, 0
        %v2981 = vsel %vm1017, %v2966, 0
        %v2983 = vsel %vm1017, %v2968, 0
        %v2985 = vsel %vm1017, %v2970, 0
        %v2987 = vsel %vm1017, %v2972, 0
        %2989 = vmatpush.xpose.msra.mxu0 0.0
        %2990 = vmatpush.xpose.msra.mxu0 0.0
        %2991 = vmatpush.xpose.msra.mxu0 0.0
        %2992 = vmatpush.xpose.msra.mxu0 0.0
        %2993 = vmatpush.xpose.msra.mxu0 0.0
        %2994 = vmatpush.xpose.msra.mxu0 0.0
        %2995 = vmatpush.xpose.msra.mxu0 0.0
        %2996 = vmatpush.xpose.msra.mxu0 0.0
        %2997 = vmatpush.xpose.msra.mxu0 0.0
        %2998 = vmatpush.xpose.msra.mxu0 0.0
        %2999 = vmatpush.xpose.msra.mxu0 0.0
        %3000 = vmatpush.xpose.msra.mxu0 0.0
        %3001 = vmatpush.xpose.msra.mxu0 %v2987
        %3002 = vmatpush.xpose.msra.mxu0 %v2985
        %3003 = vmatpush.xpose.msra.mxu0 %v2983
        %3004 = vmatpush.xpose.msra.mxu0 %v2981
        %3005 = vmatmul.f32.gmra.mxu0 %v2973
        %v3006 = vpop.f32.mrf.mxu0
        %v3007 = vadd.f32 %v997, %v3006
        %3008 = vmatmul.f32.gmra.mxu0 %v2975
        %v3009 = vpop.f32.mrf.mxu0
        %v3010 = vadd.f32 %v998, %v3009
        %3011 = vmatmul.f32.gmra.mxu0 %v2977
        %v3012 = vpop.f32.mrf.mxu0
        %v3013 = vadd.f32 %v999, %v3012
        %3014 = vmatmul.f32.gmra.mxu0 %v2979
        %v3015 = vpop.f32.mrf.mxu0
        %v3016 = vadd.f32 %v1000, %v3015
        %3017 = vdwg.mxu0
        %3018 = vrot.lane.b32.xlu0 %v974, 112
        %v3019 = vpop.permute.xlu0 %3018
        %3020 = vrot.lane.b32.xlu0 %v977, 112
        %v3021 = vpop.permute.xlu0 %3020
        %3022 = vrot.lane.b32.xlu0 %v980, 112
        %v3023 = vpop.permute.xlu0 %3022
        %3024 = vrot.lane.b32.xlu0 %v983, 112
        %v3025 = vpop.permute.xlu0 %3024
        %3026 = vrot.lane.b32.xlu0 %v974, 80
        %v3027 = vpop.permute.xlu0 %3026
        %3028 = vrot.lane.b32.xlu0 %v977, 80
        %v3029 = vpop.permute.xlu0 %3028
        %3030 = vrot.lane.b32.xlu0 %v980, 80
        %v3031 = vpop.permute.xlu0 %3030
        %3032 = vrot.lane.b32.xlu0 %v983, 80
        %v3033 = vpop.permute.xlu0 %3032
        %v3034 = vsel %vm1017, %v3019, 0
        %v3036 = vsel %vm1017, %v3021, 0
        %v3038 = vsel %vm1017, %v3023, 0
        %v3040 = vsel %vm1017, %v3025, 0
        %v3042 = vsel %vm1017, %v3027, 0
        %v3044 = vsel %vm1017, %v3029, 0
        %v3046 = vsel %vm1017, %v3031, 0
        %v3048 = vsel %vm1017, %v3033, 0
        %3050 = vmatpush.xpose.msra.mxu0 0.0
        %3051 = vmatpush.xpose.msra.mxu0 0.0
        %3052 = vmatpush.xpose.msra.mxu0 0.0
        %3053 = vmatpush.xpose.msra.mxu0 0.0
        %3054 = vmatpush.xpose.msra.mxu0 0.0
        %3055 = vmatpush.xpose.msra.mxu0 0.0
        %3056 = vmatpush.xpose.msra.mxu0 0.0
        %3057 = vmatpush.xpose.msra.mxu0 0.0
        %3058 = vmatpush.xpose.msra.mxu0 0.0
        %3059 = vmatpush.xpose.msra.mxu0 0.0
        %3060 = vmatpush.xpose.msra.mxu0 0.0
        %3061 = vmatpush.xpose.msra.mxu0 0.0
        %3062 = vmatpush.xpose.msra.mxu0 %v3048
        %3063 = vmatpush.xpose.msra.mxu0 %v3046
        %3064 = vmatpush.xpose.msra.mxu0 %v3044
        %3065 = vmatpush.xpose.msra.mxu0 %v3042
        %3066 = vmatmul.f32.gmra.mxu0 %v3034
        %v3067 = vpop.f32.mrf.mxu0
        %v3068 = vadd.f32 %v997, %v3067
        %3069 = vmatmul.f32.gmra.mxu0 %v3036
        %v3070 = vpop.f32.mrf.mxu0
        %v3071 = vadd.f32 %v998, %v3070
        %3072 = vmatmul.f32.gmra.mxu0 %v3038
        %v3073 = vpop.f32.mrf.mxu0
        %v3074 = vadd.f32 %v999, %v3073
        %3075 = vmatmul.f32.gmra.mxu0 %v3040
        %v3076 = vpop.f32.mrf.mxu0
        %v3077 = vadd.f32 %v1000, %v3076
        %3078 = vdwg.mxu0
        %3079 = vrot.lane.b32.xlu0 %v986, 112
        %v3080 = vpop.permute.xlu0 %3079
        %3081 = vrot.lane.b32.xlu0 %v989, 112
        %v3082 = vpop.permute.xlu0 %3081
        %3083 = vrot.lane.b32.xlu0 %v992, 112
        %v3084 = vpop.permute.xlu0 %3083
        %3085 = vrot.lane.b32.xlu0 %v995, 112
        %v3086 = vpop.permute.xlu0 %3085
        %3087 = vrot.lane.b32.xlu0 %v986, 80
        %v3088 = vpop.permute.xlu0 %3087
        %3089 = vrot.lane.b32.xlu0 %v989, 80
        %v3090 = vpop.permute.xlu0 %3089
        %3091 = vrot.lane.b32.xlu0 %v992, 80
        %v3092 = vpop.permute.xlu0 %3091
        %3093 = vrot.lane.b32.xlu0 %v995, 80
        %v3094 = vpop.permute.xlu0 %3093
        %v3095 = vsel %vm1017, %v3080, 0
        %v3097 = vsel %vm1017, %v3082, 0
        %v3099 = vsel %vm1017, %v3084, 0
        %v3101 = vsel %vm1017, %v3086, 0
        %v3103 = vsel %vm1017, %v3088, 0
        %v3105 = vsel %vm1017, %v3090, 0
        %v3107 = vsel %vm1017, %v3092, 0
        %v3109 = vsel %vm1017, %v3094, 0
        %3111 = vmatpush.xpose.msra.mxu0 0.0
        %3112 = vmatpush.xpose.msra.mxu0 0.0
        %3113 = vmatpush.xpose.msra.mxu0 0.0
        %3114 = vmatpush.xpose.msra.mxu0 0.0
        %3115 = vmatpush.xpose.msra.mxu0 0.0
        %3116 = vmatpush.xpose.msra.mxu0 0.0
        %3117 = vmatpush.xpose.msra.mxu0 0.0
        %3118 = vmatpush.xpose.msra.mxu0 0.0
        %3119 = vmatpush.xpose.msra.mxu0 0.0
        %3120 = vmatpush.xpose.msra.mxu0 0.0
        %3121 = vmatpush.xpose.msra.mxu0 0.0
        %3122 = vmatpush.xpose.msra.mxu0 0.0
        %3123 = vmatpush.xpose.msra.mxu0 %v3109
        %3124 = vmatpush.xpose.msra.mxu0 %v3107
        %3125 = vmatpush.xpose.msra.mxu0 %v3105
        %3126 = vmatpush.xpose.msra.mxu0 %v3103
        %3127 = vmatmul.f32.gmra.mxu0 %v3095
        %v3128 = vpop.f32.mrf.mxu0
        %v3129 = vadd.f32 %v997, %v3128
        %3130 = vmatmul.f32.gmra.mxu0 %v3097
        %v3131 = vpop.f32.mrf.mxu0
        %v3132 = vadd.f32 %v998, %v3131
        %3133 = vmatmul.f32.gmra.mxu0 %v3099
        %v3134 = vpop.f32.mrf.mxu0
        %v3135 = vadd.f32 %v999, %v3134
        %3136 = vmatmul.f32.gmra.mxu0 %v3101
        %v3137 = vpop.f32.mrf.mxu0
        %v3138 = vadd.f32 %v1000, %v3137
        %3139 = vdwg.mxu0
        %v3140 = vsel %vm482, %v2946, -inf
        %3141 = vmax.xlane.f32.xlu0 %v3140
        %v3142 = vpop.xlane.xlu0 %3141
        %v3143 = vsel %vm482, %v2949, -inf
        %3144 = vmax.xlane.f32.xlu0 %v3143
        %v3145 = vpop.xlane.xlu0 %3144
        %v3146 = vsel %vm482, %v2952, -inf
        %3147 = vmax.xlane.f32.xlu0 %v3146
        %v3148 = vpop.xlane.xlu0 %3147
        %v3149 = vsel %vm482, %v2955, -inf
        %3150 = vmax.xlane.f32.xlu0 %v3149
        %v3151 = vpop.xlane.xlu0 %3150
        %v3152 = vsel %vm482, %v3007, -inf
        %3153 = vmax.xlane.f32.xlu0 %v3152
        %v3154 = vpop.xlane.xlu0 %3153
        %v3155 = vsel %vm482, %v3010, -inf
        %3156 = vmax.xlane.f32.xlu0 %v3155
        %v3157 = vpop.xlane.xlu0 %3156
        %v3158 = vsel %vm482, %v3013, -inf
        %3159 = vmax.xlane.f32.xlu0 %v3158
        %v3160 = vpop.xlane.xlu0 %3159
        %v3161 = vsel %vm482, %v3016, -inf
        %3162 = vmax.xlane.f32.xlu0 %v3161
        %v3163 = vpop.xlane.xlu0 %3162
        %v3164 = vsel %vm482, %v3068, -inf
        %3165 = vmax.xlane.f32.xlu0 %v3164
        %v3166 = vpop.xlane.xlu0 %3165
        %v3167 = vsel %vm482, %v3071, -inf
        %3168 = vmax.xlane.f32.xlu0 %v3167
        %v3169 = vpop.xlane.xlu0 %3168
        %v3170 = vsel %vm482, %v3074, -inf
        %3171 = vmax.xlane.f32.xlu0 %v3170
        %v3172 = vpop.xlane.xlu0 %3171
        %v3173 = vsel %vm482, %v3077, -inf
        %3174 = vmax.xlane.f32.xlu0 %v3173
        %v3175 = vpop.xlane.xlu0 %3174
        %v3176 = vsel %vm482, %v3129, -inf
        %3177 = vmax.xlane.f32.xlu0 %v3176
        %v3178 = vpop.xlane.xlu0 %3177
        %v3179 = vsel %vm482, %v3132, -inf
        %3180 = vmax.xlane.f32.xlu0 %v3179
        %v3181 = vpop.xlane.xlu0 %3180
        %v3182 = vsel %vm482, %v3135, -inf
        %3183 = vmax.xlane.f32.xlu0 %v3182
        %v3184 = vpop.xlane.xlu0 %3183
        %v3185 = vsel %vm482, %v3138, -inf
        %3186 = vmax.xlane.f32.xlu0 %v3185
        %v3187 = vpop.xlane.xlu0 %3186
        %v3188 = vsub.f32 %v2946, %v3142
        %v3189 = vsub.f32 %v2949, %v3145
        %v3190 = vsub.f32 %v2952, %v3148
        %v3191 = vsub.f32 %v2955, %v3151
        %v3192 = vsub.f32 %v3007, %v3154
        %v3193 = vsub.f32 %v3010, %v3157
        %v3194 = vsub.f32 %v3013, %v3160
        %v3195 = vsub.f32 %v3016, %v3163
        %v3196 = vsub.f32 %v3068, %v3166
        %v3197 = vsub.f32 %v3071, %v3169
        %v3198 = vsub.f32 %v3074, %v3172
        %v3199 = vsub.f32 %v3077, %v3175
        %v3200 = vsub.f32 %v3129, %v3178
        %v3201 = vsub.f32 %v3132, %v3181
        %v3202 = vsub.f32 %v3135, %v3184
        %v3203 = vsub.f32 %v3138, %v3187
        %v3204 = vmul.f32 %v3188, 1.442695
        %v3205 = vpow.pop %v3204
        %v3206 = vmul.f32 %v3189, 1.442695
        %v3207 = vpow.pop %v3206
        %v3208 = vmul.f32 %v3190, 1.442695
        %v3209 = vpow.pop %v3208
        %v3210 = vmul.f32 %v3191, 1.442695
        %v3211 = vpow.pop %v3210
        %v3212 = vmul.f32 %v3192, 1.442695
        %v3213 = vpow.pop %v3212
        %v3214 = vmul.f32 %v3193, 1.442695
        %v3215 = vpow.pop %v3214
        %v3216 = vmul.f32 %v3194, 1.442695
        %v3217 = vpow.pop %v3216
        %v3218 = vmul.f32 %v3195, 1.442695
        %v3219 = vpow.pop %v3218
        %v3220 = vmul.f32 %v3196, 1.442695
        %v3221 = vpow.pop %v3220
        %v3222 = vmul.f32 %v3197, 1.442695
        %v3223 = vpow.pop %v3222
        %v3224 = vmul.f32 %v3198, 1.442695
        %v3225 = vpow.pop %v3224
        %v3226 = vmul.f32 %v3199, 1.442695
        %v3227 = vpow.pop %v3226
        %v3228 = vmul.f32 %v3200, 1.442695
        %v3229 = vpow.pop %v3228
        %v3230 = vmul.f32 %v3201, 1.442695
        %v3231 = vpow.pop %v3230
        %v3232 = vmul.f32 %v3202, 1.442695
        %v3233 = vpow.pop %v3232
        %v3234 = vmul.f32 %v3203, 1.442695
        %v3235 = vpow.pop %v3234
        %v3236 = vsel %vm482, %v3205, 0.0
        %3237 = vadd.xlane.f32.xlu0 %v3236
        %v3238 = vpop.xlane.xlu0 %3237
        %v3239 = vsel %vm482, %v3207, 0.0
        %3240 = vadd.xlane.f32.xlu0 %v3239
        %v3241 = vpop.xlane.xlu0 %3240
        %v3242 = vsel %vm482, %v3209, 0.0
        %3243 = vadd.xlane.f32.xlu0 %v3242
        %v3244 = vpop.xlane.xlu0 %3243
        %v3245 = vsel %vm482, %v3211, 0.0
        %3246 = vadd.xlane.f32.xlu0 %v3245
        %v3247 = vpop.xlane.xlu0 %3246
        %v3248 = vsel %vm482, %v3213, 0.0
        %3249 = vadd.xlane.f32.xlu0 %v3248
        %v3250 = vpop.xlane.xlu0 %3249
        %v3251 = vsel %vm482, %v3215, 0.0
        %3252 = vadd.xlane.f32.xlu0 %v3251
        %v3253 = vpop.xlane.xlu0 %3252
        %v3254 = vsel %vm482, %v3217, 0.0
        %3255 = vadd.xlane.f32.xlu0 %v3254
        %v3256 = vpop.xlane.xlu0 %3255
        %v3257 = vsel %vm482, %v3219, 0.0
        %3258 = vadd.xlane.f32.xlu0 %v3257
        %v3259 = vpop.xlane.xlu0 %3258
        %v3260 = vsel %vm482, %v3221, 0.0
        %3261 = vadd.xlane.f32.xlu0 %v3260
        %v3262 = vpop.xlane.xlu0 %3261
        %v3263 = vsel %vm482, %v3223, 0.0
        %3264 = vadd.xlane.f32.xlu0 %v3263
        %v3265 = vpop.xlane.xlu0 %3264
        %v3266 = vsel %vm482, %v3225, 0.0
        %3267 = vadd.xlane.f32.xlu0 %v3266
        %v3268 = vpop.xlane.xlu0 %3267
        %v3269 = vsel %vm482, %v3227, 0.0
        %3270 = vadd.xlane.f32.xlu0 %v3269
        %v3271 = vpop.xlane.xlu0 %3270
        %v3272 = vsel %vm482, %v3229, 0.0
        %3273 = vadd.xlane.f32.xlu0 %v3272
        %v3274 = vpop.xlane.xlu0 %3273
        %v3275 = vsel %vm482, %v3231, 0.0
        %3276 = vadd.xlane.f32.xlu0 %v3275
        %v3277 = vpop.xlane.xlu0 %3276
        %v3278 = vsel %vm482, %v3233, 0.0
        %3279 = vadd.xlane.f32.xlu0 %v3278
        %v3280 = vpop.xlane.xlu0 %3279
        %v3281 = vsel %vm482, %v3235, 0.0
        %3282 = vadd.xlane.f32.xlu0 %v3281
        %v3283 = vpop.xlane.xlu0 %3282
        %3284 = vrot.lane.b32.xlu0 %v950, 48
        %v3285 = vpop.permute.xlu0 %3284
        %3286 = vrot.lane.b32.xlu0 %v953, 48
        %v3287 = vpop.permute.xlu0 %3286
        %3288 = vrot.lane.b32.xlu0 %v956, 48
        %v3289 = vpop.permute.xlu0 %3288
        %3290 = vrot.lane.b32.xlu0 %v959, 48
        %v3291 = vpop.permute.xlu0 %3290
        %v3297 = vsel %vm482, %v3205, 0
        %v3300 = vsel %vm482, %v3207, 0
        %v3303 = vsel %vm482, %v3209, 0
        %v3306 = vsel %vm482, %v3211, 0
        %3308 = vmatpush.msra.mxu0 0.0
        %3309 = vmatpush.msra.mxu0 0.0
        %3310 = vmatpush.msra.mxu0 0.0
        %3311 = vmatpush.msra.mxu0 0.0
        %3312 = vmatpush.msra.mxu0 0.0
        %3313 = vmatpush.msra.mxu0 0.0
        %3314 = vmatpush.msra.mxu0 0.0
        %3315 = vmatpush.msra.mxu0 0.0
        %3316 = vmatpush.msra.mxu0 0.0
        %3317 = vmatpush.msra.mxu0 0.0
        %3318 = vmatpush.msra.mxu0 0.0
        %3319 = vmatpush.msra.mxu0 0.0
        %3320 = vmatpush.msra.mxu0 %v3291
        %3321 = vmatpush.msra.mxu0 %v3289
        %3322 = vmatpush.msra.mxu0 %v3287
        %3323 = vmatpush.msra.mxu0 %v3285
        %3324 = vmatmul.f32.gmra.mxu0 %v3297
        %v3325 = vpop.f32.mrf.mxu0
        %v3326 = vadd.f32 0.0, %v3325
        %3327 = vmatmul.f32.gmra.mxu0 %v3300
        %v3328 = vpop.f32.mrf.mxu0
        %v3329 = vadd.f32 0.0, %v3328
        %3330 = vmatmul.f32.gmra.mxu0 %v3303
        %v3331 = vpop.f32.mrf.mxu0
        %v3332 = vadd.f32 0.0, %v3331
        %3333 = vmatmul.f32.gmra.mxu0 %v3306
        %v3334 = vpop.f32.mrf.mxu0
        %v3335 = vadd.f32 0.0, %v3334
        %3336 = vdwg.mxu0
        %3337 = vrot.lane.b32.xlu0 %v962, 48
        %v3338 = vpop.permute.xlu0 %3337
        %3339 = vrot.lane.b32.xlu0 %v965, 48
        %v3340 = vpop.permute.xlu0 %3339
        %3341 = vrot.lane.b32.xlu0 %v968, 48
        %v3342 = vpop.permute.xlu0 %3341
        %3343 = vrot.lane.b32.xlu0 %v971, 48
        %v3344 = vpop.permute.xlu0 %3343
        %v3350 = vsel %vm482, %v3213, 0
        %v3353 = vsel %vm482, %v3215, 0
        %v3356 = vsel %vm482, %v3217, 0
        %v3359 = vsel %vm482, %v3219, 0
        %3361 = vmatpush.msra.mxu0 0.0
        %3362 = vmatpush.msra.mxu0 0.0
        %3363 = vmatpush.msra.mxu0 0.0
        %3364 = vmatpush.msra.mxu0 0.0
        %3365 = vmatpush.msra.mxu0 0.0
        %3366 = vmatpush.msra.mxu0 0.0
        %3367 = vmatpush.msra.mxu0 0.0
        %3368 = vmatpush.msra.mxu0 0.0
        %3369 = vmatpush.msra.mxu0 0.0
        %3370 = vmatpush.msra.mxu0 0.0
        %3371 = vmatpush.msra.mxu0 0.0
        %3372 = vmatpush.msra.mxu0 0.0
        %3373 = vmatpush.msra.mxu0 %v3344
        %3374 = vmatpush.msra.mxu0 %v3342
        %3375 = vmatpush.msra.mxu0 %v3340
        %3376 = vmatpush.msra.mxu0 %v3338
        %3377 = vmatmul.f32.gmra.mxu0 %v3350
        %v3378 = vpop.f32.mrf.mxu0
        %v3379 = vadd.f32 0.0, %v3378
        %3380 = vmatmul.f32.gmra.mxu0 %v3353
        %v3381 = vpop.f32.mrf.mxu0
        %v3382 = vadd.f32 0.0, %v3381
        %3383 = vmatmul.f32.gmra.mxu0 %v3356
        %v3384 = vpop.f32.mrf.mxu0
        %v3385 = vadd.f32 0.0, %v3384
        %3386 = vmatmul.f32.gmra.mxu0 %v3359
        %v3387 = vpop.f32.mrf.mxu0
        %v3388 = vadd.f32 0.0, %v3387
        %3389 = vdwg.mxu0
        %3390 = vrot.lane.b32.xlu0 %v974, 48
        %v3391 = vpop.permute.xlu0 %3390
        %3392 = vrot.lane.b32.xlu0 %v977, 48
        %v3393 = vpop.permute.xlu0 %3392
        %3394 = vrot.lane.b32.xlu0 %v980, 48
        %v3395 = vpop.permute.xlu0 %3394
        %3396 = vrot.lane.b32.xlu0 %v983, 48
        %v3397 = vpop.permute.xlu0 %3396
        %v3403 = vsel %vm482, %v3221, 0
        %v3406 = vsel %vm482, %v3223, 0
        %v3409 = vsel %vm482, %v3225, 0
        %v3412 = vsel %vm482, %v3227, 0
        %3414 = vmatpush.msra.mxu0 0.0
        %3415 = vmatpush.msra.mxu0 0.0
        %3416 = vmatpush.msra.mxu0 0.0
        %3417 = vmatpush.msra.mxu0 0.0
        %3418 = vmatpush.msra.mxu0 0.0
        %3419 = vmatpush.msra.mxu0 0.0
        %3420 = vmatpush.msra.mxu0 0.0
        %3421 = vmatpush.msra.mxu0 0.0
        %3422 = vmatpush.msra.mxu0 0.0
        %3423 = vmatpush.msra.mxu0 0.0
        %3424 = vmatpush.msra.mxu0 0.0
        %3425 = vmatpush.msra.mxu0 0.0
        %3426 = vmatpush.msra.mxu0 %v3397
        %3427 = vmatpush.msra.mxu0 %v3395
        %3428 = vmatpush.msra.mxu0 %v3393
        %3429 = vmatpush.msra.mxu0 %v3391
        %3430 = vmatmul.f32.gmra.mxu0 %v3403
        %v3431 = vpop.f32.mrf.mxu0
        %v3432 = vadd.f32 0.0, %v3431
        %3433 = vmatmul.f32.gmra.mxu0 %v3406
        %v3434 = vpop.f32.mrf.mxu0
        %v3435 = vadd.f32 0.0, %v3434
        %3436 = vmatmul.f32.gmra.mxu0 %v3409
        %v3437 = vpop.f32.mrf.mxu0
        %v3438 = vadd.f32 0.0, %v3437
        %3439 = vmatmul.f32.gmra.mxu0 %v3412
        %v3440 = vpop.f32.mrf.mxu0
        %v3441 = vadd.f32 0.0, %v3440
        %3442 = vdwg.mxu0
        %3443 = vrot.lane.b32.xlu0 %v986, 48
        %v3444 = vpop.permute.xlu0 %3443
        %3445 = vrot.lane.b32.xlu0 %v989, 48
        %v3446 = vpop.permute.xlu0 %3445
        %3447 = vrot.lane.b32.xlu0 %v992, 48
        %v3448 = vpop.permute.xlu0 %3447
        %3449 = vrot.lane.b32.xlu0 %v995, 48
        %v3450 = vpop.permute.xlu0 %3449
        %v3456 = vsel %vm482, %v3229, 0
        %v3459 = vsel %vm482, %v3231, 0
        %v3462 = vsel %vm482, %v3233, 0
        %v3465 = vsel %vm482, %v3235, 0
        %3467 = vmatpush.msra.mxu0 0.0
        %3468 = vmatpush.msra.mxu0 0.0
        %3469 = vmatpush.msra.mxu0 0.0
        %3470 = vmatpush.msra.mxu0 0.0
        %3471 = vmatpush.msra.mxu0 0.0
        %3472 = vmatpush.msra.mxu0 0.0
        %3473 = vmatpush.msra.mxu0 0.0
        %3474 = vmatpush.msra.mxu0 0.0
        %3475 = vmatpush.msra.mxu0 0.0
        %3476 = vmatpush.msra.mxu0 0.0
        %3477 = vmatpush.msra.mxu0 0.0
        %3478 = vmatpush.msra.mxu0 0.0
        %3479 = vmatpush.msra.mxu0 %v3450
        %3480 = vmatpush.msra.mxu0 %v3448
        %3481 = vmatpush.msra.mxu0 %v3446
        %3482 = vmatpush.msra.mxu0 %v3444
        %3483 = vmatmul.f32.gmra.mxu0 %v3456
        %v3484 = vpop.f32.mrf.mxu0
        %v3485 = vadd.f32 0.0, %v3484
        %3486 = vmatmul.f32.gmra.mxu0 %v3459
        %v3487 = vpop.f32.mrf.mxu0
        %v3488 = vadd.f32 0.0, %v3487
        %3489 = vmatmul.f32.gmra.mxu0 %v3462
        %v3490 = vpop.f32.mrf.mxu0
        %v3491 = vadd.f32 0.0, %v3490
        %3492 = vmatmul.f32.gmra.mxu0 %v3465
        %v3493 = vpop.f32.mrf.mxu0
        %v3494 = vadd.f32 0.0, %v3493
        %3495 = vdwg.mxu0
        %v3496 = vrcp.pop %v3238
        %v3497 = vmul.f32 %v3238, %v3496
        %v3498 = vsub.f32 1.0, %v3497
        %v3499 = vmul.f32 %v3496, %v3498
        %v3500 = vadd.f32 %v3496, %v3499
        %vm3501 = vweird.f32 %v3238
        %vm3502 = vweird.f32 %v3496
        %vm3503 = vmor %vm3501, %vm3502
        %v3504 = vsel %vm3503, %v3496, %v3500
        %v3505 = vand.u32 2147483647, %v3238
        %vm3506 = vcmp.eq.f32.partialorder %v3505, 8.507059e+37
        %v3507 = vand.u32 %v3238, 2147483648
        %v3508 = vor.u32 1.1754944e-38, %v3507
        %v3509 = vsel %vm3506, %v3508, %v3504
        %v3510 = vmul.f32 %v3326, %v3509
        %v3511 = vrcp.pop %v3241
        %v3512 = vmul.f32 %v3241, %v3511
        %v3513 = vsub.f32 1.0, %v3512
        %v3514 = vmul.f32 %v3511, %v3513
        %v3515 = vadd.f32 %v3511, %v3514
        %vm3516 = vweird.f32 %v3241
        %vm3517 = vweird.f32 %v3511
        %vm3518 = vmor %vm3516, %vm3517
        %v3519 = vsel %vm3518, %v3511, %v3515
        %v3520 = vand.u32 2147483647, %v3241
        %vm3521 = vcmp.eq.f32.partialorder %v3520, 8.507059e+37
        %v3522 = vand.u32 %v3241, 2147483648
        %v3523 = vor.u32 1.1754944e-38, %v3522
        %v3524 = vsel %vm3521, %v3523, %v3519
        %v3525 = vmul.f32 %v3329, %v3524
        %v3526 = vrcp.pop %v3244
        %v3527 = vmul.f32 %v3244, %v3526
        %v3528 = vsub.f32 1.0, %v3527
        %v3529 = vmul.f32 %v3526, %v3528
        %v3530 = vadd.f32 %v3526, %v3529
        %vm3531 = vweird.f32 %v3244
        %vm3532 = vweird.f32 %v3526
        %vm3533 = vmor %vm3531, %vm3532
        %v3534 = vsel %vm3533, %v3526, %v3530
        %v3535 = vand.u32 2147483647, %v3244
        %vm3536 = vcmp.eq.f32.partialorder %v3535, 8.507059e+37
        %v3537 = vand.u32 %v3244, 2147483648
        %v3538 = vor.u32 1.1754944e-38, %v3537
        %v3539 = vsel %vm3536, %v3538, %v3534
        %v3540 = vmul.f32 %v3332, %v3539
        %v3541 = vrcp.pop %v3247
        %v3542 = vmul.f32 %v3247, %v3541
        %v3543 = vsub.f32 1.0, %v3542
        %v3544 = vmul.f32 %v3541, %v3543
        %v3545 = vadd.f32 %v3541, %v3544
        %vm3546 = vweird.f32 %v3247
        %vm3547 = vweird.f32 %v3541
        %vm3548 = vmor %vm3546, %vm3547
        %v3549 = vsel %vm3548, %v3541, %v3545
        %v3550 = vand.u32 2147483647, %v3247
        %vm3551 = vcmp.eq.f32.partialorder %v3550, 8.507059e+37
        %v3552 = vand.u32 %v3247, 2147483648
        %v3553 = vor.u32 1.1754944e-38, %v3552
        %v3554 = vsel %vm3551, %v3553, %v3549
        %v3555 = vmul.f32 %v3335, %v3554
        %v3556 = vrcp.pop %v3250
        %v3557 = vmul.f32 %v3250, %v3556
        %v3558 = vsub.f32 1.0, %v3557
        %v3559 = vmul.f32 %v3556, %v3558
        %v3560 = vadd.f32 %v3556, %v3559
        %vm3561 = vweird.f32 %v3250
        %vm3562 = vweird.f32 %v3556
        %vm3563 = vmor %vm3561, %vm3562
        %v3564 = vsel %vm3563, %v3556, %v3560
        %v3565 = vand.u32 2147483647, %v3250
        %vm3566 = vcmp.eq.f32.partialorder %v3565, 8.507059e+37
        %v3567 = vand.u32 %v3250, 2147483648
        %v3568 = vor.u32 1.1754944e-38, %v3567
        %v3569 = vsel %vm3566, %v3568, %v3564
        %v3570 = vmul.f32 %v3379, %v3569
        %v3571 = vrcp.pop %v3253
        %v3572 = vmul.f32 %v3253, %v3571
        %v3573 = vsub.f32 1.0, %v3572
        %v3574 = vmul.f32 %v3571, %v3573
        %v3575 = vadd.f32 %v3571, %v3574
        %vm3576 = vweird.f32 %v3253
        %vm3577 = vweird.f32 %v3571
        %vm3578 = vmor %vm3576, %vm3577
        %v3579 = vsel %vm3578, %v3571, %v3575
        %v3580 = vand.u32 2147483647, %v3253
        %vm3581 = vcmp.eq.f32.partialorder %v3580, 8.507059e+37
        %v3582 = vand.u32 %v3253, 2147483648
        %v3583 = vor.u32 1.1754944e-38, %v3582
        %v3584 = vsel %vm3581, %v3583, %v3579
        %v3585 = vmul.f32 %v3382, %v3584
        %v3586 = vrcp.pop %v3256
        %v3587 = vmul.f32 %v3256, %v3586
        %v3588 = vsub.f32 1.0, %v3587
        %v3589 = vmul.f32 %v3586, %v3588
        %v3590 = vadd.f32 %v3586, %v3589
        %vm3591 = vweird.f32 %v3256
        %vm3592 = vweird.f32 %v3586
        %vm3593 = vmor %vm3591, %vm3592
        %v3594 = vsel %vm3593, %v3586, %v3590
        %v3595 = vand.u32 2147483647, %v3256
        %vm3596 = vcmp.eq.f32.partialorder %v3595, 8.507059e+37
        %v3597 = vand.u32 %v3256, 2147483648
        %v3598 = vor.u32 1.1754944e-38, %v3597
        %v3599 = vsel %vm3596, %v3598, %v3594
        %v3600 = vmul.f32 %v3385, %v3599
        %v3601 = vrcp.pop %v3259
        %v3602 = vmul.f32 %v3259, %v3601
        %v3603 = vsub.f32 1.0, %v3602
        %v3604 = vmul.f32 %v3601, %v3603
        %v3605 = vadd.f32 %v3601, %v3604
        %vm3606 = vweird.f32 %v3259
        %vm3607 = vweird.f32 %v3601
        %vm3608 = vmor %vm3606, %vm3607
        %v3609 = vsel %vm3608, %v3601, %v3605
        %v3610 = vand.u32 2147483647, %v3259
        %vm3611 = vcmp.eq.f32.partialorder %v3610, 8.507059e+37
        %v3612 = vand.u32 %v3259, 2147483648
        %v3613 = vor.u32 1.1754944e-38, %v3612
        %v3614 = vsel %vm3611, %v3613, %v3609
        %v3615 = vmul.f32 %v3388, %v3614
        %v3616 = vrcp.pop %v3262
        %v3617 = vmul.f32 %v3262, %v3616
        %v3618 = vsub.f32 1.0, %v3617
        %v3619 = vmul.f32 %v3616, %v3618
        %v3620 = vadd.f32 %v3616, %v3619
        %vm3621 = vweird.f32 %v3262
        %vm3622 = vweird.f32 %v3616
        %vm3623 = vmor %vm3621, %vm3622
        %v3624 = vsel %vm3623, %v3616, %v3620
        %v3625 = vand.u32 2147483647, %v3262
        %vm3626 = vcmp.eq.f32.partialorder %v3625, 8.507059e+37
        %v3627 = vand.u32 %v3262, 2147483648
        %v3628 = vor.u32 1.1754944e-38, %v3627
        %v3629 = vsel %vm3626, %v3628, %v3624
        %v3630 = vmul.f32 %v3432, %v3629
        %v3631 = vrcp.pop %v3265
        %v3632 = vmul.f32 %v3265, %v3631
        %v3633 = vsub.f32 1.0, %v3632
        %v3634 = vmul.f32 %v3631, %v3633
        %v3635 = vadd.f32 %v3631, %v3634
        %vm3636 = vweird.f32 %v3265
        %vm3637 = vweird.f32 %v3631
        %vm3638 = vmor %vm3636, %vm3637
        %v3639 = vsel %vm3638, %v3631, %v3635
        %v3640 = vand.u32 2147483647, %v3265
        %vm3641 = vcmp.eq.f32.partialorder %v3640, 8.507059e+37
        %v3642 = vand.u32 %v3265, 2147483648
        %v3643 = vor.u32 1.1754944e-38, %v3642
        %v3644 = vsel %vm3641, %v3643, %v3639
        %v3645 = vmul.f32 %v3435, %v3644
        %v3646 = vrcp.pop %v3268
        %v3647 = vmul.f32 %v3268, %v3646
        %v3648 = vsub.f32 1.0, %v3647
        %v3649 = vmul.f32 %v3646, %v3648
        %v3650 = vadd.f32 %v3646, %v3649
        %vm3651 = vweird.f32 %v3268
        %vm3652 = vweird.f32 %v3646
        %vm3653 = vmor %vm3651, %vm3652
        %v3654 = vsel %vm3653, %v3646, %v3650
        %v3655 = vand.u32 2147483647, %v3268
        %vm3656 = vcmp.eq.f32.partialorder %v3655, 8.507059e+37
        %v3657 = vand.u32 %v3268, 2147483648
        %v3658 = vor.u32 1.1754944e-38, %v3657
        %v3659 = vsel %vm3656, %v3658, %v3654
        %v3660 = vmul.f32 %v3438, %v3659
        %v3661 = vrcp.pop %v3271
        %v3662 = vmul.f32 %v3271, %v3661
        %v3663 = vsub.f32 1.0, %v3662
        %v3664 = vmul.f32 %v3661, %v3663
        %v3665 = vadd.f32 %v3661, %v3664
        %vm3666 = vweird.f32 %v3271
        %vm3667 = vweird.f32 %v3661
        %vm3668 = vmor %vm3666, %vm3667
        %v3669 = vsel %vm3668, %v3661, %v3665
        %v3670 = vand.u32 2147483647, %v3271
        %vm3671 = vcmp.eq.f32.partialorder %v3670, 8.507059e+37
        %v3672 = vand.u32 %v3271, 2147483648
        %v3673 = vor.u32 1.1754944e-38, %v3672
        %v3674 = vsel %vm3671, %v3673, %v3669
        %v3675 = vmul.f32 %v3441, %v3674
        %v3676 = vrcp.pop %v3274
        %v3677 = vmul.f32 %v3274, %v3676
        %v3678 = vsub.f32 1.0, %v3677
        %v3679 = vmul.f32 %v3676, %v3678
        %v3680 = vadd.f32 %v3676, %v3679
        %vm3681 = vweird.f32 %v3274
        %vm3682 = vweird.f32 %v3676
        %vm3683 = vmor %vm3681, %vm3682
        %v3684 = vsel %vm3683, %v3676, %v3680
        %v3685 = vand.u32 2147483647, %v3274
        %vm3686 = vcmp.eq.f32.partialorder %v3685, 8.507059e+37
        %v3687 = vand.u32 %v3274, 2147483648
        %v3688 = vor.u32 1.1754944e-38, %v3687
        %v3689 = vsel %vm3686, %v3688, %v3684
        %v3690 = vmul.f32 %v3485, %v3689
        %v3691 = vrcp.pop %v3277
        %v3692 = vmul.f32 %v3277, %v3691
        %v3693 = vsub.f32 1.0, %v3692
        %v3694 = vmul.f32 %v3691, %v3693
        %v3695 = vadd.f32 %v3691, %v3694
        %vm3696 = vweird.f32 %v3277
        %vm3697 = vweird.f32 %v3691
        %vm3698 = vmor %vm3696, %vm3697
        %v3699 = vsel %vm3698, %v3691, %v3695
        %v3700 = vand.u32 2147483647, %v3277
        %vm3701 = vcmp.eq.f32.partialorder %v3700, 8.507059e+37
        %v3702 = vand.u32 %v3277, 2147483648
        %v3703 = vor.u32 1.1754944e-38, %v3702
        %v3704 = vsel %vm3701, %v3703, %v3699
        %v3705 = vmul.f32 %v3488, %v3704
        %v3706 = vrcp.pop %v3280
        %v3707 = vmul.f32 %v3280, %v3706
        %v3708 = vsub.f32 1.0, %v3707
        %v3709 = vmul.f32 %v3706, %v3708
        %v3710 = vadd.f32 %v3706, %v3709
        %vm3711 = vweird.f32 %v3280
        %vm3712 = vweird.f32 %v3706
        %vm3713 = vmor %vm3711, %vm3712
        %v3714 = vsel %vm3713, %v3706, %v3710
        %v3715 = vand.u32 2147483647, %v3280
        %vm3716 = vcmp.eq.f32.partialorder %v3715, 8.507059e+37
        %v3717 = vand.u32 %v3280, 2147483648
        %v3718 = vor.u32 1.1754944e-38, %v3717
        %v3719 = vsel %vm3716, %v3718, %v3714
        %v3720 = vmul.f32 %v3491, %v3719
        %v3721 = vrcp.pop %v3283
        %v3722 = vmul.f32 %v3283, %v3721
        %v3723 = vsub.f32 1.0, %v3722
        %v3724 = vmul.f32 %v3721, %v3723
        %v3725 = vadd.f32 %v3721, %v3724
        %vm3726 = vweird.f32 %v3283
        %vm3727 = vweird.f32 %v3721
        %vm3728 = vmor %vm3726, %vm3727
        %v3729 = vsel %vm3728, %v3721, %v3725
        %v3730 = vand.u32 2147483647, %v3283
        %vm3731 = vcmp.eq.f32.partialorder %v3730, 8.507059e+37
        %v3732 = vand.u32 %v3283, 2147483648
        %v3733 = vor.u32 1.1754944e-38, %v3732
        %v3734 = vsel %vm3731, %v3733, %v3729
        %v3735 = vmul.f32 %v3494, %v3734
        %v3737 = vsel %vm1017, %v3510, 0
        %v3740 = vsel %vm1017, %v3525, 0
        %v3743 = vsel %vm1017, %v3540, 0
        %v3746 = vsel %vm1017, %v3555, 0
        %v3749 = vsel %vm1017, %v3570, 0
        %v3752 = vsel %vm1017, %v3585, 0
        %v3755 = vsel %vm1017, %v3600, 0
        %v3758 = vsel %vm1017, %v3615, 0
        %v3761 = vsel %vm1017, %v3630, 0
        %v3764 = vsel %vm1017, %v3645, 0
        %v3767 = vsel %vm1017, %v3660, 0
        %v3770 = vsel %vm1017, %v3675, 0
        %v3773 = vsel %vm1017, %v3690, 0
        %v3776 = vsel %vm1017, %v3705, 0
        %v3779 = vsel %vm1017, %v3720, 0
        %v3782 = vsel %vm1017, %v3735, 0
        %3784 = vmatpush.msra.mxu0 0.0
        %3785 = vmatpush.msra.mxu0 0.0
        %3786 = vmatpush.msra.mxu0 0.0
        %3787 = vmatpush.msra.mxu0 0.0
        %3788 = vmatpush.msra.mxu0 0.0
        %3789 = vmatpush.msra.mxu0 0.0
        %3790 = vmatpush.msra.mxu0 0.0
        %3791 = vmatpush.msra.mxu0 0.0
        %3792 = vmatpush.msra.mxu0 0.0
        %3793 = vmatpush.msra.mxu0 0.0
        %3794 = vmatpush.msra.mxu0 0.0
        %3795 = vmatpush.msra.mxu0 0.0
        %3796 = vmatpush.msra.mxu0 0.0
        %3797 = vmatpush.msra.mxu0 0.0
        %3798 = vmatpush.msra.mxu0 0.0
        %3799 = vmatpush.msra.mxu0 %v1003
        %3800 = vmatmul.f32.gmra.mxu0 %v3737
        %v3801 = vpop.f32.mrf.mxu0
        %v3802 = vadd.f32 0.0, %v3801
        %3803 = vmatmul.f32.gmra.mxu0 %v3740
        %v3804 = vpop.f32.mrf.mxu0
        %v3805 = vadd.f32 0.0, %v3804
        %3806 = vmatmul.f32.gmra.mxu0 %v3743
        %v3807 = vpop.f32.mrf.mxu0
        %v3808 = vadd.f32 0.0, %v3807
        %3809 = vmatmul.f32.gmra.mxu0 %v3746
        %v3810 = vpop.f32.mrf.mxu0
        %v3811 = vadd.f32 0.0, %v3810
        %3812 = vmatmul.f32.gmra.mxu0 %v3749
        %v3813 = vpop.f32.mrf.mxu0
        %v3814 = vadd.f32 0.0, %v3813
        %3815 = vmatmul.f32.gmra.mxu0 %v3752
        %v3816 = vpop.f32.mrf.mxu0
        %v3817 = vadd.f32 0.0, %v3816
        %3818 = vmatmul.f32.gmra.mxu0 %v3755
        %v3819 = vpop.f32.mrf.mxu0
        %v3820 = vadd.f32 0.0, %v3819
        %3821 = vmatmul.f32.gmra.mxu0 %v3758
        %v3822 = vpop.f32.mrf.mxu0
        %v3823 = vadd.f32 0.0, %v3822
        %3824 = vmatmul.f32.gmra.mxu0 %v3761
        %v3825 = vpop.f32.mrf.mxu0
        %v3826 = vadd.f32 0.0, %v3825
        %3827 = vmatmul.f32.gmra.mxu0 %v3764
        %v3828 = vpop.f32.mrf.mxu0
        %v3829 = vadd.f32 0.0, %v3828
        %3830 = vmatmul.f32.gmra.mxu0 %v3767
        %v3831 = vpop.f32.mrf.mxu0
        %v3832 = vadd.f32 0.0, %v3831
        %3833 = vmatmul.f32.gmra.mxu0 %v3770
        %v3834 = vpop.f32.mrf.mxu0
        %v3835 = vadd.f32 0.0, %v3834
        %3836 = vmatmul.f32.gmra.mxu0 %v3773
        %v3837 = vpop.f32.mrf.mxu0
        %v3838 = vadd.f32 0.0, %v3837
        %3839 = vmatmul.f32.gmra.mxu0 %v3776
        %v3840 = vpop.f32.mrf.mxu0
        %v3841 = vadd.f32 0.0, %v3840
        %3842 = vmatmul.f32.gmra.mxu0 %v3779
        %v3843 = vpop.f32.mrf.mxu0
        %v3844 = vadd.f32 0.0, %v3843
        %3845 = vmatmul.f32.gmra.mxu0 %v3782
        %v3846 = vpop.f32.mrf.mxu0
        %v3847 = vadd.f32 0.0, %v3846
        %3848 = vdwg.mxu0
        %v3849 = vadd.f32 %v2849, %v3802
        %v3850 = vadd.f32 %v2852, %v3805
        %v3851 = vadd.f32 %v2855, %v3808
        %v3852 = vadd.f32 %v2858, %v3811
        %v3853 = vadd.f32 %v2861, %v3814
        %v3854 = vadd.f32 %v2864, %v3817
        %v3855 = vadd.f32 %v2867, %v3820
        %v3856 = vadd.f32 %v2870, %v3823
        %v3857 = vadd.f32 %v2873, %v3826
        %v3858 = vadd.f32 %v2876, %v3829
        %v3859 = vadd.f32 %v2879, %v3832
        %v3860 = vadd.f32 %v2882, %v3835
        %v3861 = vadd.f32 %v2885, %v3838
        %v3862 = vadd.f32 %v2888, %v3841
        %v3863 = vadd.f32 %v2891, %v3844
        %v3864 = vadd.f32 %v2894, %v3847
        %3865 = vrot.lane.b32.xlu0 %v950, 104
        %v3866 = vpop.permute.xlu0 %3865
        %3867 = vrot.lane.b32.xlu0 %v953, 104
        %v3868 = vpop.permute.xlu0 %3867
        %3869 = vrot.lane.b32.xlu0 %v956, 104
        %v3870 = vpop.permute.xlu0 %3869
        %3871 = vrot.lane.b32.xlu0 %v959, 104
        %v3872 = vpop.permute.xlu0 %3871
        %3873 = vrot.lane.b32.xlu0 %v950, 72
        %v3874 = vpop.permute.xlu0 %3873
        %3875 = vrot.lane.b32.xlu0 %v953, 72
        %v3876 = vpop.permute.xlu0 %3875
        %3877 = vrot.lane.b32.xlu0 %v956, 72
        %v3878 = vpop.permute.xlu0 %3877
        %3879 = vrot.lane.b32.xlu0 %v959, 72
        %v3880 = vpop.permute.xlu0 %3879
        %v3881 = vsel %vm1017, %v3866, 0
        %v3883 = vsel %vm1017, %v3868, 0
        %v3885 = vsel %vm1017, %v3870, 0
        %v3887 = vsel %vm1017, %v3872, 0
        %v3889 = vsel %vm1017, %v3874, 0
        %v3891 = vsel %vm1017, %v3876, 0
        %v3893 = vsel %vm1017, %v3878, 0
        %v3895 = vsel %vm1017, %v3880, 0
        %3897 = vmatpush.xpose.msra.mxu0 0.0
        %3898 = vmatpush.xpose.msra.mxu0 0.0
        %3899 = vmatpush.xpose.msra.mxu0 0.0
        %3900 = vmatpush.xpose.msra.mxu0 0.0
        %3901 = vmatpush.xpose.msra.mxu0 0.0
        %3902 = vmatpush.xpose.msra.mxu0 0.0
        %3903 = vmatpush.xpose.msra.mxu0 0.0
        %3904 = vmatpush.xpose.msra.mxu0 0.0
        %3905 = vmatpush.xpose.msra.mxu0 0.0
        %3906 = vmatpush.xpose.msra.mxu0 0.0
        %3907 = vmatpush.xpose.msra.mxu0 0.0
        %3908 = vmatpush.xpose.msra.mxu0 0.0
        %3909 = vmatpush.xpose.msra.mxu0 %v3895
        %3910 = vmatpush.xpose.msra.mxu0 %v3893
        %3911 = vmatpush.xpose.msra.mxu0 %v3891
        %3912 = vmatpush.xpose.msra.mxu0 %v3889
        %3913 = vmatmul.f32.gmra.mxu0 %v3881
        %v3914 = vpop.f32.mrf.mxu0
        %v3915 = vadd.f32 %v997, %v3914
        %3916 = vmatmul.f32.gmra.mxu0 %v3883
        %v3917 = vpop.f32.mrf.mxu0
        %v3918 = vadd.f32 %v998, %v3917
        %3919 = vmatmul.f32.gmra.mxu0 %v3885
        %v3920 = vpop.f32.mrf.mxu0
        %v3921 = vadd.f32 %v999, %v3920
        %3922 = vmatmul.f32.gmra.mxu0 %v3887
        %v3923 = vpop.f32.mrf.mxu0
        %v3924 = vadd.f32 %v1000, %v3923
        %3925 = vdwg.mxu0
        %3926 = vrot.lane.b32.xlu0 %v962, 104
        %v3927 = vpop.permute.xlu0 %3926
        %3928 = vrot.lane.b32.xlu0 %v965, 104
        %v3929 = vpop.permute.xlu0 %3928
        %3930 = vrot.lane.b32.xlu0 %v968, 104
        %v3931 = vpop.permute.xlu0 %3930
        %3932 = vrot.lane.b32.xlu0 %v971, 104
        %v3933 = vpop.permute.xlu0 %3932
        %3934 = vrot.lane.b32.xlu0 %v962, 72
        %v3935 = vpop.permute.xlu0 %3934
        %3936 = vrot.lane.b32.xlu0 %v965, 72
        %v3937 = vpop.permute.xlu0 %3936
        %3938 = vrot.lane.b32.xlu0 %v968, 72
        %v3939 = vpop.permute.xlu0 %3938
        %3940 = vrot.lane.b32.xlu0 %v971, 72
        %v3941 = vpop.permute.xlu0 %3940
        %v3942 = vsel %vm1017, %v3927, 0
        %v3944 = vsel %vm1017, %v3929, 0
        %v3946 = vsel %vm1017, %v3931, 0
        %v3948 = vsel %vm1017, %v3933, 0
        %v3950 = vsel %vm1017, %v3935, 0
        %v3952 = vsel %vm1017, %v3937, 0
        %v3954 = vsel %vm1017, %v3939, 0
        %v3956 = vsel %vm1017, %v3941, 0
        %3958 = vmatpush.xpose.msra.mxu0 0.0
        %3959 = vmatpush.xpose.msra.mxu0 0.0
        %3960 = vmatpush.xpose.msra.mxu0 0.0
        %3961 = vmatpush.xpose.msra.mxu0 0.0
        %3962 = vmatpush.xpose.msra.mxu0 0.0
        %3963 = vmatpush.xpose.msra.mxu0 0.0
        %3964 = vmatpush.xpose.msra.mxu0 0.0
        %3965 = vmatpush.xpose.msra.mxu0 0.0
        %3966 = vmatpush.xpose.msra.mxu0 0.0
        %3967 = vmatpush.xpose.msra.mxu0 0.0
        %3968 = vmatpush.xpose.msra.mxu0 0.0
        %3969 = vmatpush.xpose.msra.mxu0 0.0
        %3970 = vmatpush.xpose.msra.mxu0 %v3956
        %3971 = vmatpush.xpose.msra.mxu0 %v3954
        %3972 = vmatpush.xpose.msra.mxu0 %v3952
        %3973 = vmatpush.xpose.msra.mxu0 %v3950
        %3974 = vmatmul.f32.gmra.mxu0 %v3942
        %v3975 = vpop.f32.mrf.mxu0
        %v3976 = vadd.f32 %v997, %v3975
        %3977 = vmatmul.f32.gmra.mxu0 %v3944
        %v3978 = vpop.f32.mrf.mxu0
        %v3979 = vadd.f32 %v998, %v3978
        %3980 = vmatmul.f32.gmra.mxu0 %v3946
        %v3981 = vpop.f32.mrf.mxu0
        %v3982 = vadd.f32 %v999, %v3981
        %3983 = vmatmul.f32.gmra.mxu0 %v3948
        %v3984 = vpop.f32.mrf.mxu0
        %v3985 = vadd.f32 %v1000, %v3984
        %3986 = vdwg.mxu0
        %3987 = vrot.lane.b32.xlu0 %v974, 104
        %v3988 = vpop.permute.xlu0 %3987
        %3989 = vrot.lane.b32.xlu0 %v977, 104
        %v3990 = vpop.permute.xlu0 %3989
        %3991 = vrot.lane.b32.xlu0 %v980, 104
        %v3992 = vpop.permute.xlu0 %3991
        %3993 = vrot.lane.b32.xlu0 %v983, 104
        %v3994 = vpop.permute.xlu0 %3993
        %3995 = vrot.lane.b32.xlu0 %v974, 72
        %v3996 = vpop.permute.xlu0 %3995
        %3997 = vrot.lane.b32.xlu0 %v977, 72
        %v3998 = vpop.permute.xlu0 %3997
        %3999 = vrot.lane.b32.xlu0 %v980, 72
        %v4000 = vpop.permute.xlu0 %3999
        %4001 = vrot.lane.b32.xlu0 %v983, 72
        %v4002 = vpop.permute.xlu0 %4001
        %v4003 = vsel %vm1017, %v3988, 0
        %v4005 = vsel %vm1017, %v3990, 0
        %v4007 = vsel %vm1017, %v3992, 0
        %v4009 = vsel %vm1017, %v3994, 0
        %v4011 = vsel %vm1017, %v3996, 0
        %v4013 = vsel %vm1017, %v3998, 0
        %v4015 = vsel %vm1017, %v4000, 0
        %v4017 = vsel %vm1017, %v4002, 0
        %4019 = vmatpush.xpose.msra.mxu0 0.0
        %4020 = vmatpush.xpose.msra.mxu0 0.0
        %4021 = vmatpush.xpose.msra.mxu0 0.0
        %4022 = vmatpush.xpose.msra.mxu0 0.0
        %4023 = vmatpush.xpose.msra.mxu0 0.0
        %4024 = vmatpush.xpose.msra.mxu0 0.0
        %4025 = vmatpush.xpose.msra.mxu0 0.0
        %4026 = vmatpush.xpose.msra.mxu0 0.0
        %4027 = vmatpush.xpose.msra.mxu0 0.0
        %4028 = vmatpush.xpose.msra.mxu0 0.0
        %4029 = vmatpush.xpose.msra.mxu0 0.0
        %4030 = vmatpush.xpose.msra.mxu0 0.0
        %4031 = vmatpush.xpose.msra.mxu0 %v4017
        %4032 = vmatpush.xpose.msra.mxu0 %v4015
        %4033 = vmatpush.xpose.msra.mxu0 %v4013
        %4034 = vmatpush.xpose.msra.mxu0 %v4011
        %4035 = vmatmul.f32.gmra.mxu0 %v4003
        %v4036 = vpop.f32.mrf.mxu0
        %v4037 = vadd.f32 %v997, %v4036
        %4038 = vmatmul.f32.gmra.mxu0 %v4005
        %v4039 = vpop.f32.mrf.mxu0
        %v4040 = vadd.f32 %v998, %v4039
        %4041 = vmatmul.f32.gmra.mxu0 %v4007
        %v4042 = vpop.f32.mrf.mxu0
        %v4043 = vadd.f32 %v999, %v4042
        %4044 = vmatmul.f32.gmra.mxu0 %v4009
        %v4045 = vpop.f32.mrf.mxu0
        %v4046 = vadd.f32 %v1000, %v4045
        %4047 = vdwg.mxu0
        %4048 = vrot.lane.b32.xlu0 %v986, 104
        %v4049 = vpop.permute.xlu0 %4048
        %4050 = vrot.lane.b32.xlu0 %v989, 104
        %v4051 = vpop.permute.xlu0 %4050
        %4052 = vrot.lane.b32.xlu0 %v992, 104
        %v4053 = vpop.permute.xlu0 %4052
        %4054 = vrot.lane.b32.xlu0 %v995, 104
        %v4055 = vpop.permute.xlu0 %4054
        %4056 = vrot.lane.b32.xlu0 %v986, 72
        %v4057 = vpop.permute.xlu0 %4056
        %4058 = vrot.lane.b32.xlu0 %v989, 72
        %v4059 = vpop.permute.xlu0 %4058
        %4060 = vrot.lane.b32.xlu0 %v992, 72
        %v4061 = vpop.permute.xlu0 %4060
        %4062 = vrot.lane.b32.xlu0 %v995, 72
        %v4063 = vpop.permute.xlu0 %4062
        %v4064 = vsel %vm1017, %v4049, 0
        %v4066 = vsel %vm1017, %v4051, 0
        %v4068 = vsel %vm1017, %v4053, 0
        %v4070 = vsel %vm1017, %v4055, 0
        %v4072 = vsel %vm1017, %v4057, 0
        %v4074 = vsel %vm1017, %v4059, 0
        %v4076 = vsel %vm1017, %v4061, 0
        %v4078 = vsel %vm1017, %v4063, 0
        %4080 = vmatpush.xpose.msra.mxu0 0.0
        %4081 = vmatpush.xpose.msra.mxu0 0.0
        %4082 = vmatpush.xpose.msra.mxu0 0.0
        %4083 = vmatpush.xpose.msra.mxu0 0.0
        %4084 = vmatpush.xpose.msra.mxu0 0.0
        %4085 = vmatpush.xpose.msra.mxu0 0.0
        %4086 = vmatpush.xpose.msra.mxu0 0.0
        %4087 = vmatpush.xpose.msra.mxu0 0.0
        %4088 = vmatpush.xpose.msra.mxu0 0.0
        %4089 = vmatpush.xpose.msra.mxu0 0.0
        %4090 = vmatpush.xpose.msra.mxu0 0.0
        %4091 = vmatpush.xpose.msra.mxu0 0.0
        %4092 = vmatpush.xpose.msra.mxu0 %v4078
        %4093 = vmatpush.xpose.msra.mxu0 %v4076
        %4094 = vmatpush.xpose.msra.mxu0 %v4074
        %4095 = vmatpush.xpose.msra.mxu0 %v4072
        %4096 = vmatmul.f32.gmra.mxu0 %v4064
        %v4097 = vpop.f32.mrf.mxu0
        %v4098 = vadd.f32 %v997, %v4097
        %4099 = vmatmul.f32.gmra.mxu0 %v4066
        %v4100 = vpop.f32.mrf.mxu0
        %v4101 = vadd.f32 %v998, %v4100
        %4102 = vmatmul.f32.gmra.mxu0 %v4068
        %v4103 = vpop.f32.mrf.mxu0
        %v4104 = vadd.f32 %v999, %v4103
        %4105 = vmatmul.f32.gmra.mxu0 %v4070
        %v4106 = vpop.f32.mrf.mxu0
        %v4107 = vadd.f32 %v1000, %v4106
        %4108 = vdwg.mxu0
        %v4109 = vsel %vm482, %v3915, -inf
        %4110 = vmax.xlane.f32.xlu0 %v4109
        %v4111 = vpop.xlane.xlu0 %4110
        %v4112 = vsel %vm482, %v3918, -inf
        %4113 = vmax.xlane.f32.xlu0 %v4112
        %v4114 = vpop.xlane.xlu0 %4113
        %v4115 = vsel %vm482, %v3921, -inf
        %4116 = vmax.xlane.f32.xlu0 %v4115
        %v4117 = vpop.xlane.xlu0 %4116
        %v4118 = vsel %vm482, %v3924, -inf
        %4119 = vmax.xlane.f32.xlu0 %v4118
        %v4120 = vpop.xlane.xlu0 %4119
        %v4121 = vsel %vm482, %v3976, -inf
        %4122 = vmax.xlane.f32.xlu0 %v4121
        %v4123 = vpop.xlane.xlu0 %4122
        %v4124 = vsel %vm482, %v3979, -inf
        %4125 = vmax.xlane.f32.xlu0 %v4124
        %v4126 = vpop.xlane.xlu0 %4125
        %v4127 = vsel %vm482, %v3982, -inf
        %4128 = vmax.xlane.f32.xlu0 %v4127
        %v4129 = vpop.xlane.xlu0 %4128
        %v4130 = vsel %vm482, %v3985, -inf
        %4131 = vmax.xlane.f32.xlu0 %v4130
        %v4132 = vpop.xlane.xlu0 %4131
        %v4133 = vsel %vm482, %v4037, -inf
        %4134 = vmax.xlane.f32.xlu0 %v4133
        %v4135 = vpop.xlane.xlu0 %4134
        %v4136 = vsel %vm482, %v4040, -inf
        %4137 = vmax.xlane.f32.xlu0 %v4136
        %v4138 = vpop.xlane.xlu0 %4137
        %v4139 = vsel %vm482, %v4043, -inf
        %4140 = vmax.xlane.f32.xlu0 %v4139
        %v4141 = vpop.xlane.xlu0 %4140
        %v4142 = vsel %vm482, %v4046, -inf
        %4143 = vmax.xlane.f32.xlu0 %v4142
        %v4144 = vpop.xlane.xlu0 %4143
        %v4145 = vsel %vm482, %v4098, -inf
        %4146 = vmax.xlane.f32.xlu0 %v4145
        %v4147 = vpop.xlane.xlu0 %4146
        %v4148 = vsel %vm482, %v4101, -inf
        %4149 = vmax.xlane.f32.xlu0 %v4148
        %v4150 = vpop.xlane.xlu0 %4149
        %v4151 = vsel %vm482, %v4104, -inf
        %4152 = vmax.xlane.f32.xlu0 %v4151
        %v4153 = vpop.xlane.xlu0 %4152
        %v4154 = vsel %vm482, %v4107, -inf
        %4155 = vmax.xlane.f32.xlu0 %v4154
        %v4156 = vpop.xlane.xlu0 %4155
        %v4157 = vsub.f32 %v3915, %v4111
        %v4158 = vsub.f32 %v3918, %v4114
        %v4159 = vsub.f32 %v3921, %v4117
        %v4160 = vsub.f32 %v3924, %v4120
        %v4161 = vsub.f32 %v3976, %v4123
        %v4162 = vsub.f32 %v3979, %v4126
        %v4163 = vsub.f32 %v3982, %v4129
        %v4164 = vsub.f32 %v3985, %v4132
        %v4165 = vsub.f32 %v4037, %v4135
        %v4166 = vsub.f32 %v4040, %v4138
        %v4167 = vsub.f32 %v4043, %v4141
        %v4168 = vsub.f32 %v4046, %v4144
        %v4169 = vsub.f32 %v4098, %v4147
        %v4170 = vsub.f32 %v4101, %v4150
        %v4171 = vsub.f32 %v4104, %v4153
        %v4172 = vsub.f32 %v4107, %v4156
        %v4173 = vmul.f32 %v4157, 1.442695
        %v4174 = vpow.pop %v4173
        %v4175 = vmul.f32 %v4158, 1.442695
        %v4176 = vpow.pop %v4175
        %v4177 = vmul.f32 %v4159, 1.442695
        %v4178 = vpow.pop %v4177
        %v4179 = vmul.f32 %v4160, 1.442695
        %v4180 = vpow.pop %v4179
        %v4181 = vmul.f32 %v4161, 1.442695
        %v4182 = vpow.pop %v4181
        %v4183 = vmul.f32 %v4162, 1.442695
        %v4184 = vpow.pop %v4183
        %v4185 = vmul.f32 %v4163, 1.442695
        %v4186 = vpow.pop %v4185
        %v4187 = vmul.f32 %v4164, 1.442695
        %v4188 = vpow.pop %v4187
        %v4189 = vmul.f32 %v4165, 1.442695
        %v4190 = vpow.pop %v4189
        %v4191 = vmul.f32 %v4166, 1.442695
        %v4192 = vpow.pop %v4191
        %v4193 = vmul.f32 %v4167, 1.442695
        %v4194 = vpow.pop %v4193
        %v4195 = vmul.f32 %v4168, 1.442695
        %v4196 = vpow.pop %v4195
        %v4197 = vmul.f32 %v4169, 1.442695
        %v4198 = vpow.pop %v4197
        %v4199 = vmul.f32 %v4170, 1.442695
        %v4200 = vpow.pop %v4199
        %v4201 = vmul.f32 %v4171, 1.442695
        %v4202 = vpow.pop %v4201
        %v4203 = vmul.f32 %v4172, 1.442695
        %v4204 = vpow.pop %v4203
        %v4205 = vsel %vm482, %v4174, 0.0
        %4206 = vadd.xlane.f32.xlu0 %v4205
        %v4207 = vpop.xlane.xlu0 %4206
        %v4208 = vsel %vm482, %v4176, 0.0
        %4209 = vadd.xlane.f32.xlu0 %v4208
        %v4210 = vpop.xlane.xlu0 %4209
        %v4211 = vsel %vm482, %v4178, 0.0
        %4212 = vadd.xlane.f32.xlu0 %v4211
        %v4213 = vpop.xlane.xlu0 %4212
        %v4214 = vsel %vm482, %v4180, 0.0
        %4215 = vadd.xlane.f32.xlu0 %v4214
        %v4216 = vpop.xlane.xlu0 %4215
        %v4217 = vsel %vm482, %v4182, 0.0
        %4218 = vadd.xlane.f32.xlu0 %v4217
        %v4219 = vpop.xlane.xlu0 %4218
        %v4220 = vsel %vm482, %v4184, 0.0
        %4221 = vadd.xlane.f32.xlu0 %v4220
        %v4222 = vpop.xlane.xlu0 %4221
        %v4223 = vsel %vm482, %v4186, 0.0
        %4224 = vadd.xlane.f32.xlu0 %v4223
        %v4225 = vpop.xlane.xlu0 %4224
        %v4226 = vsel %vm482, %v4188, 0.0
        %4227 = vadd.xlane.f32.xlu0 %v4226
        %v4228 = vpop.xlane.xlu0 %4227
        %v4229 = vsel %vm482, %v4190, 0.0
        %4230 = vadd.xlane.f32.xlu0 %v4229
        %v4231 = vpop.xlane.xlu0 %4230
        %v4232 = vsel %vm482, %v4192, 0.0
        %4233 = vadd.xlane.f32.xlu0 %v4232
        %v4234 = vpop.xlane.xlu0 %4233
        %v4235 = vsel %vm482, %v4194, 0.0
        %4236 = vadd.xlane.f32.xlu0 %v4235
        %v4237 = vpop.xlane.xlu0 %4236
        %v4238 = vsel %vm482, %v4196, 0.0
        %4239 = vadd.xlane.f32.xlu0 %v4238
        %v4240 = vpop.xlane.xlu0 %4239
        %v4241 = vsel %vm482, %v4198, 0.0
        %4242 = vadd.xlane.f32.xlu0 %v4241
        %v4243 = vpop.xlane.xlu0 %4242
        %v4244 = vsel %vm482, %v4200, 0.0
        %4245 = vadd.xlane.f32.xlu0 %v4244
        %v4246 = vpop.xlane.xlu0 %4245
        %v4247 = vsel %vm482, %v4202, 0.0
        %4248 = vadd.xlane.f32.xlu0 %v4247
        %v4249 = vpop.xlane.xlu0 %4248
        %v4250 = vsel %vm482, %v4204, 0.0
        %4251 = vadd.xlane.f32.xlu0 %v4250
        %v4252 = vpop.xlane.xlu0 %4251
        %4253 = vrot.lane.b32.xlu0 %v950, 40
        %v4254 = vpop.permute.xlu0 %4253
        %4255 = vrot.lane.b32.xlu0 %v953, 40
        %v4256 = vpop.permute.xlu0 %4255
        %4257 = vrot.lane.b32.xlu0 %v956, 40
        %v4258 = vpop.permute.xlu0 %4257
        %4259 = vrot.lane.b32.xlu0 %v959, 40
        %v4260 = vpop.permute.xlu0 %4259
        %v4266 = vsel %vm482, %v4174, 0
        %v4269 = vsel %vm482, %v4176, 0
        %v4272 = vsel %vm482, %v4178, 0
        %v4275 = vsel %vm482, %v4180, 0
        %4277 = vmatpush.msra.mxu0 0.0
        %4278 = vmatpush.msra.mxu0 0.0
        %4279 = vmatpush.msra.mxu0 0.0
        %4280 = vmatpush.msra.mxu0 0.0
        %4281 = vmatpush.msra.mxu0 0.0
        %4282 = vmatpush.msra.mxu0 0.0
        %4283 = vmatpush.msra.mxu0 0.0
        %4284 = vmatpush.msra.mxu0 0.0
        %4285 = vmatpush.msra.mxu0 0.0
        %4286 = vmatpush.msra.mxu0 0.0
        %4287 = vmatpush.msra.mxu0 0.0
        %4288 = vmatpush.msra.mxu0 0.0
        %4289 = vmatpush.msra.mxu0 %v4260
        %4290 = vmatpush.msra.mxu0 %v4258
        %4291 = vmatpush.msra.mxu0 %v4256
        %4292 = vmatpush.msra.mxu0 %v4254
        %4293 = vmatmul.f32.gmra.mxu0 %v4266
        %v4294 = vpop.f32.mrf.mxu0
        %v4295 = vadd.f32 0.0, %v4294
        %4296 = vmatmul.f32.gmra.mxu0 %v4269
        %v4297 = vpop.f32.mrf.mxu0
        %v4298 = vadd.f32 0.0, %v4297
        %4299 = vmatmul.f32.gmra.mxu0 %v4272
        %v4300 = vpop.f32.mrf.mxu0
        %v4301 = vadd.f32 0.0, %v4300
        %4302 = vmatmul.f32.gmra.mxu0 %v4275
        %v4303 = vpop.f32.mrf.mxu0
        %v4304 = vadd.f32 0.0, %v4303
        %4305 = vdwg.mxu0
        %4306 = vrot.lane.b32.xlu0 %v962, 40
        %v4307 = vpop.permute.xlu0 %4306
        %4308 = vrot.lane.b32.xlu0 %v965, 40
        %v4309 = vpop.permute.xlu0 %4308
        %4310 = vrot.lane.b32.xlu0 %v968, 40
        %v4311 = vpop.permute.xlu0 %4310
        %4312 = vrot.lane.b32.xlu0 %v971, 40
        %v4313 = vpop.permute.xlu0 %4312
        %v4319 = vsel %vm482, %v4182, 0
        %v4322 = vsel %vm482, %v4184, 0
        %v4325 = vsel %vm482, %v4186, 0
        %v4328 = vsel %vm482, %v4188, 0
        %4330 = vmatpush.msra.mxu0 0.0
        %4331 = vmatpush.msra.mxu0 0.0
        %4332 = vmatpush.msra.mxu0 0.0
        %4333 = vmatpush.msra.mxu0 0.0
        %4334 = vmatpush.msra.mxu0 0.0
        %4335 = vmatpush.msra.mxu0 0.0
        %4336 = vmatpush.msra.mxu0 0.0
        %4337 = vmatpush.msra.mxu0 0.0
        %4338 = vmatpush.msra.mxu0 0.0
        %4339 = vmatpush.msra.mxu0 0.0
        %4340 = vmatpush.msra.mxu0 0.0
        %4341 = vmatpush.msra.mxu0 0.0
        %4342 = vmatpush.msra.mxu0 %v4313
        %4343 = vmatpush.msra.mxu0 %v4311
        %4344 = vmatpush.msra.mxu0 %v4309
        %4345 = vmatpush.msra.mxu0 %v4307
        %4346 = vmatmul.f32.gmra.mxu0 %v4319
        %v4347 = vpop.f32.mrf.mxu0
        %v4348 = vadd.f32 0.0, %v4347
        %4349 = vmatmul.f32.gmra.mxu0 %v4322
        %v4350 = vpop.f32.mrf.mxu0
        %v4351 = vadd.f32 0.0, %v4350
        %4352 = vmatmul.f32.gmra.mxu0 %v4325
        %v4353 = vpop.f32.mrf.mxu0
        %v4354 = vadd.f32 0.0, %v4353
        %4355 = vmatmul.f32.gmra.mxu0 %v4328
        %v4356 = vpop.f32.mrf.mxu0
        %v4357 = vadd.f32 0.0, %v4356
        %4358 = vdwg.mxu0
        %4359 = vrot.lane.b32.xlu0 %v974, 40
        %v4360 = vpop.permute.xlu0 %4359
        %4361 = vrot.lane.b32.xlu0 %v977, 40
        %v4362 = vpop.permute.xlu0 %4361
        %4363 = vrot.lane.b32.xlu0 %v980, 40
        %v4364 = vpop.permute.xlu0 %4363
        %4365 = vrot.lane.b32.xlu0 %v983, 40
        %v4366 = vpop.permute.xlu0 %4365
        %v4372 = vsel %vm482, %v4190, 0
        %v4375 = vsel %vm482, %v4192, 0
        %v4378 = vsel %vm482, %v4194, 0
        %v4381 = vsel %vm482, %v4196, 0
        %4383 = vmatpush.msra.mxu0 0.0
        %4384 = vmatpush.msra.mxu0 0.0
        %4385 = vmatpush.msra.mxu0 0.0
        %4386 = vmatpush.msra.mxu0 0.0
        %4387 = vmatpush.msra.mxu0 0.0
        %4388 = vmatpush.msra.mxu0 0.0
        %4389 = vmatpush.msra.mxu0 0.0
        %4390 = vmatpush.msra.mxu0 0.0
        %4391 = vmatpush.msra.mxu0 0.0
        %4392 = vmatpush.msra.mxu0 0.0
        %4393 = vmatpush.msra.mxu0 0.0
        %4394 = vmatpush.msra.mxu0 0.0
        %4395 = vmatpush.msra.mxu0 %v4366
        %4396 = vmatpush.msra.mxu0 %v4364
        %4397 = vmatpush.msra.mxu0 %v4362
        %4398 = vmatpush.msra.mxu0 %v4360
        %4399 = vmatmul.f32.gmra.mxu0 %v4372
        %v4400 = vpop.f32.mrf.mxu0
        %v4401 = vadd.f32 0.0, %v4400
        %4402 = vmatmul.f32.gmra.mxu0 %v4375
        %v4403 = vpop.f32.mrf.mxu0
        %v4404 = vadd.f32 0.0, %v4403
        %4405 = vmatmul.f32.gmra.mxu0 %v4378
        %v4406 = vpop.f32.mrf.mxu0
        %v4407 = vadd.f32 0.0, %v4406
        %4408 = vmatmul.f32.gmra.mxu0 %v4381
        %v4409 = vpop.f32.mrf.mxu0
        %v4410 = vadd.f32 0.0, %v4409
        %4411 = vdwg.mxu0
        %4412 = vrot.lane.b32.xlu0 %v986, 40
        %v4413 = vpop.permute.xlu0 %4412
        %4414 = vrot.lane.b32.xlu0 %v989, 40
        %v4415 = vpop.permute.xlu0 %4414
        %4416 = vrot.lane.b32.xlu0 %v992, 40
        %v4417 = vpop.permute.xlu0 %4416
        %4418 = vrot.lane.b32.xlu0 %v995, 40
        %v4419 = vpop.permute.xlu0 %4418
        %v4425 = vsel %vm482, %v4198, 0
        %v4428 = vsel %vm482, %v4200, 0
        %v4431 = vsel %vm482, %v4202, 0
        %v4434 = vsel %vm482, %v4204, 0
        %4436 = vmatpush.msra.mxu0 0.0
        %4437 = vmatpush.msra.mxu0 0.0
        %4438 = vmatpush.msra.mxu0 0.0
        %4439 = vmatpush.msra.mxu0 0.0
        %4440 = vmatpush.msra.mxu0 0.0
        %4441 = vmatpush.msra.mxu0 0.0
        %4442 = vmatpush.msra.mxu0 0.0
        %4443 = vmatpush.msra.mxu0 0.0
        %4444 = vmatpush.msra.mxu0 0.0
        %4445 = vmatpush.msra.mxu0 0.0
        %4446 = vmatpush.msra.mxu0 0.0
        %4447 = vmatpush.msra.mxu0 0.0
        %4448 = vmatpush.msra.mxu0 %v4419
        %4449 = vmatpush.msra.mxu0 %v4417
        %4450 = vmatpush.msra.mxu0 %v4415
        %4451 = vmatpush.msra.mxu0 %v4413
        %4452 = vmatmul.f32.gmra.mxu0 %v4425
        %v4453 = vpop.f32.mrf.mxu0
        %v4454 = vadd.f32 0.0, %v4453
        %4455 = vmatmul.f32.gmra.mxu0 %v4428
        %v4456 = vpop.f32.mrf.mxu0
        %v4457 = vadd.f32 0.0, %v4456
        %4458 = vmatmul.f32.gmra.mxu0 %v4431
        %v4459 = vpop.f32.mrf.mxu0
        %v4460 = vadd.f32 0.0, %v4459
        %4461 = vmatmul.f32.gmra.mxu0 %v4434
        %v4462 = vpop.f32.mrf.mxu0
        %v4463 = vadd.f32 0.0, %v4462
        %4464 = vdwg.mxu0
        %v4465 = vrcp.pop %v4207
        %v4466 = vmul.f32 %v4207, %v4465
        %v4467 = vsub.f32 1.0, %v4466
        %v4468 = vmul.f32 %v4465, %v4467
        %v4469 = vadd.f32 %v4465, %v4468
        %vm4470 = vweird.f32 %v4207
        %vm4471 = vweird.f32 %v4465
        %vm4472 = vmor %vm4470, %vm4471
        %v4473 = vsel %vm4472, %v4465, %v4469
        %v4474 = vand.u32 2147483647, %v4207
        %vm4475 = vcmp.eq.f32.partialorder %v4474, 8.507059e+37
        %v4476 = vand.u32 %v4207, 2147483648
        %v4477 = vor.u32 1.1754944e-38, %v4476
        %v4478 = vsel %vm4475, %v4477, %v4473
        %v4479 = vmul.f32 %v4295, %v4478
        %v4480 = vrcp.pop %v4210
        %v4481 = vmul.f32 %v4210, %v4480
        %v4482 = vsub.f32 1.0, %v4481
        %v4483 = vmul.f32 %v4480, %v4482
        %v4484 = vadd.f32 %v4480, %v4483
        %vm4485 = vweird.f32 %v4210
        %vm4486 = vweird.f32 %v4480
        %vm4487 = vmor %vm4485, %vm4486
        %v4488 = vsel %vm4487, %v4480, %v4484
        %v4489 = vand.u32 2147483647, %v4210
        %vm4490 = vcmp.eq.f32.partialorder %v4489, 8.507059e+37
        %v4491 = vand.u32 %v4210, 2147483648
        %v4492 = vor.u32 1.1754944e-38, %v4491
        %v4493 = vsel %vm4490, %v4492, %v4488
        %v4494 = vmul.f32 %v4298, %v4493
        %v4495 = vrcp.pop %v4213
        %v4496 = vmul.f32 %v4213, %v4495
        %v4497 = vsub.f32 1.0, %v4496
        %v4498 = vmul.f32 %v4495, %v4497
        %v4499 = vadd.f32 %v4495, %v4498
        %vm4500 = vweird.f32 %v4213
        %vm4501 = vweird.f32 %v4495
        %vm4502 = vmor %vm4500, %vm4501
        %v4503 = vsel %vm4502, %v4495, %v4499
        %v4504 = vand.u32 2147483647, %v4213
        %vm4505 = vcmp.eq.f32.partialorder %v4504, 8.507059e+37
        %v4506 = vand.u32 %v4213, 2147483648
        %v4507 = vor.u32 1.1754944e-38, %v4506
        %v4508 = vsel %vm4505, %v4507, %v4503
        %v4509 = vmul.f32 %v4301, %v4508
        %v4510 = vrcp.pop %v4216
        %v4511 = vmul.f32 %v4216, %v4510
        %v4512 = vsub.f32 1.0, %v4511
        %v4513 = vmul.f32 %v4510, %v4512
        %v4514 = vadd.f32 %v4510, %v4513
        %vm4515 = vweird.f32 %v4216
        %vm4516 = vweird.f32 %v4510
        %vm4517 = vmor %vm4515, %vm4516
        %v4518 = vsel %vm4517, %v4510, %v4514
        %v4519 = vand.u32 2147483647, %v4216
        %vm4520 = vcmp.eq.f32.partialorder %v4519, 8.507059e+37
        %v4521 = vand.u32 %v4216, 2147483648
        %v4522 = vor.u32 1.1754944e-38, %v4521
        %v4523 = vsel %vm4520, %v4522, %v4518
        %v4524 = vmul.f32 %v4304, %v4523
        %v4525 = vrcp.pop %v4219
        %v4526 = vmul.f32 %v4219, %v4525
        %v4527 = vsub.f32 1.0, %v4526
        %v4528 = vmul.f32 %v4525, %v4527
        %v4529 = vadd.f32 %v4525, %v4528
        %vm4530 = vweird.f32 %v4219
        %vm4531 = vweird.f32 %v4525
        %vm4532 = vmor %vm4530, %vm4531
        %v4533 = vsel %vm4532, %v4525, %v4529
        %v4534 = vand.u32 2147483647, %v4219
        %vm4535 = vcmp.eq.f32.partialorder %v4534, 8.507059e+37
        %v4536 = vand.u32 %v4219, 2147483648
        %v4537 = vor.u32 1.1754944e-38, %v4536
        %v4538 = vsel %vm4535, %v4537, %v4533
        %v4539 = vmul.f32 %v4348, %v4538
        %v4540 = vrcp.pop %v4222
        %v4541 = vmul.f32 %v4222, %v4540
        %v4542 = vsub.f32 1.0, %v4541
        %v4543 = vmul.f32 %v4540, %v4542
        %v4544 = vadd.f32 %v4540, %v4543
        %vm4545 = vweird.f32 %v4222
        %vm4546 = vweird.f32 %v4540
        %vm4547 = vmor %vm4545, %vm4546
        %v4548 = vsel %vm4547, %v4540, %v4544
        %v4549 = vand.u32 2147483647, %v4222
        %vm4550 = vcmp.eq.f32.partialorder %v4549, 8.507059e+37
        %v4551 = vand.u32 %v4222, 2147483648
        %v4552 = vor.u32 1.1754944e-38, %v4551
        %v4553 = vsel %vm4550, %v4552, %v4548
        %v4554 = vmul.f32 %v4351, %v4553
        %v4555 = vrcp.pop %v4225
        %v4556 = vmul.f32 %v4225, %v4555
        %v4557 = vsub.f32 1.0, %v4556
        %v4558 = vmul.f32 %v4555, %v4557
        %v4559 = vadd.f32 %v4555, %v4558
        %vm4560 = vweird.f32 %v4225
        %vm4561 = vweird.f32 %v4555
        %vm4562 = vmor %vm4560, %vm4561
        %v4563 = vsel %vm4562, %v4555, %v4559
        %v4564 = vand.u32 2147483647, %v4225
        %vm4565 = vcmp.eq.f32.partialorder %v4564, 8.507059e+37
        %v4566 = vand.u32 %v4225, 2147483648
        %v4567 = vor.u32 1.1754944e-38, %v4566
        %v4568 = vsel %vm4565, %v4567, %v4563
        %v4569 = vmul.f32 %v4354, %v4568
        %v4570 = vrcp.pop %v4228
        %v4571 = vmul.f32 %v4228, %v4570
        %v4572 = vsub.f32 1.0, %v4571
        %v4573 = vmul.f32 %v4570, %v4572
        %v4574 = vadd.f32 %v4570, %v4573
        %vm4575 = vweird.f32 %v4228
        %vm4576 = vweird.f32 %v4570
        %vm4577 = vmor %vm4575, %vm4576
        %v4578 = vsel %vm4577, %v4570, %v4574
        %v4579 = vand.u32 2147483647, %v4228
        %vm4580 = vcmp.eq.f32.partialorder %v4579, 8.507059e+37
        %v4581 = vand.u32 %v4228, 2147483648
        %v4582 = vor.u32 1.1754944e-38, %v4581
        %v4583 = vsel %vm4580, %v4582, %v4578
        %v4584 = vmul.f32 %v4357, %v4583
        %v4585 = vrcp.pop %v4231
        %v4586 = vmul.f32 %v4231, %v4585
        %v4587 = vsub.f32 1.0, %v4586
        %v4588 = vmul.f32 %v4585, %v4587
        %v4589 = vadd.f32 %v4585, %v4588
        %vm4590 = vweird.f32 %v4231
        %vm4591 = vweird.f32 %v4585
        %vm4592 = vmor %vm4590, %vm4591
        %v4593 = vsel %vm4592, %v4585, %v4589
        %v4594 = vand.u32 2147483647, %v4231
        %vm4595 = vcmp.eq.f32.partialorder %v4594, 8.507059e+37
        %v4596 = vand.u32 %v4231, 2147483648
        %v4597 = vor.u32 1.1754944e-38, %v4596
        %v4598 = vsel %vm4595, %v4597, %v4593
        %v4599 = vmul.f32 %v4401, %v4598
        %v4600 = vrcp.pop %v4234
        %v4601 = vmul.f32 %v4234, %v4600
        %v4602 = vsub.f32 1.0, %v4601
        %v4603 = vmul.f32 %v4600, %v4602
        %v4604 = vadd.f32 %v4600, %v4603
        %vm4605 = vweird.f32 %v4234
        %vm4606 = vweird.f32 %v4600
        %vm4607 = vmor %vm4605, %vm4606
        %v4608 = vsel %vm4607, %v4600, %v4604
        %v4609 = vand.u32 2147483647, %v4234
        %vm4610 = vcmp.eq.f32.partialorder %v4609, 8.507059e+37
        %v4611 = vand.u32 %v4234, 2147483648
        %v4612 = vor.u32 1.1754944e-38, %v4611
        %v4613 = vsel %vm4610, %v4612, %v4608
        %v4614 = vmul.f32 %v4404, %v4613
        %v4615 = vrcp.pop %v4237
        %v4616 = vmul.f32 %v4237, %v4615
        %v4617 = vsub.f32 1.0, %v4616
        %v4618 = vmul.f32 %v4615, %v4617
        %v4619 = vadd.f32 %v4615, %v4618
        %vm4620 = vweird.f32 %v4237
        %vm4621 = vweird.f32 %v4615
        %vm4622 = vmor %vm4620, %vm4621
        %v4623 = vsel %vm4622, %v4615, %v4619
        %v4624 = vand.u32 2147483647, %v4237
        %vm4625 = vcmp.eq.f32.partialorder %v4624, 8.507059e+37
        %v4626 = vand.u32 %v4237, 2147483648
        %v4627 = vor.u32 1.1754944e-38, %v4626
        %v4628 = vsel %vm4625, %v4627, %v4623
        %v4629 = vmul.f32 %v4407, %v4628
        %v4630 = vrcp.pop %v4240
        %v4631 = vmul.f32 %v4240, %v4630
        %v4632 = vsub.f32 1.0, %v4631
        %v4633 = vmul.f32 %v4630, %v4632
        %v4634 = vadd.f32 %v4630, %v4633
        %vm4635 = vweird.f32 %v4240
        %vm4636 = vweird.f32 %v4630
        %vm4637 = vmor %vm4635, %vm4636
        %v4638 = vsel %vm4637, %v4630, %v4634
        %v4639 = vand.u32 2147483647, %v4240
        %vm4640 = vcmp.eq.f32.partialorder %v4639, 8.507059e+37
        %v4641 = vand.u32 %v4240, 2147483648
        %v4642 = vor.u32 1.1754944e-38, %v4641
        %v4643 = vsel %vm4640, %v4642, %v4638
        %v4644 = vmul.f32 %v4410, %v4643
        %v4645 = vrcp.pop %v4243
        %v4646 = vmul.f32 %v4243, %v4645
        %v4647 = vsub.f32 1.0, %v4646
        %v4648 = vmul.f32 %v4645, %v4647
        %v4649 = vadd.f32 %v4645, %v4648
        %vm4650 = vweird.f32 %v4243
        %vm4651 = vweird.f32 %v4645
        %vm4652 = vmor %vm4650, %vm4651
        %v4653 = vsel %vm4652, %v4645, %v4649
        %v4654 = vand.u32 2147483647, %v4243
        %vm4655 = vcmp.eq.f32.partialorder %v4654, 8.507059e+37
        %v4656 = vand.u32 %v4243, 2147483648
        %v4657 = vor.u32 1.1754944e-38, %v4656
        %v4658 = vsel %vm4655, %v4657, %v4653
        %v4659 = vmul.f32 %v4454, %v4658
        %v4660 = vrcp.pop %v4246
        %v4661 = vmul.f32 %v4246, %v4660
        %v4662 = vsub.f32 1.0, %v4661
        %v4663 = vmul.f32 %v4660, %v4662
        %v4664 = vadd.f32 %v4660, %v4663
        %vm4665 = vweird.f32 %v4246
        %vm4666 = vweird.f32 %v4660
        %vm4667 = vmor %vm4665, %vm4666
        %v4668 = vsel %vm4667, %v4660, %v4664
        %v4669 = vand.u32 2147483647, %v4246
        %vm4670 = vcmp.eq.f32.partialorder %v4669, 8.507059e+37
        %v4671 = vand.u32 %v4246, 2147483648
        %v4672 = vor.u32 1.1754944e-38, %v4671
        %v4673 = vsel %vm4670, %v4672, %v4668
        %v4674 = vmul.f32 %v4457, %v4673
        %v4675 = vrcp.pop %v4249
        %v4676 = vmul.f32 %v4249, %v4675
        %v4677 = vsub.f32 1.0, %v4676
        %v4678 = vmul.f32 %v4675, %v4677
        %v4679 = vadd.f32 %v4675, %v4678
        %vm4680 = vweird.f32 %v4249
        %vm4681 = vweird.f32 %v4675
        %vm4682 = vmor %vm4680, %vm4681
        %v4683 = vsel %vm4682, %v4675, %v4679
        %v4684 = vand.u32 2147483647, %v4249
        %vm4685 = vcmp.eq.f32.partialorder %v4684, 8.507059e+37
        %v4686 = vand.u32 %v4249, 2147483648
        %v4687 = vor.u32 1.1754944e-38, %v4686
        %v4688 = vsel %vm4685, %v4687, %v4683
        %v4689 = vmul.f32 %v4460, %v4688
        %v4690 = vrcp.pop %v4252
        %v4691 = vmul.f32 %v4252, %v4690
        %v4692 = vsub.f32 1.0, %v4691
        %v4693 = vmul.f32 %v4690, %v4692
        %v4694 = vadd.f32 %v4690, %v4693
        %vm4695 = vweird.f32 %v4252
        %vm4696 = vweird.f32 %v4690
        %vm4697 = vmor %vm4695, %vm4696
        %v4698 = vsel %vm4697, %v4690, %v4694
        %v4699 = vand.u32 2147483647, %v4252
        %vm4700 = vcmp.eq.f32.partialorder %v4699, 8.507059e+37
        %v4701 = vand.u32 %v4252, 2147483648
        %v4702 = vor.u32 1.1754944e-38, %v4701
        %v4703 = vsel %vm4700, %v4702, %v4698
        %v4704 = vmul.f32 %v4463, %v4703
        %v4706 = vsel %vm1017, %v4479, 0
        %v4709 = vsel %vm1017, %v4494, 0
        %v4712 = vsel %vm1017, %v4509, 0
        %v4715 = vsel %vm1017, %v4524, 0
        %v4718 = vsel %vm1017, %v4539, 0
        %v4721 = vsel %vm1017, %v4554, 0
        %v4724 = vsel %vm1017, %v4569, 0
        %v4727 = vsel %vm1017, %v4584, 0
        %v4730 = vsel %vm1017, %v4599, 0
        %v4733 = vsel %vm1017, %v4614, 0
        %v4736 = vsel %vm1017, %v4629, 0
        %v4739 = vsel %vm1017, %v4644, 0
        %v4742 = vsel %vm1017, %v4659, 0
        %v4745 = vsel %vm1017, %v4674, 0
        %v4748 = vsel %vm1017, %v4689, 0
        %v4751 = vsel %vm1017, %v4704, 0
        %4753 = vmatpush.msra.mxu0 0.0
        %4754 = vmatpush.msra.mxu0 0.0
        %4755 = vmatpush.msra.mxu0 0.0
        %4756 = vmatpush.msra.mxu0 0.0
        %4757 = vmatpush.msra.mxu0 0.0
        %4758 = vmatpush.msra.mxu0 0.0
        %4759 = vmatpush.msra.mxu0 0.0
        %4760 = vmatpush.msra.mxu0 0.0
        %4761 = vmatpush.msra.mxu0 0.0
        %4762 = vmatpush.msra.mxu0 0.0
        %4763 = vmatpush.msra.mxu0 0.0
        %4764 = vmatpush.msra.mxu0 0.0
        %4765 = vmatpush.msra.mxu0 0.0
        %4766 = vmatpush.msra.mxu0 0.0
        %4767 = vmatpush.msra.mxu0 0.0
        %4768 = vmatpush.msra.mxu0 %v1004
        %4769 = vmatmul.f32.gmra.mxu0 %v4706
        %v4770 = vpop.f32.mrf.mxu0
        %v4771 = vadd.f32 0.0, %v4770
        %4772 = vmatmul.f32.gmra.mxu0 %v4709
        %v4773 = vpop.f32.mrf.mxu0
        %v4774 = vadd.f32 0.0, %v4773
        %4775 = vmatmul.f32.gmra.mxu0 %v4712
        %v4776 = vpop.f32.mrf.mxu0
        %v4777 = vadd.f32 0.0, %v4776
        %4778 = vmatmul.f32.gmra.mxu0 %v4715
        %v4779 = vpop.f32.mrf.mxu0
        %v4780 = vadd.f32 0.0, %v4779
        %4781 = vmatmul.f32.gmra.mxu0 %v4718
        %v4782 = vpop.f32.mrf.mxu0
        %v4783 = vadd.f32 0.0, %v4782
        %4784 = vmatmul.f32.gmra.mxu0 %v4721
        %v4785 = vpop.f32.mrf.mxu0
        %v4786 = vadd.f32 0.0, %v4785
        %4787 = vmatmul.f32.gmra.mxu0 %v4724
        %v4788 = vpop.f32.mrf.mxu0
        %v4789 = vadd.f32 0.0, %v4788
        %4790 = vmatmul.f32.gmra.mxu0 %v4727
        %v4791 = vpop.f32.mrf.mxu0
        %v4792 = vadd.f32 0.0, %v4791
        %4793 = vmatmul.f32.gmra.mxu0 %v4730
        %v4794 = vpop.f32.mrf.mxu0
        %v4795 = vadd.f32 0.0, %v4794
        %4796 = vmatmul.f32.gmra.mxu0 %v4733
        %v4797 = vpop.f32.mrf.mxu0
        %v4798 = vadd.f32 0.0, %v4797
        %4799 = vmatmul.f32.gmra.mxu0 %v4736
        %v4800 = vpop.f32.mrf.mxu0
        %v4801 = vadd.f32 0.0, %v4800
        %4802 = vmatmul.f32.gmra.mxu0 %v4739
        %v4803 = vpop.f32.mrf.mxu0
        %v4804 = vadd.f32 0.0, %v4803
        %4805 = vmatmul.f32.gmra.mxu0 %v4742
        %v4806 = vpop.f32.mrf.mxu0
        %v4807 = vadd.f32 0.0, %v4806
        %4808 = vmatmul.f32.gmra.mxu0 %v4745
        %v4809 = vpop.f32.mrf.mxu0
        %v4810 = vadd.f32 0.0, %v4809
        %4811 = vmatmul.f32.gmra.mxu0 %v4748
        %v4812 = vpop.f32.mrf.mxu0
        %v4813 = vadd.f32 0.0, %v4812
        %4814 = vmatmul.f32.gmra.mxu0 %v4751
        %v4815 = vpop.f32.mrf.mxu0
        %v4816 = vadd.f32 0.0, %v4815
        %4817 = vdwg.mxu0
        %v4818 = vadd.f32 %v3849, %v4771
        %v4819 = vadd.f32 %v3850, %v4774
        %v4820 = vadd.f32 %v3851, %v4777
        %v4821 = vadd.f32 %v3852, %v4780
        %v4822 = vadd.f32 %v3853, %v4783
        %v4823 = vadd.f32 %v3854, %v4786
        %v4824 = vadd.f32 %v3855, %v4789
        %v4825 = vadd.f32 %v3856, %v4792
        %v4826 = vadd.f32 %v3857, %v4795
        %v4827 = vadd.f32 %v3858, %v4798
        %v4828 = vadd.f32 %v3859, %v4801
        %v4829 = vadd.f32 %v3860, %v4804
        %v4830 = vadd.f32 %v3861, %v4807
        %v4831 = vadd.f32 %v3862, %v4810
        %v4832 = vadd.f32 %v3863, %v4813
        %v4833 = vadd.f32 %v3864, %v4816
        %v4834 = vadd.f32 %v464, %v4818
        %v4835 = vadd.f32 %v465, %v4819
        %v4836 = vadd.f32 %v466, %v4820
        %v4837 = vadd.f32 %v467, %v4821
        %v4838 = vadd.f32 %v468, %v4822
        %v4839 = vadd.f32 %v469, %v4823
        %v4840 = vadd.f32 %v470, %v4824
        %v4841 = vadd.f32 %v471, %v4825
        %v4842 = vadd.f32 %v472, %v4826
        %v4843 = vadd.f32 %v473, %v4827
        %v4844 = vadd.f32 %v474, %v4828
        %v4845 = vadd.f32 %v475, %v4829
        %v4846 = vadd.f32 %v476, %v4830
        %v4847 = vadd.f32 %v477, %v4831
        %v4848 = vadd.f32 %v478, %v4832
        %v4849 = vadd.f32 %v479, %v4833
        %v4850 = vld [vmem:[%s6] sm:$0x1]
        %v4852 = vperm.slane %v4850, 0
        %v4854 = vadd.f32 %v4834, %v4852
        %v4855 = vadd.f32 %v4835, %v4852
        %v4856 = vadd.f32 %v4836, %v4852
        %v4857 = vadd.f32 %v4837, %v4852
        %v4858 = vadd.f32 %v4838, %v4852
        %v4859 = vadd.f32 %v4839, %v4852
        %v4860 = vadd.f32 %v4840, %v4852
        %v4861 = vadd.f32 %v4841, %v4852
        %v4862 = vadd.f32 %v4842, %v4852
        %v4863 = vadd.f32 %v4843, %v4852
        %v4864 = vadd.f32 %v4844, %v4852
        %v4865 = vadd.f32 %v4845, %v4852
        %v4866 = vadd.f32 %v4846, %v4852
        %v4867 = vadd.f32 %v4847, %v4852
        %v4868 = vadd.f32 %v4848, %v4852
        %v4869 = vadd.f32 %v4849, %v4852
        %v4870 = vld [vmem:[%s7] sm:$0x1]
        %v4871 = vld [vmem:[%s8] sm:$0x1]
        %v4872 = vsel %vm482, %v4854, 0.0
        %4873 = vadd.xlane.f32.xlu0 %v4872
        %v4874 = vpop.xlane.xlu0 %4873
        %v4875 = vsel %vm482, %v4855, 0.0
        %4876 = vadd.xlane.f32.xlu0 %v4875
        %v4877 = vpop.xlane.xlu0 %4876
        %v4878 = vsel %vm482, %v4856, 0.0
        %4879 = vadd.xlane.f32.xlu0 %v4878
        %v4880 = vpop.xlane.xlu0 %4879
        %v4881 = vsel %vm482, %v4857, 0.0
        %4882 = vadd.xlane.f32.xlu0 %v4881
        %v4883 = vpop.xlane.xlu0 %4882
        %v4884 = vsel %vm482, %v4858, 0.0
        %4885 = vadd.xlane.f32.xlu0 %v4884
        %v4886 = vpop.xlane.xlu0 %4885
        %v4887 = vsel %vm482, %v4859, 0.0
        %4888 = vadd.xlane.f32.xlu0 %v4887
        %v4889 = vpop.xlane.xlu0 %4888
        %v4890 = vsel %vm482, %v4860, 0.0
        %4891 = vadd.xlane.f32.xlu0 %v4890
        %v4892 = vpop.xlane.xlu0 %4891
        %v4893 = vsel %vm482, %v4861, 0.0
        %4894 = vadd.xlane.f32.xlu0 %v4893
        %v4895 = vpop.xlane.xlu0 %4894
        %v4896 = vsel %vm482, %v4862, 0.0
        %4897 = vadd.xlane.f32.xlu0 %v4896
        %v4898 = vpop.xlane.xlu0 %4897
        %v4899 = vsel %vm482, %v4863, 0.0
        %4900 = vadd.xlane.f32.xlu0 %v4899
        %v4901 = vpop.xlane.xlu0 %4900
        %v4902 = vsel %vm482, %v4864, 0.0
        %4903 = vadd.xlane.f32.xlu0 %v4902
        %v4904 = vpop.xlane.xlu0 %4903
        %v4905 = vsel %vm482, %v4865, 0.0
        %4906 = vadd.xlane.f32.xlu0 %v4905
        %v4907 = vpop.xlane.xlu0 %4906
        %v4908 = vsel %vm482, %v4866, 0.0
        %4909 = vadd.xlane.f32.xlu0 %v4908
        %v4910 = vpop.xlane.xlu0 %4909
        %v4911 = vsel %vm482, %v4867, 0.0
        %4912 = vadd.xlane.f32.xlu0 %v4911
        %v4913 = vpop.xlane.xlu0 %4912
        %v4914 = vsel %vm482, %v4868, 0.0
        %4915 = vadd.xlane.f32.xlu0 %v4914
        %v4916 = vpop.xlane.xlu0 %4915
        %v4917 = vsel %vm482, %v4869, 0.0
        %4918 = vadd.xlane.f32.xlu0 %v4917
        %v4919 = vpop.xlane.xlu0 %4918
        %v4920 = vmul.f32 %v4874, %v537
        %v4921 = vmul.f32 %v4877, %v537
        %v4922 = vmul.f32 %v4880, %v537
        %v4923 = vmul.f32 %v4883, %v537
        %v4924 = vmul.f32 %v4886, %v537
        %v4925 = vmul.f32 %v4889, %v537
        %v4926 = vmul.f32 %v4892, %v537
        %v4927 = vmul.f32 %v4895, %v537
        %v4928 = vmul.f32 %v4898, %v537
        %v4929 = vmul.f32 %v4901, %v537
        %v4930 = vmul.f32 %v4904, %v537
        %v4931 = vmul.f32 %v4907, %v537
        %v4932 = vmul.f32 %v4910, %v537
        %v4933 = vmul.f32 %v4913, %v537
        %v4934 = vmul.f32 %v4916, %v537
        %v4935 = vmul.f32 %v4919, %v537
        %v4936 = vsub.f32 %v4854, %v4920
        %v4937 = vsub.f32 %v4855, %v4921
        %v4938 = vsub.f32 %v4856, %v4922
        %v4939 = vsub.f32 %v4857, %v4923
        %v4940 = vsub.f32 %v4858, %v4924
        %v4941 = vsub.f32 %v4859, %v4925
        %v4942 = vsub.f32 %v4860, %v4926
        %v4943 = vsub.f32 %v4861, %v4927
        %v4944 = vsub.f32 %v4862, %v4928
        %v4945 = vsub.f32 %v4863, %v4929
        %v4946 = vsub.f32 %v4864, %v4930
        %v4947 = vsub.f32 %v4865, %v4931
        %v4948 = vsub.f32 %v4866, %v4932
        %v4949 = vsub.f32 %v4867, %v4933
        %v4950 = vsub.f32 %v4868, %v4934
        %v4951 = vsub.f32 %v4869, %v4935
        %v4952 = vmul.f32 %v4936, %v4936
        %v4953 = vmul.f32 %v4937, %v4937
        %v4954 = vmul.f32 %v4938, %v4938
        %v4955 = vmul.f32 %v4939, %v4939
        %v4956 = vmul.f32 %v4940, %v4940
        %v4957 = vmul.f32 %v4941, %v4941
        %v4958 = vmul.f32 %v4942, %v4942
        %v4959 = vmul.f32 %v4943, %v4943
        %v4960 = vmul.f32 %v4944, %v4944
        %v4961 = vmul.f32 %v4945, %v4945
        %v4962 = vmul.f32 %v4946, %v4946
        %v4963 = vmul.f32 %v4947, %v4947
        %v4964 = vmul.f32 %v4948, %v4948
        %v4965 = vmul.f32 %v4949, %v4949
        %v4966 = vmul.f32 %v4950, %v4950
        %v4967 = vmul.f32 %v4951, %v4951
        %v4968 = vsel %vm482, %v4952, 0.0
        %4969 = vadd.xlane.f32.xlu0 %v4968
        %v4970 = vpop.xlane.xlu0 %4969
        %v4971 = vsel %vm482, %v4953, 0.0
        %4972 = vadd.xlane.f32.xlu0 %v4971
        %v4973 = vpop.xlane.xlu0 %4972
        %v4974 = vsel %vm482, %v4954, 0.0
        %4975 = vadd.xlane.f32.xlu0 %v4974
        %v4976 = vpop.xlane.xlu0 %4975
        %v4977 = vsel %vm482, %v4955, 0.0
        %4978 = vadd.xlane.f32.xlu0 %v4977
        %v4979 = vpop.xlane.xlu0 %4978
        %v4980 = vsel %vm482, %v4956, 0.0
        %4981 = vadd.xlane.f32.xlu0 %v4980
        %v4982 = vpop.xlane.xlu0 %4981
        %v4983 = vsel %vm482, %v4957, 0.0
        %4984 = vadd.xlane.f32.xlu0 %v4983
        %v4985 = vpop.xlane.xlu0 %4984
        %v4986 = vsel %vm482, %v4958, 0.0
        %4987 = vadd.xlane.f32.xlu0 %v4986
        %v4988 = vpop.xlane.xlu0 %4987
        %v4989 = vsel %vm482, %v4959, 0.0
        %4990 = vadd.xlane.f32.xlu0 %v4989
        %v4991 = vpop.xlane.xlu0 %4990
        %v4992 = vsel %vm482, %v4960, 0.0
        %4993 = vadd.xlane.f32.xlu0 %v4992
        %v4994 = vpop.xlane.xlu0 %4993
        %v4995 = vsel %vm482, %v4961, 0.0
        %4996 = vadd.xlane.f32.xlu0 %v4995
        %v4997 = vpop.xlane.xlu0 %4996
        %v4998 = vsel %vm482, %v4962, 0.0
        %4999 = vadd.xlane.f32.xlu0 %v4998
        %v5000 = vpop.xlane.xlu0 %4999
        %v5001 = vsel %vm482, %v4963, 0.0
        %5002 = vadd.xlane.f32.xlu0 %v5001
        %v5003 = vpop.xlane.xlu0 %5002
        %v5004 = vsel %vm482, %v4964, 0.0
        %5005 = vadd.xlane.f32.xlu0 %v5004
        %v5006 = vpop.xlane.xlu0 %5005
        %v5007 = vsel %vm482, %v4965, 0.0
        %5008 = vadd.xlane.f32.xlu0 %v5007
        %v5009 = vpop.xlane.xlu0 %5008
        %v5010 = vsel %vm482, %v4966, 0.0
        %5011 = vadd.xlane.f32.xlu0 %v5010
        %v5012 = vpop.xlane.xlu0 %5011
        %v5013 = vsel %vm482, %v4967, 0.0
        %5014 = vadd.xlane.f32.xlu0 %v5013
        %v5015 = vpop.xlane.xlu0 %5014
        %v5016 = vmul.f32 %v4970, %v537
        %v5017 = vmul.f32 %v4973, %v537
        %v5018 = vmul.f32 %v4976, %v537
        %v5019 = vmul.f32 %v4979, %v537
        %v5020 = vmul.f32 %v4982, %v537
        %v5021 = vmul.f32 %v4985, %v537
        %v5022 = vmul.f32 %v4988, %v537
        %v5023 = vmul.f32 %v4991, %v537
        %v5024 = vmul.f32 %v4994, %v537
        %v5025 = vmul.f32 %v4997, %v537
        %v5026 = vmul.f32 %v5000, %v537
        %v5027 = vmul.f32 %v5003, %v537
        %v5028 = vmul.f32 %v5006, %v537
        %v5029 = vmul.f32 %v5009, %v537
        %v5030 = vmul.f32 %v5012, %v537
        %v5031 = vmul.f32 %v5015, %v537
        %v5032 = vadd.f32 %v5016, 1e-05
        %v5033 = vadd.f32 %v5017, 1e-05
        %v5034 = vadd.f32 %v5018, 1e-05
        %v5035 = vadd.f32 %v5019, 1e-05
        %v5036 = vadd.f32 %v5020, 1e-05
        %v5037 = vadd.f32 %v5021, 1e-05
        %v5038 = vadd.f32 %v5022, 1e-05
        %v5039 = vadd.f32 %v5023, 1e-05
        %v5040 = vadd.f32 %v5024, 1e-05
        %v5041 = vadd.f32 %v5025, 1e-05
        %v5042 = vadd.f32 %v5026, 1e-05
        %v5043 = vadd.f32 %v5027, 1e-05
        %v5044 = vadd.f32 %v5028, 1e-05
        %v5045 = vadd.f32 %v5029, 1e-05
        %v5046 = vadd.f32 %v5030, 1e-05
        %v5047 = vadd.f32 %v5031, 1e-05
        %v5048 = vrsqrt.pop %v5032
        %v5049 = vmul.f32 %v5048, %v5032
        %v5050 = vmul.f32 %v5049, %v5048
        %v5051 = vmul.f32 0.5, %v5050
        %v5052 = vsub.f32 1.5, %v5051
        %v5053 = vmul.f32 %v5048, %v5052
        %vm5054 = vweird.f32 %v5032
        %vm5055 = vweird.f32 %v5048
        %vm5056 = vmor %vm5054, %vm5055
        %v5057 = vsel %vm5056, %v5048, %v5053
        %v5058 = vrsqrt.pop %v5033
        %v5059 = vmul.f32 %v5058, %v5033
        %v5060 = vmul.f32 %v5059, %v5058
        %v5061 = vmul.f32 0.5, %v5060
        %v5062 = vsub.f32 1.5, %v5061
        %v5063 = vmul.f32 %v5058, %v5062
        %vm5064 = vweird.f32 %v5033
        %vm5065 = vweird.f32 %v5058
        %vm5066 = vmor %vm5064, %vm5065
        %v5067 = vsel %vm5066, %v5058, %v5063
        %v5068 = vrsqrt.pop %v5034
        %v5069 = vmul.f32 %v5068, %v5034
        %v5070 = vmul.f32 %v5069, %v5068
        %v5071 = vmul.f32 0.5, %v5070
        %v5072 = vsub.f32 1.5, %v5071
        %v5073 = vmul.f32 %v5068, %v5072
        %vm5074 = vweird.f32 %v5034
        %vm5075 = vweird.f32 %v5068
        %vm5076 = vmor %vm5074, %vm5075
        %v5077 = vsel %vm5076, %v5068, %v5073
        %v5078 = vrsqrt.pop %v5035
        %v5079 = vmul.f32 %v5078, %v5035
        %v5080 = vmul.f32 %v5079, %v5078
        %v5081 = vmul.f32 0.5, %v5080
        %v5082 = vsub.f32 1.5, %v5081
        %v5083 = vmul.f32 %v5078, %v5082
        %vm5084 = vweird.f32 %v5035
        %vm5085 = vweird.f32 %v5078
        %vm5086 = vmor %vm5084, %vm5085
        %v5087 = vsel %vm5086, %v5078, %v5083
        %v5088 = vrsqrt.pop %v5036
        %v5089 = vmul.f32 %v5088, %v5036
        %v5090 = vmul.f32 %v5089, %v5088
        %v5091 = vmul.f32 0.5, %v5090
        %v5092 = vsub.f32 1.5, %v5091
        %v5093 = vmul.f32 %v5088, %v5092
        %vm5094 = vweird.f32 %v5036
        %vm5095 = vweird.f32 %v5088
        %vm5096 = vmor %vm5094, %vm5095
        %v5097 = vsel %vm5096, %v5088, %v5093
        %v5098 = vrsqrt.pop %v5037
        %v5099 = vmul.f32 %v5098, %v5037
        %v5100 = vmul.f32 %v5099, %v5098
        %v5101 = vmul.f32 0.5, %v5100
        %v5102 = vsub.f32 1.5, %v5101
        %v5103 = vmul.f32 %v5098, %v5102
        %vm5104 = vweird.f32 %v5037
        %vm5105 = vweird.f32 %v5098
        %vm5106 = vmor %vm5104, %vm5105
        %v5107 = vsel %vm5106, %v5098, %v5103
        %v5108 = vrsqrt.pop %v5038
        %v5109 = vmul.f32 %v5108, %v5038
        %v5110 = vmul.f32 %v5109, %v5108
        %v5111 = vmul.f32 0.5, %v5110
        %v5112 = vsub.f32 1.5, %v5111
        %v5113 = vmul.f32 %v5108, %v5112
        %vm5114 = vweird.f32 %v5038
        %vm5115 = vweird.f32 %v5108
        %vm5116 = vmor %vm5114, %vm5115
        %v5117 = vsel %vm5116, %v5108, %v5113
        %v5118 = vrsqrt.pop %v5039
        %v5119 = vmul.f32 %v5118, %v5039
        %v5120 = vmul.f32 %v5119, %v5118
        %v5121 = vmul.f32 0.5, %v5120
        %v5122 = vsub.f32 1.5, %v5121
        %v5123 = vmul.f32 %v5118, %v5122
        %vm5124 = vweird.f32 %v5039
        %vm5125 = vweird.f32 %v5118
        %vm5126 = vmor %vm5124, %vm5125
        %v5127 = vsel %vm5126, %v5118, %v5123
        %v5128 = vrsqrt.pop %v5040
        %v5129 = vmul.f32 %v5128, %v5040
        %v5130 = vmul.f32 %v5129, %v5128
        %v5131 = vmul.f32 0.5, %v5130
        %v5132 = vsub.f32 1.5, %v5131
        %v5133 = vmul.f32 %v5128, %v5132
        %vm5134 = vweird.f32 %v5040
        %vm5135 = vweird.f32 %v5128
        %vm5136 = vmor %vm5134, %vm5135
        %v5137 = vsel %vm5136, %v5128, %v5133
        %v5138 = vrsqrt.pop %v5041
        %v5139 = vmul.f32 %v5138, %v5041
        %v5140 = vmul.f32 %v5139, %v5138
        %v5141 = vmul.f32 0.5, %v5140
        %v5142 = vsub.f32 1.5, %v5141
        %v5143 = vmul.f32 %v5138, %v5142
        %vm5144 = vweird.f32 %v5041
        %vm5145 = vweird.f32 %v5138
        %vm5146 = vmor %vm5144, %vm5145
        %v5147 = vsel %vm5146, %v5138, %v5143
        %v5148 = vrsqrt.pop %v5042
        %v5149 = vmul.f32 %v5148, %v5042
        %v5150 = vmul.f32 %v5149, %v5148
        %v5151 = vmul.f32 0.5, %v5150
        %v5152 = vsub.f32 1.5, %v5151
        %v5153 = vmul.f32 %v5148, %v5152
        %vm5154 = vweird.f32 %v5042
        %vm5155 = vweird.f32 %v5148
        %vm5156 = vmor %vm5154, %vm5155
        %v5157 = vsel %vm5156, %v5148, %v5153
        %v5158 = vrsqrt.pop %v5043
        %v5159 = vmul.f32 %v5158, %v5043
        %v5160 = vmul.f32 %v5159, %v5158
        %v5161 = vmul.f32 0.5, %v5160
        %v5162 = vsub.f32 1.5, %v5161
        %v5163 = vmul.f32 %v5158, %v5162
        %vm5164 = vweird.f32 %v5043
        %vm5165 = vweird.f32 %v5158
        %vm5166 = vmor %vm5164, %vm5165
        %v5167 = vsel %vm5166, %v5158, %v5163
        %v5168 = vrsqrt.pop %v5044
        %v5169 = vmul.f32 %v5168, %v5044
        %v5170 = vmul.f32 %v5169, %v5168
        %v5171 = vmul.f32 0.5, %v5170
        %v5172 = vsub.f32 1.5, %v5171
        %v5173 = vmul.f32 %v5168, %v5172
        %vm5174 = vweird.f32 %v5044
        %vm5175 = vweird.f32 %v5168
        %vm5176 = vmor %vm5174, %vm5175
        %v5177 = vsel %vm5176, %v5168, %v5173
        %v5178 = vrsqrt.pop %v5045
        %v5179 = vmul.f32 %v5178, %v5045
        %v5180 = vmul.f32 %v5179, %v5178
        %v5181 = vmul.f32 0.5, %v5180
        %v5182 = vsub.f32 1.5, %v5181
        %v5183 = vmul.f32 %v5178, %v5182
        %vm5184 = vweird.f32 %v5045
        %vm5185 = vweird.f32 %v5178
        %vm5186 = vmor %vm5184, %vm5185
        %v5187 = vsel %vm5186, %v5178, %v5183
        %v5188 = vrsqrt.pop %v5046
        %v5189 = vmul.f32 %v5188, %v5046
        %v5190 = vmul.f32 %v5189, %v5188
        %v5191 = vmul.f32 0.5, %v5190
        %v5192 = vsub.f32 1.5, %v5191
        %v5193 = vmul.f32 %v5188, %v5192
        %vm5194 = vweird.f32 %v5046
        %vm5195 = vweird.f32 %v5188
        %vm5196 = vmor %vm5194, %vm5195
        %v5197 = vsel %vm5196, %v5188, %v5193
        %v5198 = vrsqrt.pop %v5047
        %v5199 = vmul.f32 %v5198, %v5047
        %v5200 = vmul.f32 %v5199, %v5198
        %v5201 = vmul.f32 0.5, %v5200
        %v5202 = vsub.f32 1.5, %v5201
        %v5203 = vmul.f32 %v5198, %v5202
        %vm5204 = vweird.f32 %v5047
        %vm5205 = vweird.f32 %v5198
        %vm5206 = vmor %vm5204, %vm5205
        %v5207 = vsel %vm5206, %v5198, %v5203
        %v5208 = vmul.f32 %v4936, %v5057
        %v5209 = vmul.f32 %v4937, %v5067
        %v5210 = vmul.f32 %v4938, %v5077
        %v5211 = vmul.f32 %v4939, %v5087
        %v5212 = vmul.f32 %v4940, %v5097
        %v5213 = vmul.f32 %v4941, %v5107
        %v5214 = vmul.f32 %v4942, %v5117
        %v5215 = vmul.f32 %v4943, %v5127
        %v5216 = vmul.f32 %v4944, %v5137
        %v5217 = vmul.f32 %v4945, %v5147
        %v5218 = vmul.f32 %v4946, %v5157
        %v5219 = vmul.f32 %v4947, %v5167
        %v5220 = vmul.f32 %v4948, %v5177
        %v5221 = vmul.f32 %v4949, %v5187
        %v5222 = vmul.f32 %v4950, %v5197
        %v5223 = vmul.f32 %v4951, %v5207
        %v5225 = vperm.slane %v4870, 0
        %v5227 = vmul.f32 %v5208, %v5225
        %v5228 = vmul.f32 %v5209, %v5225
        %v5229 = vmul.f32 %v5210, %v5225
        %v5230 = vmul.f32 %v5211, %v5225
        %v5231 = vmul.f32 %v5212, %v5225
        %v5232 = vmul.f32 %v5213, %v5225
        %v5233 = vmul.f32 %v5214, %v5225
        %v5234 = vmul.f32 %v5215, %v5225
        %v5235 = vmul.f32 %v5216, %v5225
        %v5236 = vmul.f32 %v5217, %v5225
        %v5237 = vmul.f32 %v5218, %v5225
        %v5238 = vmul.f32 %v5219, %v5225
        %v5239 = vmul.f32 %v5220, %v5225
        %v5240 = vmul.f32 %v5221, %v5225
        %v5241 = vmul.f32 %v5222, %v5225
        %v5242 = vmul.f32 %v5223, %v5225
        %v5244 = vperm.slane %v4871, 0
        %v5246 = vadd.f32 %v5227, %v5244
        %v5247 = vadd.f32 %v5228, %v5244
        %v5248 = vadd.f32 %v5229, %v5244
        %v5249 = vadd.f32 %v5230, %v5244
        %v5250 = vadd.f32 %v5231, %v5244
        %v5251 = vadd.f32 %v5232, %v5244
        %v5252 = vadd.f32 %v5233, %v5244
        %v5253 = vadd.f32 %v5234, %v5244
        %v5254 = vadd.f32 %v5235, %v5244
        %v5255 = vadd.f32 %v5236, %v5244
        %v5256 = vadd.f32 %v5237, %v5244
        %v5257 = vadd.f32 %v5238, %v5244
        %v5258 = vadd.f32 %v5239, %v5244
        %v5259 = vadd.f32 %v5240, %v5244
        %v5260 = vadd.f32 %v5241, %v5244
        %v5261 = vadd.f32 %v5242, %v5244
        %v5262 = vld [vmem:[%s9] sm:$0xff]
        %v5263 = vld [vmem:[%s9 + $0x8] sm:$0xff]
        %v5264 = vld [vmem:[%s9 + $0x10] sm:$0xff]
        %v5265 = vld [vmem:[%s9 + $0x18] sm:$0xff]
        %v5266 = vld [vmem:[%s10] sm:$0x1]
        %v5268 = vperm.slane %v5266, 0
        %v5271 = vsel %vm482, %v5246, 0
        %v5274 = vsel %vm482, %v5247, 0
        %v5277 = vsel %vm482, %v5248, 0
        %v5280 = vsel %vm482, %v5249, 0
        %v5283 = vsel %vm482, %v5250, 0
        %v5286 = vsel %vm482, %v5251, 0
        %v5289 = vsel %vm482, %v5252, 0
        %v5292 = vsel %vm482, %v5253, 0
        %v5295 = vsel %vm482, %v5254, 0
        %v5298 = vsel %vm482, %v5255, 0
        %v5301 = vsel %vm482, %v5256, 0
        %v5304 = vsel %vm482, %v5257, 0
        %v5307 = vsel %vm482, %v5258, 0
        %v5310 = vsel %vm482, %v5259, 0
        %v5313 = vsel %vm482, %v5260, 0
        %v5316 = vsel %vm482, %v5261, 0
        %5318 = vmatpush.msra.mxu0 0.0
        %5319 = vmatpush.msra.mxu0 0.0
        %5320 = vmatpush.msra.mxu0 0.0
        %5321 = vmatpush.msra.mxu0 0.0
        %5322 = vmatpush.msra.mxu0 0.0
        %5323 = vmatpush.msra.mxu0 0.0
        %5324 = vmatpush.msra.mxu0 0.0
        %5325 = vmatpush.msra.mxu0 0.0
        %5326 = vmatpush.msra.mxu0 0.0
        %5327 = vmatpush.msra.mxu0 0.0
        %5328 = vmatpush.msra.mxu0 0.0
        %5329 = vmatpush.msra.mxu0 0.0
        %5330 = vmatpush.msra.mxu0 %v5265
        %5331 = vmatpush.msra.mxu0 %v5264
        %5332 = vmatpush.msra.mxu0 %v5263
        %5333 = vmatpush.msra.mxu0 %v5262
        %5334 = vmatmul.f32.gmra.mxu0 %v5271
        %v5335 = vpop.f32.mrf.mxu0
        %v5336 = vadd.f32 %v5268, %v5335
        %5337 = vmatmul.f32.gmra.mxu0 %v5274
        %v5338 = vpop.f32.mrf.mxu0
        %v5339 = vadd.f32 %v5268, %v5338
        %5340 = vmatmul.f32.gmra.mxu0 %v5277
        %v5341 = vpop.f32.mrf.mxu0
        %v5342 = vadd.f32 %v5268, %v5341
        %5343 = vmatmul.f32.gmra.mxu0 %v5280
        %v5344 = vpop.f32.mrf.mxu0
        %v5345 = vadd.f32 %v5268, %v5344
        %5346 = vmatmul.f32.gmra.mxu0 %v5283
        %v5347 = vpop.f32.mrf.mxu0
        %v5348 = vadd.f32 %v5268, %v5347
        %5349 = vmatmul.f32.gmra.mxu0 %v5286
        %v5350 = vpop.f32.mrf.mxu0
        %v5351 = vadd.f32 %v5268, %v5350
        %5352 = vmatmul.f32.gmra.mxu0 %v5289
        %v5353 = vpop.f32.mrf.mxu0
        %v5354 = vadd.f32 %v5268, %v5353
        %5355 = vmatmul.f32.gmra.mxu0 %v5292
        %v5356 = vpop.f32.mrf.mxu0
        %v5357 = vadd.f32 %v5268, %v5356
        %5358 = vmatmul.f32.gmra.mxu0 %v5295
        %v5359 = vpop.f32.mrf.mxu0
        %v5360 = vadd.f32 %v5268, %v5359
        %5361 = vmatmul.f32.gmra.mxu0 %v5298
        %v5362 = vpop.f32.mrf.mxu0
        %v5363 = vadd.f32 %v5268, %v5362
        %5364 = vmatmul.f32.gmra.mxu0 %v5301
        %v5365 = vpop.f32.mrf.mxu0
        %v5366 = vadd.f32 %v5268, %v5365
        %5367 = vmatmul.f32.gmra.mxu0 %v5304
        %v5368 = vpop.f32.mrf.mxu0
        %v5369 = vadd.f32 %v5268, %v5368
        %5370 = vmatmul.f32.gmra.mxu0 %v5307
        %v5371 = vpop.f32.mrf.mxu0
        %v5372 = vadd.f32 %v5268, %v5371
        %5373 = vmatmul.f32.gmra.mxu0 %v5310
        %v5374 = vpop.f32.mrf.mxu0
        %v5375 = vadd.f32 %v5268, %v5374
        %5376 = vmatmul.f32.gmra.mxu0 %v5313
        %v5377 = vpop.f32.mrf.mxu0
        %v5378 = vadd.f32 %v5268, %v5377
        %5379 = vmatmul.f32.gmra.mxu0 %v5316
        %v5380 = vpop.f32.mrf.mxu0
        %v5381 = vadd.f32 %v5268, %v5380
        %5382 = vdwg.mxu0
        %v5383 = vmax.f32 %v5336, 0.0
        %v5384 = vmax.f32 %v5339, 0.0
        %v5385 = vmax.f32 %v5342, 0.0
        %v5386 = vmax.f32 %v5345, 0.0
        %v5387 = vmax.f32 %v5348, 0.0
        %v5388 = vmax.f32 %v5351, 0.0
        %v5389 = vmax.f32 %v5354, 0.0
        %v5390 = vmax.f32 %v5357, 0.0
        %v5391 = vmax.f32 %v5360, 0.0
        %v5392 = vmax.f32 %v5363, 0.0
        %v5393 = vmax.f32 %v5366, 0.0
        %v5394 = vmax.f32 %v5369, 0.0
        %v5395 = vmax.f32 %v5372, 0.0
        %v5396 = vmax.f32 %v5375, 0.0
        %v5397 = vmax.f32 %v5378, 0.0
        %v5398 = vmax.f32 %v5381, 0.0
        %v5399 = vld [vmem:[%s11] sm:$0xff]
        %v5400 = vld [vmem:[%s11 + $0x8] sm:$0xff]
        %v5401 = vld [vmem:[%s11 + $0x10] sm:$0xff]
        %v5402 = vld [vmem:[%s11 + $0x18] sm:$0xff]
        %v5403 = vld [vmem:[%s11 + $0x20] sm:$0xff]
        %v5404 = vld [vmem:[%s11 + $0x28] sm:$0xff]
        %v5405 = vld [vmem:[%s11 + $0x30] sm:$0xff]
        %v5406 = vld [vmem:[%s11 + $0x38] sm:$0xff]
        %v5407 = vld [vmem:[%s11 + $0x40] sm:$0xff]
        %v5408 = vld [vmem:[%s11 + $0x48] sm:$0xff]
        %v5409 = vld [vmem:[%s11 + $0x50] sm:$0xff]
        %v5410 = vld [vmem:[%s11 + $0x58] sm:$0xff]
        %v5411 = vld [vmem:[%s11 + $0x60] sm:$0xff]
        %v5412 = vld [vmem:[%s11 + $0x68] sm:$0xff]
        %v5413 = vld [vmem:[%s11 + $0x70] sm:$0xff]
        %v5414 = vld [vmem:[%s11 + $0x78] sm:$0xff]
        %v5415 = vld [vmem:[%s12] sm:$0x1]
        %v5417 = vperm.slane %v5415, 0
        %5419 = vmatpush.msra.mxu0 %v5414
        %5420 = vmatpush.msra.mxu0 %v5413
        %5421 = vmatpush.msra.mxu0 %v5412
        %5422 = vmatpush.msra.mxu0 %v5411
        %5423 = vmatpush.msra.mxu0 %v5410
        %5424 = vmatpush.msra.mxu0 %v5409
        %5425 = vmatpush.msra.mxu0 %v5408
        %5426 = vmatpush.msra.mxu0 %v5407
        %5427 = vmatpush.msra.mxu0 %v5406
        %5428 = vmatpush.msra.mxu0 %v5405
        %5429 = vmatpush.msra.mxu0 %v5404
        %5430 = vmatpush.msra.mxu0 %v5403
        %5431 = vmatpush.msra.mxu0 %v5402
        %5432 = vmatpush.msra.mxu0 %v5401
        %5433 = vmatpush.msra.mxu0 %v5400
        %5434 = vmatpush.msra.mxu0 %v5399
        %5435 = vmatmul.f32.gmra.mxu0 %v5383
        %v5436 = vpop.f32.mrf.mxu0
        %v5437 = vadd.f32 %v5417, %v5436
        %5438 = vmatmul.f32.gmra.mxu0 %v5384
        %v5439 = vpop.f32.mrf.mxu0
        %v5440 = vadd.f32 %v5417, %v5439
        %5441 = vmatmul.f32.gmra.mxu0 %v5385
        %v5442 = vpop.f32.mrf.mxu0
        %v5443 = vadd.f32 %v5417, %v5442
        %5444 = vmatmul.f32.gmra.mxu0 %v5386
        %v5445 = vpop.f32.mrf.mxu0
        %v5446 = vadd.f32 %v5417, %v5445
        %5447 = vmatmul.f32.gmra.mxu0 %v5387
        %v5448 = vpop.f32.mrf.mxu0
        %v5449 = vadd.f32 %v5417, %v5448
        %5450 = vmatmul.f32.gmra.mxu0 %v5388
        %v5451 = vpop.f32.mrf.mxu0
        %v5452 = vadd.f32 %v5417, %v5451
        %5453 = vmatmul.f32.gmra.mxu0 %v5389
        %v5454 = vpop.f32.mrf.mxu0
        %v5455 = vadd.f32 %v5417, %v5454
        %5456 = vmatmul.f32.gmra.mxu0 %v5390
        %v5457 = vpop.f32.mrf.mxu0
        %v5458 = vadd.f32 %v5417, %v5457
        %5459 = vmatmul.f32.gmra.mxu0 %v5391
        %v5460 = vpop.f32.mrf.mxu0
        %v5461 = vadd.f32 %v5417, %v5460
        %5462 = vmatmul.f32.gmra.mxu0 %v5392
        %v5463 = vpop.f32.mrf.mxu0
        %v5464 = vadd.f32 %v5417, %v5463
        %5465 = vmatmul.f32.gmra.mxu0 %v5393
        %v5466 = vpop.f32.mrf.mxu0
        %v5467 = vadd.f32 %v5417, %v5466
        %5468 = vmatmul.f32.gmra.mxu0 %v5394
        %v5469 = vpop.f32.mrf.mxu0
        %v5470 = vadd.f32 %v5417, %v5469
        %5471 = vmatmul.f32.gmra.mxu0 %v5395
        %v5472 = vpop.f32.mrf.mxu0
        %v5473 = vadd.f32 %v5417, %v5472
        %5474 = vmatmul.f32.gmra.mxu0 %v5396
        %v5475 = vpop.f32.mrf.mxu0
        %v5476 = vadd.f32 %v5417, %v5475
        %5477 = vmatmul.f32.gmra.mxu0 %v5397
        %v5478 = vpop.f32.mrf.mxu0
        %v5479 = vadd.f32 %v5417, %v5478
        %5480 = vmatmul.f32.gmra.mxu0 %v5398
        %v5481 = vpop.f32.mrf.mxu0
        %v5482 = vadd.f32 %v5417, %v5481
        %5483 = vdwg.mxu0
        %v5484 = vadd.f32 %v4854, %v5437
        %v5485 = vadd.f32 %v4855, %v5440
        %v5486 = vadd.f32 %v4856, %v5443
        %v5487 = vadd.f32 %v4857, %v5446
        %v5488 = vadd.f32 %v4858, %v5449
        %v5489 = vadd.f32 %v4859, %v5452
        %v5490 = vadd.f32 %v4860, %v5455
        %v5491 = vadd.f32 %v4861, %v5458
        %v5492 = vadd.f32 %v4862, %v5461
        %v5493 = vadd.f32 %v4863, %v5464
        %v5494 = vadd.f32 %v4864, %v5467
        %v5495 = vadd.f32 %v4865, %v5470
        %v5496 = vadd.f32 %v4866, %v5473
        %v5497 = vadd.f32 %v4867, %v5476
        %v5498 = vadd.f32 %v4868, %v5479
        %v5499 = vadd.f32 %v4869, %v5482
        %5500 = vst.msk [vmem:[%s461] sm:$0xff] %vm482, %v5484
        %5501 = vst.msk [vmem:[%s461 + $0x8] sm:$0xff] %vm482, %v5485
        %5502 = vst.msk [vmem:[%s461 + $0x10] sm:$0xff] %vm482, %v5486
        %5503 = vst.msk [vmem:[%s461 + $0x18] sm:$0xff] %vm482, %v5487
        %5504 = vst.msk [vmem:[%s461 + $0x20] sm:$0xff] %vm482, %v5488
        %5505 = vst.msk [vmem:[%s461 + $0x28] sm:$0xff] %vm482, %v5489
        %5506 = vst.msk [vmem:[%s461 + $0x30] sm:$0xff] %vm482, %v5490
        %5507 = vst.msk [vmem:[%s461 + $0x38] sm:$0xff] %vm482, %v5491
        %5508 = vst.msk [vmem:[%s461 + $0x40] sm:$0xff] %vm482, %v5492
        %5509 = vst.msk [vmem:[%s461 + $0x48] sm:$0xff] %vm482, %v5493
        %5510 = vst.msk [vmem:[%s461 + $0x50] sm:$0xff] %vm482, %v5494
        %5511 = vst.msk [vmem:[%s461 + $0x58] sm:$0xff] %vm482, %v5495
        %5512 = vst.msk [vmem:[%s461 + $0x60] sm:$0xff] %vm482, %v5496
        %5513 = vst.msk [vmem:[%s461 + $0x68] sm:$0xff] %vm482, %v5497
        %5514 = vst.msk [vmem:[%s461 + $0x70] sm:$0xff] %vm482, %v5498
        %5515 = vst.msk [vmem:[%s461 + $0x78] sm:$0xff] %vm482, %v5499
        %s5516 = sand.u32 %s316, 1
        %s5517 = scalar_lea.sflag [#allocation4], %s5516
        %s5518 = sand.u32 %s316, 1
        %s5519 = smul.addr %s5518, 128
        %s5520 = scalar_lea.vmem [#allocation5], %s5519
        // Predicated region
        $region77: #{tpu_custom_call.1} parent=71 // pred_check
          %p5521 = pneg %p326
        $region78: #{tpu_custom_call.1} parent=71 // pred_check_branch
          %5523 = sbr.rel (%p5521) target = $region80
        $region79: #{tpu_custom_call.1} parent=71 // pred_region
          %s5524 = smul.u32 4, %s30
          %5526 = vsyncadd %s5517, 0
          %s5527 = smul.addr %s5524, 4
          %s5528 = smul.addr %s5527, 8
          %s5529 = scalar_lea.hbm %s13, %s5528
          %s5530 = sshll.u32 %s5520, 4
          %s5531 = int_to_ptr.vmem [resolvable:$true] %s5530
          %s5532 = sshll.u32 %s5529, 4
          %s5533 = int_to_ptr.hbm [resolvable:$true] %s5532
          %5538 = dma.vmem_to_hbm [thread:$0]  %s5531, 2048, %s5533, %s5517, 128, 128, 8
        $region80: #{tpu_custom_call.1} parent=71 // pred_fallthru
          _
      $region72: #{tpu_custom_call.1} parent=5 // pred_fallthru
        _
      %p5539 = scmp.le.s32.totalorder 2, %s25
      // Predicated region
      $region81: #{tpu_custom_call.1} parent=5 // pred_check
        %p5540 = pneg %p5539
      $region82: #{tpu_custom_call.1} parent=5 // pred_check_branch
        %5542 = sbr.rel (%p5540) target = $region84
      $region83: #{tpu_custom_call.1} parent=5 // pred_region
        %s5543 = ssub.s32 %s25, 2
        // Predicated region
        $region85: #{tpu_custom_call.1} parent=83 // pred_check
          %p5544 = pneg %p332
        $region86: #{tpu_custom_call.1} parent=83 // pred_check_branch
          %5546 = sbr.rel (%p5544) target = $region88
        $region87: #{tpu_custom_call.1} parent=83 // pred_region
          %s5547 = sand.u32 %s317, 1
          %s5548 = scalar_lea.sflag [#allocation4], %s5547
          %s5549 = sand.u32 %s317, 1
          %s5550 = smul.addr %s5549, 128
          %s5551 = scalar_lea.vmem [#allocation5], %s5550
          %5553 = dma.done %s5548, 2048
        $region88: #{tpu_custom_call.1} parent=83 // pred_fallthru
          _
      $region84: #{tpu_custom_call.1} parent=5 // pred_fallthru
        _
    $region6: #{tpu_custom_call.1} parent=1 // loop_footer
      %s29 = sadd.s32 1, %s25
    $region7: #{tpu_custom_call.1} parent=1 // loop_footer_branch
      %24 = sbr.rel target = $region3
    $region8: #{tpu_custom_call.1} parent=1 // loop_exit
      _
    %5554 = vsyncpa [#allocation3], 1
    %s5555 = scalar_lea.sflag [#allocation3], 1
    %5556 = vsyncpa %s5555, 1
    %5557 = vsyncpa [#allocation4], 1
    %s5558 = scalar_lea.sflag [#allocation4], 1
    %5559 = vsyncpa %s5558, 1

</llo_original>
